<compile_context>
chip_gen: v5e
topology: v5e:2x2
jax: 0.10.0
libtpu: 0.0.40
codegen_flags: <defaults>
</compile_context>

<pallas_src>
import math
import functools

import jax
import jax.numpy as jnp
from jax.experimental import pallas as pl
from jax.experimental.pallas import tpu as pltpu

# ---- small shapes consistent with the module --------------------------------
EMB = 32          # emb_dims (GRU input features)
HID = 16          # GRU hidden size -> attention embed dim E = 2*HID = 32
HEADS = 4         # attention heads (E % HEADS == 0, head_dim = 8)
SEQ = 8           # padded sequence length T
BATCH = 2         # batch size N
E = 2 * HID
DH = E // HEADS


# ---- fused kernel ------------------------------------------------------------
def _dhga_kernel(x_ref, len_ref,
                 wih_f_ref, whh_f_ref, bih_f_ref, bhh_f_ref,
                 wih_b_ref, whh_b_ref, bih_b_ref, bhh_b_ref,
                 wqkv_ref, bqkv_ref, wo_ref, bo_ref,
                 w1_ref, b1_ref, w2_ref, b2_ref,
                 o_ref, gru_ref, *, N, T, HH, NH):
    E_ = 2 * HH
    DH_ = E_ // NH
    scale = 1.0 / math.sqrt(DH_)

    lens = len_ref[...]                      # (N, 1) int32
    x2 = x_ref[...]                          # (N*T, EMB), row = n*T + t

    # ---- GRU: input-side projections hoisted out of the recurrence ----------
    gi_f = jnp.dot(x2, wih_f_ref[...],
                   preferred_element_type=jnp.float32) + bih_f_ref[...]
    gi_b = jnp.dot(x2, wih_b_ref[...],
                   preferred_element_type=jnp.float32) + bih_b_ref[...]

    whh_f = whh_f_ref[...]
    bhh_f = bhh_f_ref[...]
    whh_b = whh_b_ref[...]
    bhh_b = bhh_b_ref[...]

    def rows_at(mat, t):
        # gather the N rows of timestep t (row layout is n*T + t)
        return jnp.concatenate(
            [mat[n * T + t:n * T + t + 1, :] for n in range(N)], axis=0)

    def cell(gi_t, h_prev, whh, bhh, valid):
        gh = jnp.dot(h_prev, whh, preferred_element_type=jnp.float32) + bhh
        r = jax.nn.sigmoid(gi_t[:, 0:HH] + gh[:, 0:HH])
        z = jax.nn.sigmoid(gi_t[:, HH:2 * HH] + gh[:, HH:2 * HH])
        ng = jnp.tanh(gi_t[:, 2 * HH:3 * HH] + r * gh[:, 2 * HH:3 * HH])
        h_new = (1.0 - z) * ng + z * h_prev
        # packed-sequence semantics: positions past the length stay zero
        return jnp.where(valid, h_new, 0.0)

    def store(h, t, lane0):
        for n in range(N):
            gru_ref[n * T + t:n * T + t + 1, lane0:lane0 + HH] = h[n:n + 1, :]

    h = jnp.zeros((N, HH), jnp.float32)
    for t in range(T):                                   # forward direction
        h = cell(rows_at(gi_f, t), h, whh_f, bhh_f, lens > t)
        store(h, t, 0)

    h = jnp.zeros((N, HH), jnp.float32)
    for t in range(T - 1, -1, -1):                       # backward direction
        h = cell(rows_at(gi_b, t), h, whh_b, bhh_b, lens > t)
        store(h, t, HH)

    g2 = gru_ref[...]                                    # (N*T, E_)

    # ---- multi-head self-attention: one QKV matmul, heads batched ------------
    qkv = jnp.dot(g2, wqkv_ref[...],
                  preferred_element_type=jnp.float32) + bqkv_ref[...]   # (N*T, 3E)
    q2 = qkv[:, 0:E_] * scale
    k2 = qkv[:, E_:2 * E_]
    v2 = qkv[:, 2 * E_:3 * E_]

    def heads3d(m2):
        # (N*T, E_) -> (NH*N, T, DH_) with batch index b = i*N + n
        blocks = []
        for i in range(NH):
            for n in range(N):
                blocks.append(m2[n * T:(n + 1) * T,
                                 i * DH_:(i + 1) * DH_][None, :, :])
        return jnp.concatenate(blocks, axis=0)

    qh, kh, vh = heads3d(q2), heads3d(k2), heads3d(v2)

    s = jnp.einsum('bqd,bkd->bqk', qh, kh,
                   preferred_element_type=jnp.float32)                  # (NH*N,T,T)
    s = s - jnp.max(s, axis=-1, keepdims=True)
    p = jnp.exp(s)
    p = p * pl.reciprocal(jnp.sum(p, axis=-1, keepdims=True), approx=True)
    oh = jnp.einsum('bqk,bkd->bqd', p, vh,
                    preferred_element_type=jnp.float32)                 # (NH*N,T,DH)

    # heads back onto the lane dim -> (N*T, E_) -> single output projection
    rows = []
    for n in range(N):
        rows.append(jnp.concatenate([oh[i * N + n] for i in range(NH)], axis=-1))
    att = jnp.concatenate(rows, axis=0)                                 # (N*T, E_)
    att = jnp.dot(att, wo_ref[...],
                  preferred_element_type=jnp.float32) + bo_ref[...]

    # ---- mean / max pooling over the (padded) time axis + MLP head -----------
    feats = []
    for n in range(N):
        blk = att[n * T:(n + 1) * T, :]                                 # (T, E_)
        feats.append(jnp.concatenate(
            [jnp.mean(blk, axis=0, keepdims=True),
             jnp.max(blk, axis=0, keepdims=True)], axis=-1))            # (1, 2E_)
    feat = jnp.concatenate(feats, axis=0)                               # (N, 2E_)

    h1 = jnp.maximum(
        jnp.dot(feat, w1_ref[...], preferred_element_type=jnp.float32)
        + b1_ref[...], 0.0)
    out = jnp.sum(h1 * w2_ref[...], axis=-1, keepdims=True) + b2_ref[...]
    o_ref[...] = out.astype(o_ref.dtype)


# ---- wrapper -----------------------------------------------------------------
@jax.jit
def deep_hydra_forward(x, lengths, ops):
    """x: (N, T, EMB) float32, lengths: (N,) int.  Returns (N, 1) float32."""
    N, T, _ = x.shape
    x2 = x.reshape(N * T, -1)                       # metadata-only reshape
    lens2 = lengths.astype(jnp.int32).reshape(N, 1)
    kernel = functools.partial(_dhga_kernel, N=N, T=T, HH=HID, NH=HEADS)
    n_in = 2 + len(ops)
    return pl.pallas_call(
        kernel,
        out_shape=jax.ShapeDtypeStruct((N, 1), jnp.float32),
        in_specs=[pl.BlockSpec(memory_space=pltpu.MemorySpace.VMEM)] * n_in,
        out_specs=pl.BlockSpec(memory_space=pltpu.MemorySpace.VMEM),
        scratch_shapes=[pltpu.VMEM((N * T, 2 * HID), jnp.float32)],
    )(x2, lens2, *ops)


# ---- parameters (PyTorch layout), pre-processed once for the kernel ----------
def build_params(key):
    ks = jax.random.split(key, 16)

    def u(k, shape, s):
        return s * jax.random.uniform(k, shape, jnp.float32, -1.0, 1.0)

    kg = 1.0 / math.sqrt(HID)
    ka = 1.0 / math.sqrt(E)
    return dict(
        w_ih_f=u(ks[0], (3 * HID, EMB), kg), w_hh_f=u(ks[1], (3 * HID, HID), kg),
        b_ih_f=u(ks[2], (3 * HID,), kg),     b_hh_f=u(ks[3], (3 * HID,), kg),
        w_ih_b=u(ks[4], (3 * HID, EMB), kg), w_hh_b=u(ks[5], (3 * HID, HID), kg),
        b_ih_b=u(ks[6], (3 * HID,), kg),     b_hh_b=u(ks[7], (3 * HID,), kg),
        in_w=u(ks[8], (3 * E, E), ka),       in_b=u(ks[9], (3 * E,), ka),
        out_w=u(ks[10], (E, E), ka),         out_b=u(ks[11], (E,), ka),
        w1=u(ks[12], (HID, 4 * HID), 1.0 / math.sqrt(4 * HID)),
        b1=u(ks[13], (HID,), 1.0 / math.sqrt(4 * HID)),
        w2=u(ks[14], (1, HID), 1.0 / math.sqrt(HID)),
        b2=u(ks[15], (1,), 1.0 / math.sqrt(HID)),
    )


def kernel_operands(p):
    """Pre-transpose / reshape weights ONCE (hoisted out of the forward path)."""
    return (
        p["w_ih_f"].T, p["w_hh_f"].T, p["b_ih_f"][None, :], p["b_hh_f"][None, :],
        p["w_ih_b"].T, p["w_hh_b"].T, p["b_ih_b"][None, :], p["b_hh_b"][None, :],
        p["in_w"].T, p["in_b"][None, :], p["out_w"].T, p["out_b"][None, :],
        p["w1"].T, p["b1"][None, :], p["w2"], p["b2"][None, :],
    )


# ---- pure-JAX reference (PyTorch semantics, incl. pack/pad masking) -----------
def reference_forward(x, lengths, p):
    N, T, _ = x.shape
    lens = lengths.astype(jnp.int32)

    def gru_dir(w_ih, w_hh, b_ih, b_hh, reverse):
        h = jnp.zeros((N, HID), jnp.float32)
        outs = [None] * T
        order = range(T - 1, -1, -1) if reverse else range(T)
        for t in order:
            gi = x[:, t, :] @ w_ih.T + b_ih
            gh = h @ w_hh.T + b_hh
            r = jax.nn.sigmoid(gi[:, :HID] + gh[:, :HID])
            z = jax.nn.sigmoid(gi[:, HID:2 * HID] + gh[:, HID:2 * HID])
            ng = jnp.tanh(gi[:, 2 * HID:] + r * gh[:, 2 * HID:])
            h_new = (1.0 - z) * ng + z * h
            h = jnp.where((lens > t)[:, None], h_new, 0.0)
            outs[t] = h
        return jnp.stack(outs, axis=1)                           # (N, T, HID)

    g = jnp.concatenate(
        [gru_dir(p["w_ih_f"], p["w_hh_f"], p["b_ih_f"], p["b_hh_f"], False),
         gru_dir(p["w_ih_b"], p["w_hh_b"], p["b_ih_b"], p["b_hh_b"], True)],
        axis=-1)                                                 # (N, T, E)

    qkv = jnp.einsum('nte,fe->ntf', g, p["in_w"]) + p["in_b"]
    q, k, v = jnp.split(qkv, 3, axis=-1)

    def split_heads(m):
        return m.reshape(N, T, HEADS, DH).transpose(0, 2, 1, 3)

    q, k, v = split_heads(q), split_heads(k), split_heads(v)
    s = jnp.einsum('nhqd,nhkd->nhqk', q, k) / math.sqrt(DH)
    pr = jax.nn.softmax(s, axis=-1)
    o = jnp.einsum('nhqk,nhkd->nhqd', pr, v)
    o = o.transpose(0, 2, 1, 3).reshape(N, T, E)
    o = jnp.einsum('nte,fe->ntf', o, p["out_w"]) + p["out_b"]

    feat = jnp.concatenate([o.mean(axis=1), o.max(axis=1)], axis=-1)   # (N, 4*HID)
    h1 = jax.nn.relu(feat @ p["w1"].T + p["b1"])
    return h1 @ p["w2"].T + p["b2"]                                    # (N, 1)


# ---- main ---------------------------------------------------------------------
if __name__ == "__main__":
    key = jax.random.PRNGKey(0)
    kx, kp = jax.random.split(key)

    x = jax.random.normal(kx, (BATCH, SEQ, EMB), jnp.float32)
    lengths = jnp.array([SEQ, SEQ - 2], dtype=jnp.int32)   # sorted descending
    params = build_params(kp)
    ops = kernel_operands(params)

    out = deep_hydra_forward(x, lengths, ops)
    out = jax.block_until_ready(out)

    ref = reference_forward(x, lengths, params)
    assert out.shape == (BATCH, 1)
    assert jnp.allclose(out, ref, atol=3e-3, rtol=3e-3), (
        f"mismatch vs reference: max abs err = {jnp.max(jnp.abs(out - ref))}")

    print("KERNEL_OK")
</pallas_src>

<mosaic_0001>
module attributes {stable_mosaic.version = 11 : i64} {
  func.func @_dhga_kernel(%arg0: memref<16x32xf32, #tpu.memory_space<vmem>>, %arg1: memref<2x1xi32, #tpu.memory_space<vmem>>, %arg2: memref<32x48xf32, #tpu.memory_space<vmem>>, %arg3: memref<16x48xf32, #tpu.memory_space<vmem>>, %arg4: memref<1x48xf32, #tpu.memory_space<vmem>>, %arg5: memref<1x48xf32, #tpu.memory_space<vmem>>, %arg6: memref<32x48xf32, #tpu.memory_space<vmem>>, %arg7: memref<16x48xf32, #tpu.memory_space<vmem>>, %arg8: memref<1x48xf32, #tpu.memory_space<vmem>>, %arg9: memref<1x48xf32, #tpu.memory_space<vmem>>, %arg10: memref<32x96xf32, #tpu.memory_space<vmem>>, %arg11: memref<1x96xf32, #tpu.memory_space<vmem>>, %arg12: memref<32x32xf32, #tpu.memory_space<vmem>>, %arg13: memref<1x32xf32, #tpu.memory_space<vmem>>, %arg14: memref<64x16xf32, #tpu.memory_space<vmem>>, %arg15: memref<1x16xf32, #tpu.memory_space<vmem>>, %arg16: memref<1x16xf32, #tpu.memory_space<vmem>>, %arg17: memref<1x1xf32, #tpu.memory_space<vmem>>, %arg18: memref<2x1xf32, #tpu.memory_space<vmem>>, %arg19: memref<16x32xf32, #tpu.memory_space<vmem>>) attributes {dimension_semantics = [], scalar_prefetch = 0 : i64, scratch_operands = 1 : i64, tpu.core_type = #tpu.core_type<tc>} {
    %c0 = arith.constant 0 : index
    %c0_0 = arith.constant 0 : index
    %0 = vector.load %arg1[%c0, %c0_0] : memref<2x1xi32, #tpu.memory_space<vmem>>, vector<2x1xi32>
    %c0_1 = arith.constant 0 : index
    %c0_2 = arith.constant 0 : index
    %1 = vector.load %arg0[%c0_1, %c0_2] : memref<16x32xf32, #tpu.memory_space<vmem>>, vector<16x32xf32>
    %c0_3 = arith.constant 0 : index
    %c0_4 = arith.constant 0 : index
    %2 = vector.load %arg2[%c0_3, %c0_4] : memref<32x48xf32, #tpu.memory_space<vmem>>, vector<32x48xf32>
    %cst = arith.constant dense<0.000000e+00> : vector<16x48xf32>
    %3 = tpu.matmul %1, %2, %cst {dimension_numbers = #tpu.dot_dimension_numbers<[1], [0], [0], [1], [0, 0, 1, 1], [], []>} : vector<16x32xf32>, vector<32x48xf32>, vector<16x48xf32> -> vector<16x48xf32>
    %c0_5 = arith.constant 0 : index
    %c0_6 = arith.constant 0 : index
    %4 = vector.load %arg4[%c0_5, %c0_6] : memref<1x48xf32, #tpu.memory_space<vmem>>, vector<1x48xf32>
    %5 = vector.broadcast %4 : vector<1x48xf32> to vector<16x48xf32>
    %6 = arith.addf %3, %5 : vector<16x48xf32>
    %c0_7 = arith.constant 0 : index
    %c0_8 = arith.constant 0 : index
    %7 = vector.load %arg6[%c0_7, %c0_8] : memref<32x48xf32, #tpu.memory_space<vmem>>, vector<32x48xf32>
    %cst_9 = arith.constant dense<0.000000e+00> : vector<16x48xf32>
    %8 = tpu.matmul %1, %7, %cst_9 {dimension_numbers = #tpu.dot_dimension_numbers<[1], [0], [0], [1], [0, 0, 1, 1], [], []>} : vector<16x32xf32>, vector<32x48xf32>, vector<16x48xf32> -> vector<16x48xf32>
    %c0_10 = arith.constant 0 : index
    %c0_11 = arith.constant 0 : index
    %9 = vector.load %arg8[%c0_10, %c0_11] : memref<1x48xf32, #tpu.memory_space<vmem>>, vector<1x48xf32>
    %10 = vector.broadcast %9 : vector<1x48xf32> to vector<16x48xf32>
    %11 = arith.addf %8, %10 : vector<16x48xf32>
    %c0_12 = arith.constant 0 : index
    %c0_13 = arith.constant 0 : index
    %12 = vector.load %arg3[%c0_12, %c0_13] : memref<16x48xf32, #tpu.memory_space<vmem>>, vector<16x48xf32>
    %c0_14 = arith.constant 0 : index
    %c0_15 = arith.constant 0 : index
    %13 = vector.load %arg5[%c0_14, %c0_15] : memref<1x48xf32, #tpu.memory_space<vmem>>, vector<1x48xf32>
    %c0_16 = arith.constant 0 : index
    %c0_17 = arith.constant 0 : index
    %14 = vector.load %arg7[%c0_16, %c0_17] : memref<16x48xf32, #tpu.memory_space<vmem>>, vector<16x48xf32>
    %c0_18 = arith.constant 0 : index
    %c0_19 = arith.constant 0 : index
    %15 = vector.load %arg9[%c0_18, %c0_19] : memref<1x48xf32, #tpu.memory_space<vmem>>, vector<1x48xf32>
    %cst_20 = arith.constant 0.000000e+00 : f32
    %16 = vector.broadcast %cst_20 : f32 to vector<2x16xf32>
    %17 = vector.extract_strided_slice %6 {offsets = [0, 0], sizes = [1, 48], strides = [1, 1]} : vector<16x48xf32> to vector<1x48xf32>
    %18 = vector.extract_strided_slice %6 {offsets = [8, 0], sizes = [1, 48], strides = [1, 1]} : vector<16x48xf32> to vector<1x48xf32>
    %19 = tpu.concatenate %17, %18 in 0 : vector<1x48xf32>, vector<1x48xf32> -> vector<2x48xf32>
    %c0_i32 = arith.constant 0 : i32
    %20 = vector.broadcast %c0_i32 : i32 to vector<2x1xi32>
    %21 = arith.cmpi sgt, %0, %20 : vector<2x1xi32>
    %cst_21 = arith.constant dense<0.000000e+00> : vector<2x48xf32>
    %22 = tpu.matmul %16, %12, %cst_21 {dimension_numbers = #tpu.dot_dimension_numbers<[1], [0], [0], [1], [0, 0, 1, 1], [], []>} : vector<2x16xf32>, vector<16x48xf32>, vector<2x48xf32> -> vector<2x48xf32>
    %23 = vector.broadcast %13 : vector<1x48xf32> to vector<2x48xf32>
    %24 = arith.addf %22, %23 : vector<2x48xf32>
    %25 = vector.extract_strided_slice %19 {offsets = [0, 0], sizes = [2, 16], strides = [1, 1]} : vector<2x48xf32> to vector<2x16xf32>
    %26 = vector.extract_strided_slice %24 {offsets = [0, 0], sizes = [2, 16], strides = [1, 1]} : vector<2x48xf32> to vector<2x16xf32>
    %27 = arith.addf %25, %26 : vector<2x16xf32>
    %28 = arith.negf %27 : vector<2x16xf32>
    %29 = math.exp %28 : vector<2x16xf32>
    %cst_22 = arith.constant 1.000000e+00 : f32
    %30 = vector.broadcast %cst_22 : f32 to vector<2x16xf32>
    %31 = arith.addf %30, %29 : vector<2x16xf32>
    %32 = arith.divf %30, %31 : vector<2x16xf32>
    %33 = vector.extract_strided_slice %19 {offsets = [0, 16], sizes = [2, 16], strides = [1, 1]} : vector<2x48xf32> to vector<2x16xf32>
    %34 = vector.extract_strided_slice %24 {offsets = [0, 16], sizes = [2, 16], strides = [1, 1]} : vector<2x48xf32> to vector<2x16xf32>
    %35 = arith.addf %33, %34 : vector<2x16xf32>
    %36 = arith.negf %35 : vector<2x16xf32>
    %37 = math.exp %36 : vector<2x16xf32>
    %cst_23 = arith.constant 1.000000e+00 : f32
    %38 = vector.broadcast %cst_23 : f32 to vector<2x16xf32>
    %39 = arith.addf %38, %37 : vector<2x16xf32>
    %40 = arith.divf %38, %39 : vector<2x16xf32>
    %41 = vector.extract_strided_slice %19 {offsets = [0, 32], sizes = [2, 16], strides = [1, 1]} : vector<2x48xf32> to vector<2x16xf32>
    %42 = vector.extract_strided_slice %24 {offsets = [0, 32], sizes = [2, 16], strides = [1, 1]} : vector<2x48xf32> to vector<2x16xf32>
    %43 = arith.mulf %32, %42 : vector<2x16xf32>
    %44 = arith.addf %41, %43 : vector<2x16xf32>
    %45 = math.tanh %44 : vector<2x16xf32>
    %cst_24 = arith.constant 1.000000e+00 : f32
    %46 = vector.broadcast %cst_24 : f32 to vector<2x16xf32>
    %47 = arith.subf %46, %40 : vector<2x16xf32>
    %48 = arith.mulf %47, %45 : vector<2x16xf32>
    %49 = arith.mulf %40, %16 : vector<2x16xf32>
    %50 = arith.addf %48, %49 : vector<2x16xf32>
    %cst_25 = arith.constant 0.000000e+00 : f32
    %51 = vector.shape_cast %21 : vector<2x1xi1> to vector<2x1xi1>
    %52 = vector.broadcast %51 : vector<2x1xi1> to vector<2x16xi1>
    %53 = vector.broadcast %cst_25 : f32 to vector<2x16xf32>
    %54 = arith.select %52, %50, %53 : vector<2x16xi1>, vector<2x16xf32>
    %55 = vector.extract_strided_slice %54 {offsets = [0, 0], sizes = [1, 16], strides = [1, 1]} : vector<2x16xf32> to vector<1x16xf32>
    %c0_26 = arith.constant 0 : index
    %c0_27 = arith.constant 0 : index
    %56 = vector.load %arg19[%c0_26, %c0_27] : memref<16x32xf32, #tpu.memory_space<vmem>>, vector<1x16xf32>
    tpu.vector_store %arg19[%c0_26, %c0_27], %55 {strides = array<i32>} : memref<16x32xf32, #tpu.memory_space<vmem>>, vector<1x16xf32>,
    %57 = vector.extract_strided_slice %54 {offsets = [1, 0], sizes = [1, 16], strides = [1, 1]} : vector<2x16xf32> to vector<1x16xf32>
    %c8 = arith.constant 8 : index
    %c0_28 = arith.constant 0 : index
    %58 = vector.load %arg19[%c8, %c0_28] : memref<16x32xf32, #tpu.memory_space<vmem>>, vector<1x16xf32>
    tpu.vector_store %arg19[%c8, %c0_28], %57 {strides = array<i32>} : memref<16x32xf32, #tpu.memory_space<vmem>>, vector<1x16xf32>,
    %59 = vector.extract_strided_slice %6 {offsets = [1, 0], sizes = [1, 48], strides = [1, 1]} : vector<16x48xf32> to vector<1x48xf32>
    %60 = vector.extract_strided_slice %6 {offsets = [9, 0], sizes = [1, 48], strides = [1, 1]} : vector<16x48xf32> to vector<1x48xf32>
    %61 = tpu.concatenate %59, %60 in 0 : vector<1x48xf32>, vector<1x48xf32> -> vector<2x48xf32>
    %c1_i32 = arith.constant 1 : i32
    %62 = vector.broadcast %c1_i32 : i32 to vector<2x1xi32>
    %63 = arith.cmpi sgt, %0, %62 : vector<2x1xi32>
    %cst_29 = arith.constant dense<0.000000e+00> : vector<2x48xf32>
    %64 = tpu.matmul %54, %12, %cst_29 {dimension_numbers = #tpu.dot_dimension_numbers<[1], [0], [0], [1], [0, 0, 1, 1], [], []>} : vector<2x16xf32>, vector<16x48xf32>, vector<2x48xf32> -> vector<2x48xf32>
    %65 = vector.broadcast %13 : vector<1x48xf32> to vector<2x48xf32>
    %66 = arith.addf %64, %65 : vector<2x48xf32>
    %67 = vector.extract_strided_slice %61 {offsets = [0, 0], sizes = [2, 16], strides = [1, 1]} : vector<2x48xf32> to vector<2x16xf32>
    %68 = vector.extract_strided_slice %66 {offsets = [0, 0], sizes = [2, 16], strides = [1, 1]} : vector<2x48xf32> to vector<2x16xf32>
    %69 = arith.addf %67, %68 : vector<2x16xf32>
    %70 = arith.negf %69 : vector<2x16xf32>
    %71 = math.exp %70 : vector<2x16xf32>
    %cst_30 = arith.constant 1.000000e+00 : f32
    %72 = vector.broadcast %cst_30 : f32 to vector<2x16xf32>
    %73 = arith.addf %72, %71 : vector<2x16xf32>
    %74 = arith.divf %72, %73 : vector<2x16xf32>
    %75 = vector.extract_strided_slice %61 {offsets = [0, 16], sizes = [2, 16], strides = [1, 1]} : vector<2x48xf32> to vector<2x16xf32>
    %76 = vector.extract_strided_slice %66 {offsets = [0, 16], sizes = [2, 16], strides = [1, 1]} : vector<2x48xf32> to vector<2x16xf32>
    %77 = arith.addf %75, %76 : vector<2x16xf32>
    %78 = arith.negf %77 : vector<2x16xf32>
    %79 = math.exp %78 : vector<2x16xf32>
    %cst_31 = arith.constant 1.000000e+00 : f32
    %80 = vector.broadcast %cst_31 : f32 to vector<2x16xf32>
    %81 = arith.addf %80, %79 : vector<2x16xf32>
    %82 = arith.divf %80, %81 : vector<2x16xf32>
    %83 = vector.extract_strided_slice %61 {offsets = [0, 32], sizes = [2, 16], strides = [1, 1]} : vector<2x48xf32> to vector<2x16xf32>
    %84 = vector.extract_strided_slice %66 {offsets = [0, 32], sizes = [2, 16], strides = [1, 1]} : vector<2x48xf32> to vector<2x16xf32>
    %85 = arith.mulf %74, %84 : vector<2x16xf32>
    %86 = arith.addf %83, %85 : vector<2x16xf32>
    %87 = math.tanh %86 : vector<2x16xf32>
    %cst_32 = arith.constant 1.000000e+00 : f32
    %88 = vector.broadcast %cst_32 : f32 to vector<2x16xf32>
    %89 = arith.subf %88, %82 : vector<2x16xf32>
    %90 = arith.mulf %89, %87 : vector<2x16xf32>
    %91 = arith.mulf %82, %54 : vector<2x16xf32>
    %92 = arith.addf %90, %91 : vector<2x16xf32>
    %cst_33 = arith.constant 0.000000e+00 : f32
    %93 = vector.shape_cast %63 : vector<2x1xi1> to vector<2x1xi1>
    %94 = vector.broadcast %93 : vector<2x1xi1> to vector<2x16xi1>
    %95 = vector.broadcast %cst_33 : f32 to vector<2x16xf32>
    %96 = arith.select %94, %92, %95 : vector<2x16xi1>, vector<2x16xf32>
    %97 = vector.extract_strided_slice %96 {offsets = [0, 0], sizes = [1, 16], strides = [1, 1]} : vector<2x16xf32> to vector<1x16xf32>
    %c1 = arith.constant 1 : index
    %c0_34 = arith.constant 0 : index
    %98 = vector.load %arg19[%c1, %c0_34] : memref<16x32xf32, #tpu.memory_space<vmem>>, vector<1x16xf32>
    tpu.vector_store %arg19[%c1, %c0_34], %97 {strides = array<i32>} : memref<16x32xf32, #tpu.memory_space<vmem>>, vector<1x16xf32>,
    %99 = vector.extract_strided_slice %96 {offsets = [1, 0], sizes = [1, 16], strides = [1, 1]} : vector<2x16xf32> to vector<1x16xf32>
    %c9 = arith.constant 9 : index
    %c0_35 = arith.constant 0 : index
    %100 = vector.load %arg19[%c9, %c0_35] : memref<16x32xf32, #tpu.memory_space<vmem>>, vector<1x16xf32>
    tpu.vector_store %arg19[%c9, %c0_35], %99 {strides = array<i32>} : memref<16x32xf32, #tpu.memory_space<vmem>>, vector<1x16xf32>,
    %101 = vector.extract_strided_slice %6 {offsets = [2, 0], sizes = [1, 48], strides = [1, 1]} : vector<16x48xf32> to vector<1x48xf32>
    %102 = vector.extract_strided_slice %6 {offsets = [10, 0], sizes = [1, 48], strides = [1, 1]} : vector<16x48xf32> to vector<1x48xf32>
    %103 = tpu.concatenate %101, %102 in 0 : vector<1x48xf32>, vector<1x48xf32> -> vector<2x48xf32>
    %c2_i32 = arith.constant 2 : i32
    %104 = vector.broadcast %c2_i32 : i32 to vector<2x1xi32>
    %105 = arith.cmpi sgt, %0, %104 : vector<2x1xi32>
    %cst_36 = arith.constant dense<0.000000e+00> : vector<2x48xf32>
    %106 = tpu.matmul %96, %12, %cst_36 {dimension_numbers = #tpu.dot_dimension_numbers<[1], [0], [0], [1], [0, 0, 1, 1], [], []>} : vector<2x16xf32>, vector<16x48xf32>, vector<2x48xf32> -> vector<2x48xf32>
    %107 = vector.broadcast %13 : vector<1x48xf32> to vector<2x48xf32>
    %108 = arith.addf %106, %107 : vector<2x48xf32>
    %109 = vector.extract_strided_slice %103 {offsets = [0, 0], sizes = [2, 16], strides = [1, 1]} : vector<2x48xf32> to vector<2x16xf32>
    %110 = vector.extract_strided_slice %108 {offsets = [0, 0], sizes = [2, 16], strides = [1, 1]} : vector<2x48xf32> to vector<2x16xf32>
    %111 = arith.addf %109, %110 : vector<2x16xf32>
    %112 = arith.negf %111 : vector<2x16xf32>
    %113 = math.exp %112 : vector<2x16xf32>
    %cst_37 = arith.constant 1.000000e+00 : f32
    %114 = vector.broadcast %cst_37 : f32 to vector<2x16xf32>
    %115 = arith.addf %114, %113 : vector<2x16xf32>
    %116 = arith.divf %114, %115 : vector<2x16xf32>
    %117 = vector.extract_strided_slice %103 {offsets = [0, 16], sizes = [2, 16], strides = [1, 1]} : vector<2x48xf32> to vector<2x16xf32>
    %118 = vector.extract_strided_slice %108 {offsets = [0, 16], sizes = [2, 16], strides = [1, 1]} : vector<2x48xf32> to vector<2x16xf32>
    %119 = arith.addf %117, %118 : vector<2x16xf32>
    %120 = arith.negf %119 : vector<2x16xf32>
    %121 = math.exp %120 : vector<2x16xf32>
    %cst_38 = arith.constant 1.000000e+00 : f32
    %122 = vector.broadcast %cst_38 : f32 to vector<2x16xf32>
    %123 = arith.addf %122, %121 : vector<2x16xf32>
    %124 = arith.divf %122, %123 : vector<2x16xf32>
    %125 = vector.extract_strided_slice %103 {offsets = [0, 32], sizes = [2, 16], strides = [1, 1]} : vector<2x48xf32> to vector<2x16xf32>
    %126 = vector.extract_strided_slice %108 {offsets = [0, 32], sizes = [2, 16], strides = [1, 1]} : vector<2x48xf32> to vector<2x16xf32>
    %127 = arith.mulf %116, %126 : vector<2x16xf32>
    %128 = arith.addf %125, %127 : vector<2x16xf32>
    %129 = math.tanh %128 : vector<2x16xf32>
    %cst_39 = arith.constant 1.000000e+00 : f32
    %130 = vector.broadcast %cst_39 : f32 to vector<2x16xf32>
    %131 = arith.subf %130, %124 : vector<2x16xf32>
    %132 = arith.mulf %131, %129 : vector<2x16xf32>
    %133 = arith.mulf %124, %96 : vector<2x16xf32>
    %134 = arith.addf %132, %133 : vector<2x16xf32>
    %cst_40 = arith.constant 0.000000e+00 : f32
    %135 = vector.shape_cast %105 : vector<2x1xi1> to vector<2x1xi1>
    %136 = vector.broadcast %135 : vector<2x1xi1> to vector<2x16xi1>
    %137 = vector.broadcast %cst_40 : f32 to vector<2x16xf32>
    %138 = arith.select %136, %134, %137 : vector<2x16xi1>, vector<2x16xf32>
    %139 = vector.extract_strided_slice %138 {offsets = [0, 0], sizes = [1, 16], strides = [1, 1]} : vector<2x16xf32> to vector<1x16xf32>
    %c2 = arith.constant 2 : index
    %c0_41 = arith.constant 0 : index
    %140 = vector.load %arg19[%c2, %c0_41] : memref<16x32xf32, #tpu.memory_space<vmem>>, vector<1x16xf32>
    tpu.vector_store %arg19[%c2, %c0_41], %139 {strides = array<i32>} : memref<16x32xf32, #tpu.memory_space<vmem>>, vector<1x16xf32>,
    %141 = vector.extract_strided_slice %138 {offsets = [1, 0], sizes = [1, 16], strides = [1, 1]} : vector<2x16xf32> to vector<1x16xf32>
    %c10 = arith.constant 10 : index
    %c0_42 = arith.constant 0 : index
    %142 = vector.load %arg19[%c10, %c0_42] : memref<16x32xf32, #tpu.memory_space<vmem>>, vector<1x16xf32>
    tpu.vector_store %arg19[%c10, %c0_42], %141 {strides = array<i32>} : memref<16x32xf32, #tpu.memory_space<vmem>>, vector<1x16xf32>,
    %143 = vector.extract_strided_slice %6 {offsets = [3, 0], sizes = [1, 48], strides = [1, 1]} : vector<16x48xf32> to vector<1x48xf32>
    %144 = vector.extract_strided_slice %6 {offsets = [11, 0], sizes = [1, 48], strides = [1, 1]} : vector<16x48xf32> to vector<1x48xf32>
    %145 = tpu.concatenate %143, %144 in 0 : vector<1x48xf32>, vector<1x48xf32> -> vector<2x48xf32>
    %c3_i32 = arith.constant 3 : i32
    %146 = vector.broadcast %c3_i32 : i32 to vector<2x1xi32>
    %147 = arith.cmpi sgt, %0, %146 : vector<2x1xi32>
    %cst_43 = arith.constant dense<0.000000e+00> : vector<2x48xf32>
    %148 = tpu.matmul %138, %12, %cst_43 {dimension_numbers = #tpu.dot_dimension_numbers<[1], [0], [0], [1], [0, 0, 1, 1], [], []>} : vector<2x16xf32>, vector<16x48xf32>, vector<2x48xf32> -> vector<2x48xf32>
    %149 = vector.broadcast %13 : vector<1x48xf32> to vector<2x48xf32>
    %150 = arith.addf %148, %149 : vector<2x48xf32>
    %151 = vector.extract_strided_slice %145 {offsets = [0, 0], sizes = [2, 16], strides = [1, 1]} : vector<2x48xf32> to vector<2x16xf32>
    %152 = vector.extract_strided_slice %150 {offsets = [0, 0], sizes = [2, 16], strides = [1, 1]} : vector<2x48xf32> to vector<2x16xf32>
    %153 = arith.addf %151, %152 : vector<2x16xf32>
    %154 = arith.negf %153 : vector<2x16xf32>
    %155 = math.exp %154 : vector<2x16xf32>
    %cst_44 = arith.constant 1.000000e+00 : f32
    %156 = vector.broadcast %cst_44 : f32 to vector<2x16xf32>
    %157 = arith.addf %156, %155 : vector<2x16xf32>
    %158 = arith.divf %156, %157 : vector<2x16xf32>
    %159 = vector.extract_strided_slice %145 {offsets = [0, 16], sizes = [2, 16], strides = [1, 1]} : vector<2x48xf32> to vector<2x16xf32>
    %160 = vector.extract_strided_slice %150 {offsets = [0, 16], sizes = [2, 16], strides = [1, 1]} : vector<2x48xf32> to vector<2x16xf32>
    %161 = arith.addf %159, %160 : vector<2x16xf32>
    %162 = arith.negf %161 : vector<2x16xf32>
    %163 = math.exp %162 : vector<2x16xf32>
    %cst_45 = arith.constant 1.000000e+00 : f32
    %164 = vector.broadcast %cst_45 : f32 to vector<2x16xf32>
    %165 = arith.addf %164, %163 : vector<2x16xf32>
    %166 = arith.divf %164, %165 : vector<2x16xf32>
    %167 = vector.extract_strided_slice %145 {offsets = [0, 32], sizes = [2, 16], strides = [1, 1]} : vector<2x48xf32> to vector<2x16xf32>
    %168 = vector.extract_strided_slice %150 {offsets = [0, 32], sizes = [2, 16], strides = [1, 1]} : vector<2x48xf32> to vector<2x16xf32>
    %169 = arith.mulf %158, %168 : vector<2x16xf32>
    %170 = arith.addf %167, %169 : vector<2x16xf32>
    %171 = math.tanh %170 : vector<2x16xf32>
    %cst_46 = arith.constant 1.000000e+00 : f32
    %172 = vector.broadcast %cst_46 : f32 to vector<2x16xf32>
    %173 = arith.subf %172, %166 : vector<2x16xf32>
    %174 = arith.mulf %173, %171 : vector<2x16xf32>
    %175 = arith.mulf %166, %138 : vector<2x16xf32>
    %176 = arith.addf %174, %175 : vector<2x16xf32>
    %cst_47 = arith.constant 0.000000e+00 : f32
    %177 = vector.shape_cast %147 : vector<2x1xi1> to vector<2x1xi1>
    %178 = vector.broadcast %177 : vector<2x1xi1> to vector<2x16xi1>
    %179 = vector.broadcast %cst_47 : f32 to vector<2x16xf32>
    %180 = arith.select %178, %176, %179 : vector<2x16xi1>, vector<2x16xf32>
    %181 = vector.extract_strided_slice %180 {offsets = [0, 0], sizes = [1, 16], strides = [1, 1]} : vector<2x16xf32> to vector<1x16xf32>
    %c3 = arith.constant 3 : index
    %c0_48 = arith.constant 0 : index
    %182 = vector.load %arg19[%c3, %c0_48] : memref<16x32xf32, #tpu.memory_space<vmem>>, vector<1x16xf32>
    tpu.vector_store %arg19[%c3, %c0_48], %181 {strides = array<i32>} : memref<16x32xf32, #tpu.memory_space<vmem>>, vector<1x16xf32>,
    %183 = vector.extract_strided_slice %180 {offsets = [1, 0], sizes = [1, 16], strides = [1, 1]} : vector<2x16xf32> to vector<1x16xf32>
    %c11 = arith.constant 11 : index
    %c0_49 = arith.constant 0 : index
    %184 = vector.load %arg19[%c11, %c0_49] : memref<16x32xf32, #tpu.memory_space<vmem>>, vector<1x16xf32>
    tpu.vector_store %arg19[%c11, %c0_49], %183 {strides = array<i32>} : memref<16x32xf32, #tpu.memory_space<vmem>>, vector<1x16xf32>,
    %185 = vector.extract_strided_slice %6 {offsets = [4, 0], sizes = [1, 48], strides = [1, 1]} : vector<16x48xf32> to vector<1x48xf32>
    %186 = vector.extract_strided_slice %6 {offsets = [12, 0], sizes = [1, 48], strides = [1, 1]} : vector<16x48xf32> to vector<1x48xf32>
    %187 = tpu.concatenate %185, %186 in 0 : vector<1x48xf32>, vector<1x48xf32> -> vector<2x48xf32>
    %c4_i32 = arith.constant 4 : i32
    %188 = vector.broadcast %c4_i32 : i32 to vector<2x1xi32>
    %189 = arith.cmpi sgt, %0, %188 : vector<2x1xi32>
    %cst_50 = arith.constant dense<0.000000e+00> : vector<2x48xf32>
    %190 = tpu.matmul %180, %12, %cst_50 {dimension_numbers = #tpu.dot_dimension_numbers<[1], [0], [0], [1], [0, 0, 1, 1], [], []>} : vector<2x16xf32>, vector<16x48xf32>, vector<2x48xf32> -> vector<2x48xf32>
    %191 = vector.broadcast %13 : vector<1x48xf32> to vector<2x48xf32>
    %192 = arith.addf %190, %191 : vector<2x48xf32>
    %193 = vector.extract_strided_slice %187 {offsets = [0, 0], sizes = [2, 16], strides = [1, 1]} : vector<2x48xf32> to vector<2x16xf32>
    %194 = vector.extract_strided_slice %192 {offsets = [0, 0], sizes = [2, 16], strides = [1, 1]} : vector<2x48xf32> to vector<2x16xf32>
    %195 = arith.addf %193, %194 : vector<2x16xf32>
    %196 = arith.negf %195 : vector<2x16xf32>
    %197 = math.exp %196 : vector<2x16xf32>
    %cst_51 = arith.constant 1.000000e+00 : f32
    %198 = vector.broadcast %cst_51 : f32 to vector<2x16xf32>
    %199 = arith.addf %198, %197 : vector<2x16xf32>
    %200 = arith.divf %198, %199 : vector<2x16xf32>
    %201 = vector.extract_strided_slice %187 {offsets = [0, 16], sizes = [2, 16], strides = [1, 1]} : vector<2x48xf32> to vector<2x16xf32>
    %202 = vector.extract_strided_slice %192 {offsets = [0, 16], sizes = [2, 16], strides = [1, 1]} : vector<2x48xf32> to vector<2x16xf32>
    %203 = arith.addf %201, %202 : vector<2x16xf32>
    %204 = arith.negf %203 : vector<2x16xf32>
    %205 = math.exp %204 : vector<2x16xf32>
    %cst_52 = arith.constant 1.000000e+00 : f32
    %206 = vector.broadcast %cst_52 : f32 to vector<2x16xf32>
    %207 = arith.addf %206, %205 : vector<2x16xf32>
    %208 = arith.divf %206, %207 : vector<2x16xf32>
    %209 = vector.extract_strided_slice %187 {offsets = [0, 32], sizes = [2, 16], strides = [1, 1]} : vector<2x48xf32> to vector<2x16xf32>
    %210 = vector.extract_strided_slice %192 {offsets = [0, 32], sizes = [2, 16], strides = [1, 1]} : vector<2x48xf32> to vector<2x16xf32>
    %211 = arith.mulf %200, %210 : vector<2x16xf32>
    %212 = arith.addf %209, %211 : vector<2x16xf32>
    %213 = math.tanh %212 : vector<2x16xf32>
    %cst_53 = arith.constant 1.000000e+00 : f32
    %214 = vector.broadcast %cst_53 : f32 to vector<2x16xf32>
    %215 = arith.subf %214, %208 : vector<2x16xf32>
    %216 = arith.mulf %215, %213 : vector<2x16xf32>
    %217 = arith.mulf %208, %180 : vector<2x16xf32>
    %218 = arith.addf %216, %217 : vector<2x16xf32>
    %cst_54 = arith.constant 0.000000e+00 : f32
    %219 = vector.shape_cast %189 : vector<2x1xi1> to vector<2x1xi1>
    %220 = vector.broadcast %219 : vector<2x1xi1> to vector<2x16xi1>
    %221 = vector.broadcast %cst_54 : f32 to vector<2x16xf32>
    %222 = arith.select %220, %218, %221 : vector<2x16xi1>, vector<2x16xf32>
    %223 = vector.extract_strided_slice %222 {offsets = [0, 0], sizes = [1, 16], strides = [1, 1]} : vector<2x16xf32> to vector<1x16xf32>
    %c4 = arith.constant 4 : index
    %c0_55 = arith.constant 0 : index
    %224 = vector.load %arg19[%c4, %c0_55] : memref<16x32xf32, #tpu.memory_space<vmem>>, vector<1x16xf32>
    tpu.vector_store %arg19[%c4, %c0_55], %223 {strides = array<i32>} : memref<16x32xf32, #tpu.memory_space<vmem>>, vector<1x16xf32>,
    %225 = vector.extract_strided_slice %222 {offsets = [1, 0], sizes = [1, 16], strides = [1, 1]} : vector<2x16xf32> to vector<1x16xf32>
    %c12 = arith.constant 12 : index
    %c0_56 = arith.constant 0 : index
    %226 = vector.load %arg19[%c12, %c0_56] : memref<16x32xf32, #tpu.memory_space<vmem>>, vector<1x16xf32>
    tpu.vector_store %arg19[%c12, %c0_56], %225 {strides = array<i32>} : memref<16x32xf32, #tpu.memory_space<vmem>>, vector<1x16xf32>,
    %227 = vector.extract_strided_slice %6 {offsets = [5, 0], sizes = [1, 48], strides = [1, 1]} : vector<16x48xf32> to vector<1x48xf32>
    %228 = vector.extract_strided_slice %6 {offsets = [13, 0], sizes = [1, 48], strides = [1, 1]} : vector<16x48xf32> to vector<1x48xf32>
    %229 = tpu.concatenate %227, %228 in 0 : vector<1x48xf32>, vector<1x48xf32> -> vector<2x48xf32>
    %c5_i32 = arith.constant 5 : i32
    %230 = vector.broadcast %c5_i32 : i32 to vector<2x1xi32>
    %231 = arith.cmpi sgt, %0, %230 : vector<2x1xi32>
    %cst_57 = arith.constant dense<0.000000e+00> : vector<2x48xf32>
    %232 = tpu.matmul %222, %12, %cst_57 {dimension_numbers = #tpu.dot_dimension_numbers<[1], [0], [0], [1], [0, 0, 1, 1], [], []>} : vector<2x16xf32>, vector<16x48xf32>, vector<2x48xf32> -> vector<2x48xf32>
    %233 = vector.broadcast %13 : vector<1x48xf32> to vector<2x48xf32>
    %234 = arith.addf %232, %233 : vector<2x48xf32>
    %235 = vector.extract_strided_slice %229 {offsets = [0, 0], sizes = [2, 16], strides = [1, 1]} : vector<2x48xf32> to vector<2x16xf32>
    %236 = vector.extract_strided_slice %234 {offsets = [0, 0], sizes = [2, 16], strides = [1, 1]} : vector<2x48xf32> to vector<2x16xf32>
    %237 = arith.addf %235, %236 : vector<2x16xf32>
    %238 = arith.negf %237 : vector<2x16xf32>
    %239 = math.exp %238 : vector<2x16xf32>
    %cst_58 = arith.constant 1.000000e+00 : f32
    %240 = vector.broadcast %cst_58 : f32 to vector<2x16xf32>
    %241 = arith.addf %240, %239 : vector<2x16xf32>
    %242 = arith.divf %240, %241 : vector<2x16xf32>
    %243 = vector.extract_strided_slice %229 {offsets = [0, 16], sizes = [2, 16], strides = [1, 1]} : vector<2x48xf32> to vector<2x16xf32>
    %244 = vector.extract_strided_slice %234 {offsets = [0, 16], sizes = [2, 16], strides = [1, 1]} : vector<2x48xf32> to vector<2x16xf32>
    %245 = arith.addf %243, %244 : vector<2x16xf32>
    %246 = arith.negf %245 : vector<2x16xf32>
    %247 = math.exp %246 : vector<2x16xf32>
    %cst_59 = arith.constant 1.000000e+00 : f32
    %248 = vector.broadcast %cst_59 : f32 to vector<2x16xf32>
    %249 = arith.addf %248, %247 : vector<2x16xf32>
    %250 = arith.divf %248, %249 : vector<2x16xf32>
    %251 = vector.extract_strided_slice %229 {offsets = [0, 32], sizes = [2, 16], strides = [1, 1]} : vector<2x48xf32> to vector<2x16xf32>
    %252 = vector.extract_strided_slice %234 {offsets = [0, 32], sizes = [2, 16], strides = [1, 1]} : vector<2x48xf32> to vector<2x16xf32>
    %253 = arith.mulf %242, %252 : vector<2x16xf32>
    %254 = arith.addf %251, %253 : vector<2x16xf32>
    %255 = math.tanh %254 : vector<2x16xf32>
    %cst_60 = arith.constant 1.000000e+00 : f32
    %256 = vector.broadcast %cst_60 : f32 to vector<2x16xf32>
    %257 = arith.subf %256, %250 : vector<2x16xf32>
    %258 = arith.mulf %257, %255 : vector<2x16xf32>
    %259 = arith.mulf %250, %222 : vector<2x16xf32>
    %260 = arith.addf %258, %259 : vector<2x16xf32>
    %cst_61 = arith.constant 0.000000e+00 : f32
    %261 = vector.shape_cast %231 : vector<2x1xi1> to vector<2x1xi1>
    %262 = vector.broadcast %261 : vector<2x1xi1> to vector<2x16xi1>
    %263 = vector.broadcast %cst_61 : f32 to vector<2x16xf32>
    %264 = arith.select %262, %260, %263 : vector<2x16xi1>, vector<2x16xf32>
    %265 = vector.extract_strided_slice %264 {offsets = [0, 0], sizes = [1, 16], strides = [1, 1]} : vector<2x16xf32> to vector<1x16xf32>
    %c5 = arith.constant 5 : index
    %c0_62 = arith.constant 0 : index
    %266 = vector.load %arg19[%c5, %c0_62] : memref<16x32xf32, #tpu.memory_space<vmem>>, vector<1x16xf32>
    tpu.vector_store %arg19[%c5, %c0_62], %265 {strides = array<i32>} : memref<16x32xf32, #tpu.memory_space<vmem>>, vector<1x16xf32>,
    %267 = vector.extract_strided_slice %264 {offsets = [1, 0], sizes = [1, 16], strides = [1, 1]} : vector<2x16xf32> to vector<1x16xf32>
    %c13 = arith.constant 13 : index
    %c0_63 = arith.constant 0 : index
    %268 = vector.load %arg19[%c13, %c0_63] : memref<16x32xf32, #tpu.memory_space<vmem>>, vector<1x16xf32>
    tpu.vector_store %arg19[%c13, %c0_63], %267 {strides = array<i32>} : memref<16x32xf32, #tpu.memory_space<vmem>>, vector<1x16xf32>,
    %269 = vector.extract_strided_slice %6 {offsets = [6, 0], sizes = [1, 48], strides = [1, 1]} : vector<16x48xf32> to vector<1x48xf32>
    %270 = vector.extract_strided_slice %6 {offsets = [14, 0], sizes = [1, 48], strides = [1, 1]} : vector<16x48xf32> to vector<1x48xf32>
    %271 = tpu.concatenate %269, %270 in 0 : vector<1x48xf32>, vector<1x48xf32> -> vector<2x48xf32>
    %c6_i32 = arith.constant 6 : i32
    %272 = vector.broadcast %c6_i32 : i32 to vector<2x1xi32>
    %273 = arith.cmpi sgt, %0, %272 : vector<2x1xi32>
    %cst_64 = arith.constant dense<0.000000e+00> : vector<2x48xf32>
    %274 = tpu.matmul %264, %12, %cst_64 {dimension_numbers = #tpu.dot_dimension_numbers<[1], [0], [0], [1], [0, 0, 1, 1], [], []>} : vector<2x16xf32>, vector<16x48xf32>, vector<2x48xf32> -> vector<2x48xf32>
    %275 = vector.broadcast %13 : vector<1x48xf32> to vector<2x48xf32>
    %276 = arith.addf %274, %275 : vector<2x48xf32>
    %277 = vector.extract_strided_slice %271 {offsets = [0, 0], sizes = [2, 16], strides = [1, 1]} : vector<2x48xf32> to vector<2x16xf32>
    %278 = vector.extract_strided_slice %276 {offsets = [0, 0], sizes = [2, 16], strides = [1, 1]} : vector<2x48xf32> to vector<2x16xf32>
    %279 = arith.addf %277, %278 : vector<2x16xf32>
    %280 = arith.negf %279 : vector<2x16xf32>
    %281 = math.exp %280 : vector<2x16xf32>
    %cst_65 = arith.constant 1.000000e+00 : f32
    %282 = vector.broadcast %cst_65 : f32 to vector<2x16xf32>
    %283 = arith.addf %282, %281 : vector<2x16xf32>
    %284 = arith.divf %282, %283 : vector<2x16xf32>
    %285 = vector.extract_strided_slice %271 {offsets = [0, 16], sizes = [2, 16], strides = [1, 1]} : vector<2x48xf32> to vector<2x16xf32>
    %286 = vector.extract_strided_slice %276 {offsets = [0, 16], sizes = [2, 16], strides = [1, 1]} : vector<2x48xf32> to vector<2x16xf32>
    %287 = arith.addf %285, %286 : vector<2x16xf32>
    %288 = arith.negf %287 : vector<2x16xf32>
    %289 = math.exp %288 : vector<2x16xf32>
    %cst_66 = arith.constant 1.000000e+00 : f32
    %290 = vector.broadcast %cst_66 : f32 to vector<2x16xf32>
    %291 = arith.addf %290, %289 : vector<2x16xf32>
    %292 = arith.divf %290, %291 : vector<2x16xf32>
    %293 = vector.extract_strided_slice %271 {offsets = [0, 32], sizes = [2, 16], strides = [1, 1]} : vector<2x48xf32> to vector<2x16xf32>
    %294 = vector.extract_strided_slice %276 {offsets = [0, 32], sizes = [2, 16], strides = [1, 1]} : vector<2x48xf32> to vector<2x16xf32>
    %295 = arith.mulf %284, %294 : vector<2x16xf32>
    %296 = arith.addf %293, %295 : vector<2x16xf32>
    %297 = math.tanh %296 : vector<2x16xf32>
    %cst_67 = arith.constant 1.000000e+00 : f32
    %298 = vector.broadcast %cst_67 : f32 to vector<2x16xf32>
    %299 = arith.subf %298, %292 : vector<2x16xf32>
    %300 = arith.mulf %299, %297 : vector<2x16xf32>
    %301 = arith.mulf %292, %264 : vector<2x16xf32>
    %302 = arith.addf %300, %301 : vector<2x16xf32>
    %cst_68 = arith.constant 0.000000e+00 : f32
    %303 = vector.shape_cast %273 : vector<2x1xi1> to vector<2x1xi1>
    %304 = vector.broadcast %303 : vector<2x1xi1> to vector<2x16xi1>
    %305 = vector.broadcast %cst_68 : f32 to vector<2x16xf32>
    %306 = arith.select %304, %302, %305 : vector<2x16xi1>, vector<2x16xf32>
    %307 = vector.extract_strided_slice %306 {offsets = [0, 0], sizes = [1, 16], strides = [1, 1]} : vector<2x16xf32> to vector<1x16xf32>
    %c6 = arith.constant 6 : index
    %c0_69 = arith.constant 0 : index
    %308 = vector.load %arg19[%c6, %c0_69] : memref<16x32xf32, #tpu.memory_space<vmem>>, vector<1x16xf32>
    tpu.vector_store %arg19[%c6, %c0_69], %307 {strides = array<i32>} : memref<16x32xf32, #tpu.memory_space<vmem>>, vector<1x16xf32>,
    %309 = vector.extract_strided_slice %306 {offsets = [1, 0], sizes = [1, 16], strides = [1, 1]} : vector<2x16xf32> to vector<1x16xf32>
    %c14 = arith.constant 14 : index
    %c0_70 = arith.constant 0 : index
    %310 = vector.load %arg19[%c14, %c0_70] : memref<16x32xf32, #tpu.memory_space<vmem>>, vector<1x16xf32>
    tpu.vector_store %arg19[%c14, %c0_70], %309 {strides = array<i32>} : memref<16x32xf32, #tpu.memory_space<vmem>>, vector<1x16xf32>,
    %311 = vector.extract_strided_slice %6 {offsets = [7, 0], sizes = [1, 48], strides = [1, 1]} : vector<16x48xf32> to vector<1x48xf32>
    %312 = vector.extract_strided_slice %6 {offsets = [15, 0], sizes = [1, 48], strides = [1, 1]} : vector<16x48xf32> to vector<1x48xf32>
    %313 = tpu.concatenate %311, %312 in 0 : vector<1x48xf32>, vector<1x48xf32> -> vector<2x48xf32>
    %c7_i32 = arith.constant 7 : i32
    %314 = vector.broadcast %c7_i32 : i32 to vector<2x1xi32>
    %315 = arith.cmpi sgt, %0, %314 : vector<2x1xi32>
    %cst_71 = arith.constant dense<0.000000e+00> : vector<2x48xf32>
    %316 = tpu.matmul %306, %12, %cst_71 {dimension_numbers = #tpu.dot_dimension_numbers<[1], [0], [0], [1], [0, 0, 1, 1], [], []>} : vector<2x16xf32>, vector<16x48xf32>, vector<2x48xf32> -> vector<2x48xf32>
    %317 = vector.broadcast %13 : vector<1x48xf32> to vector<2x48xf32>
    %318 = arith.addf %316, %317 : vector<2x48xf32>
    %319 = vector.extract_strided_slice %313 {offsets = [0, 0], sizes = [2, 16], strides = [1, 1]} : vector<2x48xf32> to vector<2x16xf32>
    %320 = vector.extract_strided_slice %318 {offsets = [0, 0], sizes = [2, 16], strides = [1, 1]} : vector<2x48xf32> to vector<2x16xf32>
    %321 = arith.addf %319, %320 : vector<2x16xf32>
    %322 = arith.negf %321 : vector<2x16xf32>
    %323 = math.exp %322 : vector<2x16xf32>
    %cst_72 = arith.constant 1.000000e+00 : f32
    %324 = vector.broadcast %cst_72 : f32 to vector<2x16xf32>
    %325 = arith.addf %324, %323 : vector<2x16xf32>
    %326 = arith.divf %324, %325 : vector<2x16xf32>
    %327 = vector.extract_strided_slice %313 {offsets = [0, 16], sizes = [2, 16], strides = [1, 1]} : vector<2x48xf32> to vector<2x16xf32>
    %328 = vector.extract_strided_slice %318 {offsets = [0, 16], sizes = [2, 16], strides = [1, 1]} : vector<2x48xf32> to vector<2x16xf32>
    %329 = arith.addf %327, %328 : vector<2x16xf32>
    %330 = arith.negf %329 : vector<2x16xf32>
    %331 = math.exp %330 : vector<2x16xf32>
    %cst_73 = arith.constant 1.000000e+00 : f32
    %332 = vector.broadcast %cst_73 : f32 to vector<2x16xf32>
    %333 = arith.addf %332, %331 : vector<2x16xf32>
    %334 = arith.divf %332, %333 : vector<2x16xf32>
    %335 = vector.extract_strided_slice %313 {offsets = [0, 32], sizes = [2, 16], strides = [1, 1]} : vector<2x48xf32> to vector<2x16xf32>
    %336 = vector.extract_strided_slice %318 {offsets = [0, 32], sizes = [2, 16], strides = [1, 1]} : vector<2x48xf32> to vector<2x16xf32>
    %337 = arith.mulf %326, %336 : vector<2x16xf32>
    %338 = arith.addf %335, %337 : vector<2x16xf32>
    %339 = math.tanh %338 : vector<2x16xf32>
    %cst_74 = arith.constant 1.000000e+00 : f32
    %340 = vector.broadcast %cst_74 : f32 to vector<2x16xf32>
    %341 = arith.subf %340, %334 : vector<2x16xf32>
    %342 = arith.mulf %341, %339 : vector<2x16xf32>
    %343 = arith.mulf %334, %306 : vector<2x16xf32>
    %344 = arith.addf %342, %343 : vector<2x16xf32>
    %cst_75 = arith.constant 0.000000e+00 : f32
    %345 = vector.shape_cast %315 : vector<2x1xi1> to vector<2x1xi1>
    %346 = vector.broadcast %345 : vector<2x1xi1> to vector<2x16xi1>
    %347 = vector.broadcast %cst_75 : f32 to vector<2x16xf32>
    %348 = arith.select %346, %344, %347 : vector<2x16xi1>, vector<2x16xf32>
    %349 = vector.extract_strided_slice %348 {offsets = [0, 0], sizes = [1, 16], strides = [1, 1]} : vector<2x16xf32> to vector<1x16xf32>
    %c7 = arith.constant 7 : index
    %c0_76 = arith.constant 0 : index
    %350 = vector.load %arg19[%c7, %c0_76] : memref<16x32xf32, #tpu.memory_space<vmem>>, vector<1x16xf32>
    tpu.vector_store %arg19[%c7, %c0_76], %349 {strides = array<i32>} : memref<16x32xf32, #tpu.memory_space<vmem>>, vector<1x16xf32>,
    %351 = vector.extract_strided_slice %348 {offsets = [1, 0], sizes = [1, 16], strides = [1, 1]} : vector<2x16xf32> to vector<1x16xf32>
    %c15 = arith.constant 15 : index
    %c0_77 = arith.constant 0 : index
    %352 = vector.load %arg19[%c15, %c0_77] : memref<16x32xf32, #tpu.memory_space<vmem>>, vector<1x16xf32>
    tpu.vector_store %arg19[%c15, %c0_77], %351 {strides = array<i32>} : memref<16x32xf32, #tpu.memory_space<vmem>>, vector<1x16xf32>,
    %cst_78 = arith.constant 0.000000e+00 : f32
    %353 = vector.broadcast %cst_78 : f32 to vector<2x16xf32>
    %354 = vector.extract_strided_slice %11 {offsets = [7, 0], sizes = [1, 48], strides = [1, 1]} : vector<16x48xf32> to vector<1x48xf32>
    %355 = vector.extract_strided_slice %11 {offsets = [15, 0], sizes = [1, 48], strides = [1, 1]} : vector<16x48xf32> to vector<1x48xf32>
    %356 = tpu.concatenate %354, %355 in 0 : vector<1x48xf32>, vector<1x48xf32> -> vector<2x48xf32>
    %c7_i32_79 = arith.constant 7 : i32
    %357 = vector.broadcast %c7_i32_79 : i32 to vector<2x1xi32>
    %358 = arith.cmpi sgt, %0, %357 : vector<2x1xi32>
    %cst_80 = arith.constant dense<0.000000e+00> : vector<2x48xf32>
    %359 = tpu.matmul %353, %14, %cst_80 {dimension_numbers = #tpu.dot_dimension_numbers<[1], [0], [0], [1], [0, 0, 1, 1], [], []>} : vector<2x16xf32>, vector<16x48xf32>, vector<2x48xf32> -> vector<2x48xf32>
    %360 = vector.broadcast %15 : vector<1x48xf32> to vector<2x48xf32>
    %361 = arith.addf %359, %360 : vector<2x48xf32>
    %362 = vector.extract_strided_slice %356 {offsets = [0, 0], sizes = [2, 16], strides = [1, 1]} : vector<2x48xf32> to vector<2x16xf32>
    %363 = vector.extract_strided_slice %361 {offsets = [0, 0], sizes = [2, 16], strides = [1, 1]} : vector<2x48xf32> to vector<2x16xf32>
    %364 = arith.addf %362, %363 : vector<2x16xf32>
    %365 = arith.negf %364 : vector<2x16xf32>
    %366 = math.exp %365 : vector<2x16xf32>
    %cst_81 = arith.constant 1.000000e+00 : f32
    %367 = vector.broadcast %cst_81 : f32 to vector<2x16xf32>
    %368 = arith.addf %367, %366 : vector<2x16xf32>
    %369 = arith.divf %367, %368 : vector<2x16xf32>
    %370 = vector.extract_strided_slice %356 {offsets = [0, 16], sizes = [2, 16], strides = [1, 1]} : vector<2x48xf32> to vector<2x16xf32>
    %371 = vector.extract_strided_slice %361 {offsets = [0, 16], sizes = [2, 16], strides = [1, 1]} : vector<2x48xf32> to vector<2x16xf32>
    %372 = arith.addf %370, %371 : vector<2x16xf32>
    %373 = arith.negf %372 : vector<2x16xf32>
    %374 = math.exp %373 : vector<2x16xf32>
    %cst_82 = arith.constant 1.000000e+00 : f32
    %375 = vector.broadcast %cst_82 : f32 to vector<2x16xf32>
    %376 = arith.addf %375, %374 : vector<2x16xf32>
    %377 = arith.divf %375, %376 : vector<2x16xf32>
    %378 = vector.extract_strided_slice %356 {offsets = [0, 32], sizes = [2, 16], strides = [1, 1]} : vector<2x48xf32> to vector<2x16xf32>
    %379 = vector.extract_strided_slice %361 {offsets = [0, 32], sizes = [2, 16], strides = [1, 1]} : vector<2x48xf32> to vector<2x16xf32>
    %380 = arith.mulf %369, %379 : vector<2x16xf32>
    %381 = arith.addf %378, %380 : vector<2x16xf32>
    %382 = math.tanh %381 : vector<2x16xf32>
    %cst_83 = arith.constant 1.000000e+00 : f32
    %383 = vector.broadcast %cst_83 : f32 to vector<2x16xf32>
    %384 = arith.subf %383, %377 : vector<2x16xf32>
    %385 = arith.mulf %384, %382 : vector<2x16xf32>
    %386 = arith.mulf %377, %353 : vector<2x16xf32>
    %387 = arith.addf %385, %386 : vector<2x16xf32>
    %cst_84 = arith.constant 0.000000e+00 : f32
    %388 = vector.shape_cast %358 : vector<2x1xi1> to vector<2x1xi1>
    %389 = vector.broadcast %388 : vector<2x1xi1> to vector<2x16xi1>
    %390 = vector.broadcast %cst_84 : f32 to vector<2x16xf32>
    %391 = arith.select %389, %387, %390 : vector<2x16xi1>, vector<2x16xf32>
    %392 = vector.extract_strided_slice %391 {offsets = [0, 0], sizes = [1, 16], strides = [1, 1]} : vector<2x16xf32> to vector<1x16xf32>
    %c7_85 = arith.constant 7 : index
    %c16 = arith.constant 16 : index
    %393 = vector.load %arg19[%c7_85, %c16] : memref<16x32xf32, #tpu.memory_space<vmem>>, vector<1x16xf32>
    tpu.vector_store %arg19[%c7_85, %c16], %392 {strides = array<i32>} : memref<16x32xf32, #tpu.memory_space<vmem>>, vector<1x16xf32>,
    %394 = vector.extract_strided_slice %391 {offsets = [1, 0], sizes = [1, 16], strides = [1, 1]} : vector<2x16xf32> to vector<1x16xf32>
    %c15_86 = arith.constant 15 : index
    %c16_87 = arith.constant 16 : index
    %395 = vector.load %arg19[%c15_86, %c16_87] : memref<16x32xf32, #tpu.memory_space<vmem>>, vector<1x16xf32>
    tpu.vector_store %arg19[%c15_86, %c16_87], %394 {strides = array<i32>} : memref<16x32xf32, #tpu.memory_space<vmem>>, vector<1x16xf32>,
    %396 = vector.extract_strided_slice %11 {offsets = [6, 0], sizes = [1, 48], strides = [1, 1]} : vector<16x48xf32> to vector<1x48xf32>
    %397 = vector.extract_strided_slice %11 {offsets = [14, 0], sizes = [1, 48], strides = [1, 1]} : vector<16x48xf32> to vector<1x48xf32>
    %398 = tpu.concatenate %396, %397 in 0 : vector<1x48xf32>, vector<1x48xf32> -> vector<2x48xf32>
    %c6_i32_88 = arith.constant 6 : i32
    %399 = vector.broadcast %c6_i32_88 : i32 to vector<2x1xi32>
    %400 = arith.cmpi sgt, %0, %399 : vector<2x1xi32>
    %cst_89 = arith.constant dense<0.000000e+00> : vector<2x48xf32>
    %401 = tpu.matmul %391, %14, %cst_89 {dimension_numbers = #tpu.dot_dimension_numbers<[1], [0], [0], [1], [0, 0, 1, 1], [], []>} : vector<2x16xf32>, vector<16x48xf32>, vector<2x48xf32> -> vector<2x48xf32>
    %402 = vector.broadcast %15 : vector<1x48xf32> to vector<2x48xf32>
    %403 = arith.addf %401, %402 : vector<2x48xf32>
    %404 = vector.extract_strided_slice %398 {offsets = [0, 0], sizes = [2, 16], strides = [1, 1]} : vector<2x48xf32> to vector<2x16xf32>
    %405 = vector.extract_strided_slice %403 {offsets = [0, 0], sizes = [2, 16], strides = [1, 1]} : vector<2x48xf32> to vector<2x16xf32>
    %406 = arith.addf %404, %405 : vector<2x16xf32>
    %407 = arith.negf %406 : vector<2x16xf32>
    %408 = math.exp %407 : vector<2x16xf32>
    %cst_90 = arith.constant 1.000000e+00 : f32
    %409 = vector.broadcast %cst_90 : f32 to vector<2x16xf32>
    %410 = arith.addf %409, %408 : vector<2x16xf32>
    %411 = arith.divf %409, %410 : vector<2x16xf32>
    %412 = vector.extract_strided_slice %398 {offsets = [0, 16], sizes = [2, 16], strides = [1, 1]} : vector<2x48xf32> to vector<2x16xf32>
    %413 = vector.extract_strided_slice %403 {offsets = [0, 16], sizes = [2, 16], strides = [1, 1]} : vector<2x48xf32> to vector<2x16xf32>
    %414 = arith.addf %412, %413 : vector<2x16xf32>
    %415 = arith.negf %414 : vector<2x16xf32>
    %416 = math.exp %415 : vector<2x16xf32>
    %cst_91 = arith.constant 1.000000e+00 : f32
    %417 = vector.broadcast %cst_91 : f32 to vector<2x16xf32>
    %418 = arith.addf %417, %416 : vector<2x16xf32>
    %419 = arith.divf %417, %418 : vector<2x16xf32>
    %420 = vector.extract_strided_slice %398 {offsets = [0, 32], sizes = [2, 16], strides = [1, 1]} : vector<2x48xf32> to vector<2x16xf32>
    %421 = vector.extract_strided_slice %403 {offsets = [0, 32], sizes = [2, 16], strides = [1, 1]} : vector<2x48xf32> to vector<2x16xf32>
    %422 = arith.mulf %411, %421 : vector<2x16xf32>
    %423 = arith.addf %420, %422 : vector<2x16xf32>
    %424 = math.tanh %423 : vector<2x16xf32>
    %cst_92 = arith.constant 1.000000e+00 : f32
    %425 = vector.broadcast %cst_92 : f32 to vector<2x16xf32>
    %426 = arith.subf %425, %419 : vector<2x16xf32>
    %427 = arith.mulf %426, %424 : vector<2x16xf32>
    %428 = arith.mulf %419, %391 : vector<2x16xf32>
    %429 = arith.addf %427, %428 : vector<2x16xf32>
    %cst_93 = arith.constant 0.000000e+00 : f32
    %430 = vector.shape_cast %400 : vector<2x1xi1> to vector<2x1xi1>
    %431 = vector.broadcast %430 : vector<2x1xi1> to vector<2x16xi1>
    %432 = vector.broadcast %cst_93 : f32 to vector<2x16xf32>
    %433 = arith.select %431, %429, %432 : vector<2x16xi1>, vector<2x16xf32>
    %434 = vector.extract_strided_slice %433 {offsets = [0, 0], sizes = [1, 16], strides = [1, 1]} : vector<2x16xf32> to vector<1x16xf32>
    %c6_94 = arith.constant 6 : index
    %c16_95 = arith.constant 16 : index
    %435 = vector.load %arg19[%c6_94, %c16_95] : memref<16x32xf32, #tpu.memory_space<vmem>>, vector<1x16xf32>
    tpu.vector_store %arg19[%c6_94, %c16_95], %434 {strides = array<i32>} : memref<16x32xf32, #tpu.memory_space<vmem>>, vector<1x16xf32>,
    %436 = vector.extract_strided_slice %433 {offsets = [1, 0], sizes = [1, 16], strides = [1, 1]} : vector<2x16xf32> to vector<1x16xf32>
    %c14_96 = arith.constant 14 : index
    %c16_97 = arith.constant 16 : index
    %437 = vector.load %arg19[%c14_96, %c16_97] : memref<16x32xf32, #tpu.memory_space<vmem>>, vector<1x16xf32>
    tpu.vector_store %arg19[%c14_96, %c16_97], %436 {strides = array<i32>} : memref<16x32xf32, #tpu.memory_space<vmem>>, vector<1x16xf32>,
    %438 = vector.extract_strided_slice %11 {offsets = [5, 0], sizes = [1, 48], strides = [1, 1]} : vector<16x48xf32> to vector<1x48xf32>
    %439 = vector.extract_strided_slice %11 {offsets = [13, 0], sizes = [1, 48], strides = [1, 1]} : vector<16x48xf32> to vector<1x48xf32>
    %440 = tpu.concatenate %438, %439 in 0 : vector<1x48xf32>, vector<1x48xf32> -> vector<2x48xf32>
    %c5_i32_98 = arith.constant 5 : i32
    %441 = vector.broadcast %c5_i32_98 : i32 to vector<2x1xi32>
    %442 = arith.cmpi sgt, %0, %441 : vector<2x1xi32>
    %cst_99 = arith.constant dense<0.000000e+00> : vector<2x48xf32>
    %443 = tpu.matmul %433, %14, %cst_99 {dimension_numbers = #tpu.dot_dimension_numbers<[1], [0], [0], [1], [0, 0, 1, 1], [], []>} : vector<2x16xf32>, vector<16x48xf32>, vector<2x48xf32> -> vector<2x48xf32>
    %444 = vector.broadcast %15 : vector<1x48xf32> to vector<2x48xf32>
    %445 = arith.addf %443, %444 : vector<2x48xf32>
    %446 = vector.extract_strided_slice %440 {offsets = [0, 0], sizes = [2, 16], strides = [1, 1]} : vector<2x48xf32> to vector<2x16xf32>
    %447 = vector.extract_strided_slice %445 {offsets = [0, 0], sizes = [2, 16], strides = [1, 1]} : vector<2x48xf32> to vector<2x16xf32>
    %448 = arith.addf %446, %447 : vector<2x16xf32>
    %449 = arith.negf %448 : vector<2x16xf32>
    %450 = math.exp %449 : vector<2x16xf32>
    %cst_100 = arith.constant 1.000000e+00 : f32
    %451 = vector.broadcast %cst_100 : f32 to vector<2x16xf32>
    %452 = arith.addf %451, %450 : vector<2x16xf32>
    %453 = arith.divf %451, %452 : vector<2x16xf32>
    %454 = vector.extract_strided_slice %440 {offsets = [0, 16], sizes = [2, 16], strides = [1, 1]} : vector<2x48xf32> to vector<2x16xf32>
    %455 = vector.extract_strided_slice %445 {offsets = [0, 16], sizes = [2, 16], strides = [1, 1]} : vector<2x48xf32> to vector<2x16xf32>
    %456 = arith.addf %454, %455 : vector<2x16xf32>
    %457 = arith.negf %456 : vector<2x16xf32>
    %458 = math.exp %457 : vector<2x16xf32>
    %cst_101 = arith.constant 1.000000e+00 : f32
    %459 = vector.broadcast %cst_101 : f32 to vector<2x16xf32>
    %460 = arith.addf %459, %458 : vector<2x16xf32>
    %461 = arith.divf %459, %460 : vector<2x16xf32>
    %462 = vector.extract_strided_slice %440 {offsets = [0, 32], sizes = [2, 16], strides = [1, 1]} : vector<2x48xf32> to vector<2x16xf32>
    %463 = vector.extract_strided_slice %445 {offsets = [0, 32], sizes = [2, 16], strides = [1, 1]} : vector<2x48xf32> to vector<2x16xf32>
    %464 = arith.mulf %453, %463 : vector<2x16xf32>
    %465 = arith.addf %462, %464 : vector<2x16xf32>
    %466 = math.tanh %465 : vector<2x16xf32>
    %cst_102 = arith.constant 1.000000e+00 : f32
    %467 = vector.broadcast %cst_102 : f32 to vector<2x16xf32>
    %468 = arith.subf %467, %461 : vector<2x16xf32>
    %469 = arith.mulf %468, %466 : vector<2x16xf32>
    %470 = arith.mulf %461, %433 : vector<2x16xf32>
    %471 = arith.addf %469, %470 : vector<2x16xf32>
    %cst_103 = arith.constant 0.000000e+00 : f32
    %472 = vector.shape_cast %442 : vector<2x1xi1> to vector<2x1xi1>
    %473 = vector.broadcast %472 : vector<2x1xi1> to vector<2x16xi1>
    %474 = vector.broadcast %cst_103 : f32 to vector<2x16xf32>
    %475 = arith.select %473, %471, %474 : vector<2x16xi1>, vector<2x16xf32>
    %476 = vector.extract_strided_slice %475 {offsets = [0, 0], sizes = [1, 16], strides = [1, 1]} : vector<2x16xf32> to vector<1x16xf32>
    %c5_104 = arith.constant 5 : index
    %c16_105 = arith.constant 16 : index
    %477 = vector.load %arg19[%c5_104, %c16_105] : memref<16x32xf32, #tpu.memory_space<vmem>>, vector<1x16xf32>
    tpu.vector_store %arg19[%c5_104, %c16_105], %476 {strides = array<i32>} : memref<16x32xf32, #tpu.memory_space<vmem>>, vector<1x16xf32>,
    %478 = vector.extract_strided_slice %475 {offsets = [1, 0], sizes = [1, 16], strides = [1, 1]} : vector<2x16xf32> to vector<1x16xf32>
    %c13_106 = arith.constant 13 : index
    %c16_107 = arith.constant 16 : index
    %479 = vector.load %arg19[%c13_106, %c16_107] : memref<16x32xf32, #tpu.memory_space<vmem>>, vector<1x16xf32>
    tpu.vector_store %arg19[%c13_106, %c16_107], %478 {strides = array<i32>} : memref<16x32xf32, #tpu.memory_space<vmem>>, vector<1x16xf32>,
    %480 = vector.extract_strided_slice %11 {offsets = [4, 0], sizes = [1, 48], strides = [1, 1]} : vector<16x48xf32> to vector<1x48xf32>
    %481 = vector.extract_strided_slice %11 {offsets = [12, 0], sizes = [1, 48], strides = [1, 1]} : vector<16x48xf32> to vector<1x48xf32>
    %482 = tpu.concatenate %480, %481 in 0 : vector<1x48xf32>, vector<1x48xf32> -> vector<2x48xf32>
    %c4_i32_108 = arith.constant 4 : i32
    %483 = vector.broadcast %c4_i32_108 : i32 to vector<2x1xi32>
    %484 = arith.cmpi sgt, %0, %483 : vector<2x1xi32>
    %cst_109 = arith.constant dense<0.000000e+00> : vector<2x48xf32>
    %485 = tpu.matmul %475, %14, %cst_109 {dimension_numbers = #tpu.dot_dimension_numbers<[1], [0], [0], [1], [0, 0, 1, 1], [], []>} : vector<2x16xf32>, vector<16x48xf32>, vector<2x48xf32> -> vector<2x48xf32>
    %486 = vector.broadcast %15 : vector<1x48xf32> to vector<2x48xf32>
    %487 = arith.addf %485, %486 : vector<2x48xf32>
    %488 = vector.extract_strided_slice %482 {offsets = [0, 0], sizes = [2, 16], strides = [1, 1]} : vector<2x48xf32> to vector<2x16xf32>
    %489 = vector.extract_strided_slice %487 {offsets = [0, 0], sizes = [2, 16], strides = [1, 1]} : vector<2x48xf32> to vector<2x16xf32>
    %490 = arith.addf %488, %489 : vector<2x16xf32>
    %491 = arith.negf %490 : vector<2x16xf32>
    %492 = math.exp %491 : vector<2x16xf32>
    %cst_110 = arith.constant 1.000000e+00 : f32
    %493 = vector.broadcast %cst_110 : f32 to vector<2x16xf32>
    %494 = arith.addf %493, %492 : vector<2x16xf32>
    %495 = arith.divf %493, %494 : vector<2x16xf32>
    %496 = vector.extract_strided_slice %482 {offsets = [0, 16], sizes = [2, 16], strides = [1, 1]} : vector<2x48xf32> to vector<2x16xf32>
    %497 = vector.extract_strided_slice %487 {offsets = [0, 16], sizes = [2, 16], strides = [1, 1]} : vector<2x48xf32> to vector<2x16xf32>
    %498 = arith.addf %496, %497 : vector<2x16xf32>
    %499 = arith.negf %498 : vector<2x16xf32>
    %500 = math.exp %499 : vector<2x16xf32>
    %cst_111 = arith.constant 1.000000e+00 : f32
    %501 = vector.broadcast %cst_111 : f32 to vector<2x16xf32>
    %502 = arith.addf %501, %500 : vector<2x16xf32>
    %503 = arith.divf %501, %502 : vector<2x16xf32>
    %504 = vector.extract_strided_slice %482 {offsets = [0, 32], sizes = [2, 16], strides = [1, 1]} : vector<2x48xf32> to vector<2x16xf32>
    %505 = vector.extract_strided_slice %487 {offsets = [0, 32], sizes = [2, 16], strides = [1, 1]} : vector<2x48xf32> to vector<2x16xf32>
    %506 = arith.mulf %495, %505 : vector<2x16xf32>
    %507 = arith.addf %504, %506 : vector<2x16xf32>
    %508 = math.tanh %507 : vector<2x16xf32>
    %cst_112 = arith.constant 1.000000e+00 : f32
    %509 = vector.broadcast %cst_112 : f32 to vector<2x16xf32>
    %510 = arith.subf %509, %503 : vector<2x16xf32>
    %511 = arith.mulf %510, %508 : vector<2x16xf32>
    %512 = arith.mulf %503, %475 : vector<2x16xf32>
    %513 = arith.addf %511, %512 : vector<2x16xf32>
    %cst_113 = arith.constant 0.000000e+00 : f32
    %514 = vector.shape_cast %484 : vector<2x1xi1> to vector<2x1xi1>
    %515 = vector.broadcast %514 : vector<2x1xi1> to vector<2x16xi1>
    %516 = vector.broadcast %cst_113 : f32 to vector<2x16xf32>
    %517 = arith.select %515, %513, %516 : vector<2x16xi1>, vector<2x16xf32>
    %518 = vector.extract_strided_slice %517 {offsets = [0, 0], sizes = [1, 16], strides = [1, 1]} : vector<2x16xf32> to vector<1x16xf32>
    %c4_114 = arith.constant 4 : index
    %c16_115 = arith.constant 16 : index
    %519 = vector.load %arg19[%c4_114, %c16_115] : memref<16x32xf32, #tpu.memory_space<vmem>>, vector<1x16xf32>
    tpu.vector_store %arg19[%c4_114, %c16_115], %518 {strides = array<i32>} : memref<16x32xf32, #tpu.memory_space<vmem>>, vector<1x16xf32>,
    %520 = vector.extract_strided_slice %517 {offsets = [1, 0], sizes = [1, 16], strides = [1, 1]} : vector<2x16xf32> to vector<1x16xf32>
    %c12_116 = arith.constant 12 : index
    %c16_117 = arith.constant 16 : index
    %521 = vector.load %arg19[%c12_116, %c16_117] : memref<16x32xf32, #tpu.memory_space<vmem>>, vector<1x16xf32>
    tpu.vector_store %arg19[%c12_116, %c16_117], %520 {strides = array<i32>} : memref<16x32xf32, #tpu.memory_space<vmem>>, vector<1x16xf32>,
    %522 = vector.extract_strided_slice %11 {offsets = [3, 0], sizes = [1, 48], strides = [1, 1]} : vector<16x48xf32> to vector<1x48xf32>
    %523 = vector.extract_strided_slice %11 {offsets = [11, 0], sizes = [1, 48], strides = [1, 1]} : vector<16x48xf32> to vector<1x48xf32>
    %524 = tpu.concatenate %522, %523 in 0 : vector<1x48xf32>, vector<1x48xf32> -> vector<2x48xf32>
    %c3_i32_118 = arith.constant 3 : i32
    %525 = vector.broadcast %c3_i32_118 : i32 to vector<2x1xi32>
    %526 = arith.cmpi sgt, %0, %525 : vector<2x1xi32>
    %cst_119 = arith.constant dense<0.000000e+00> : vector<2x48xf32>
    %527 = tpu.matmul %517, %14, %cst_119 {dimension_numbers = #tpu.dot_dimension_numbers<[1], [0], [0], [1], [0, 0, 1, 1], [], []>} : vector<2x16xf32>, vector<16x48xf32>, vector<2x48xf32> -> vector<2x48xf32>
    %528 = vector.broadcast %15 : vector<1x48xf32> to vector<2x48xf32>
    %529 = arith.addf %527, %528 : vector<2x48xf32>
    %530 = vector.extract_strided_slice %524 {offsets = [0, 0], sizes = [2, 16], strides = [1, 1]} : vector<2x48xf32> to vector<2x16xf32>
    %531 = vector.extract_strided_slice %529 {offsets = [0, 0], sizes = [2, 16], strides = [1, 1]} : vector<2x48xf32> to vector<2x16xf32>
    %532 = arith.addf %530, %531 : vector<2x16xf32>
    %533 = arith.negf %532 : vector<2x16xf32>
    %534 = math.exp %533 : vector<2x16xf32>
    %cst_120 = arith.constant 1.000000e+00 : f32
    %535 = vector.broadcast %cst_120 : f32 to vector<2x16xf32>
    %536 = arith.addf %535, %534 : vector<2x16xf32>
    %537 = arith.divf %535, %536 : vector<2x16xf32>
    %538 = vector.extract_strided_slice %524 {offsets = [0, 16], sizes = [2, 16], strides = [1, 1]} : vector<2x48xf32> to vector<2x16xf32>
    %539 = vector.extract_strided_slice %529 {offsets = [0, 16], sizes = [2, 16], strides = [1, 1]} : vector<2x48xf32> to vector<2x16xf32>
    %540 = arith.addf %538, %539 : vector<2x16xf32>
    %541 = arith.negf %540 : vector<2x16xf32>
    %542 = math.exp %541 : vector<2x16xf32>
    %cst_121 = arith.constant 1.000000e+00 : f32
    %543 = vector.broadcast %cst_121 : f32 to vector<2x16xf32>
    %544 = arith.addf %543, %542 : vector<2x16xf32>
    %545 = arith.divf %543, %544 : vector<2x16xf32>
    %546 = vector.extract_strided_slice %524 {offsets = [0, 32], sizes = [2, 16], strides = [1, 1]} : vector<2x48xf32> to vector<2x16xf32>
    %547 = vector.extract_strided_slice %529 {offsets = [0, 32], sizes = [2, 16], strides = [1, 1]} : vector<2x48xf32> to vector<2x16xf32>
    %548 = arith.mulf %537, %547 : vector<2x16xf32>
    %549 = arith.addf %546, %548 : vector<2x16xf32>
    %550 = math.tanh %549 : vector<2x16xf32>
    %cst_122 = arith.constant 1.000000e+00 : f32
    %551 = vector.broadcast %cst_122 : f32 to vector<2x16xf32>
    %552 = arith.subf %551, %545 : vector<2x16xf32>
    %553 = arith.mulf %552, %550 : vector<2x16xf32>
    %554 = arith.mulf %545, %517 : vector<2x16xf32>
    %555 = arith.addf %553, %554 : vector<2x16xf32>
    %cst_123 = arith.constant 0.000000e+00 : f32
    %556 = vector.shape_cast %526 : vector<2x1xi1> to vector<2x1xi1>
    %557 = vector.broadcast %556 : vector<2x1xi1> to vector<2x16xi1>
    %558 = vector.broadcast %cst_123 : f32 to vector<2x16xf32>
    %559 = arith.select %557, %555, %558 : vector<2x16xi1>, vector<2x16xf32>
    %560 = vector.extract_strided_slice %559 {offsets = [0, 0], sizes = [1, 16], strides = [1, 1]} : vector<2x16xf32> to vector<1x16xf32>
    %c3_124 = arith.constant 3 : index
    %c16_125 = arith.constant 16 : index
    %561 = vector.load %arg19[%c3_124, %c16_125] : memref<16x32xf32, #tpu.memory_space<vmem>>, vector<1x16xf32>
    tpu.vector_store %arg19[%c3_124, %c16_125], %560 {strides = array<i32>} : memref<16x32xf32, #tpu.memory_space<vmem>>, vector<1x16xf32>,
    %562 = vector.extract_strided_slice %559 {offsets = [1, 0], sizes = [1, 16], strides = [1, 1]} : vector<2x16xf32> to vector<1x16xf32>
    %c11_126 = arith.constant 11 : index
    %c16_127 = arith.constant 16 : index
    %563 = vector.load %arg19[%c11_126, %c16_127] : memref<16x32xf32, #tpu.memory_space<vmem>>, vector<1x16xf32>
    tpu.vector_store %arg19[%c11_126, %c16_127], %562 {strides = array<i32>} : memref<16x32xf32, #tpu.memory_space<vmem>>, vector<1x16xf32>,
    %564 = vector.extract_strided_slice %11 {offsets = [2, 0], sizes = [1, 48], strides = [1, 1]} : vector<16x48xf32> to vector<1x48xf32>
    %565 = vector.extract_strided_slice %11 {offsets = [10, 0], sizes = [1, 48], strides = [1, 1]} : vector<16x48xf32> to vector<1x48xf32>
    %566 = tpu.concatenate %564, %565 in 0 : vector<1x48xf32>, vector<1x48xf32> -> vector<2x48xf32>
    %c2_i32_128 = arith.constant 2 : i32
    %567 = vector.broadcast %c2_i32_128 : i32 to vector<2x1xi32>
    %568 = arith.cmpi sgt, %0, %567 : vector<2x1xi32>
    %cst_129 = arith.constant dense<0.000000e+00> : vector<2x48xf32>
    %569 = tpu.matmul %559, %14, %cst_129 {dimension_numbers = #tpu.dot_dimension_numbers<[1], [0], [0], [1], [0, 0, 1, 1], [], []>} : vector<2x16xf32>, vector<16x48xf32>, vector<2x48xf32> -> vector<2x48xf32>
    %570 = vector.broadcast %15 : vector<1x48xf32> to vector<2x48xf32>
    %571 = arith.addf %569, %570 : vector<2x48xf32>
    %572 = vector.extract_strided_slice %566 {offsets = [0, 0], sizes = [2, 16], strides = [1, 1]} : vector<2x48xf32> to vector<2x16xf32>
    %573 = vector.extract_strided_slice %571 {offsets = [0, 0], sizes = [2, 16], strides = [1, 1]} : vector<2x48xf32> to vector<2x16xf32>
    %574 = arith.addf %572, %573 : vector<2x16xf32>
    %575 = arith.negf %574 : vector<2x16xf32>
    %576 = math.exp %575 : vector<2x16xf32>
    %cst_130 = arith.constant 1.000000e+00 : f32
    %577 = vector.broadcast %cst_130 : f32 to vector<2x16xf32>
    %578 = arith.addf %577, %576 : vector<2x16xf32>
    %579 = arith.divf %577, %578 : vector<2x16xf32>
    %580 = vector.extract_strided_slice %566 {offsets = [0, 16], sizes = [2, 16], strides = [1, 1]} : vector<2x48xf32> to vector<2x16xf32>
    %581 = vector.extract_strided_slice %571 {offsets = [0, 16], sizes = [2, 16], strides = [1, 1]} : vector<2x48xf32> to vector<2x16xf32>
    %582 = arith.addf %580, %581 : vector<2x16xf32>
    %583 = arith.negf %582 : vector<2x16xf32>
    %584 = math.exp %583 : vector<2x16xf32>
    %cst_131 = arith.constant 1.000000e+00 : f32
    %585 = vector.broadcast %cst_131 : f32 to vector<2x16xf32>
    %586 = arith.addf %585, %584 : vector<2x16xf32>
    %587 = arith.divf %585, %586 : vector<2x16xf32>
    %588 = vector.extract_strided_slice %566 {offsets = [0, 32], sizes = [2, 16], strides = [1, 1]} : vector<2x48xf32> to vector<2x16xf32>
    %589 = vector.extract_strided_slice %571 {offsets = [0, 32], sizes = [2, 16], strides = [1, 1]} : vector<2x48xf32> to vector<2x16xf32>
    %590 = arith.mulf %579, %589 : vector<2x16xf32>
    %591 = arith.addf %588, %590 : vector<2x16xf32>
    %592 = math.tanh %591 : vector<2x16xf32>
    %cst_132 = arith.constant 1.000000e+00 : f32
    %593 = vector.broadcast %cst_132 : f32 to vector<2x16xf32>
    %594 = arith.subf %593, %587 : vector<2x16xf32>
    %595 = arith.mulf %594, %592 : vector<2x16xf32>
    %596 = arith.mulf %587, %559 : vector<2x16xf32>
    %597 = arith.addf %595, %596 : vector<2x16xf32>
    %cst_133 = arith.constant 0.000000e+00 : f32
    %598 = vector.shape_cast %568 : vector<2x1xi1> to vector<2x1xi1>
    %599 = vector.broadcast %598 : vector<2x1xi1> to vector<2x16xi1>
    %600 = vector.broadcast %cst_133 : f32 to vector<2x16xf32>
    %601 = arith.select %599, %597, %600 : vector<2x16xi1>, vector<2x16xf32>
    %602 = vector.extract_strided_slice %601 {offsets = [0, 0], sizes = [1, 16], strides = [1, 1]} : vector<2x16xf32> to vector<1x16xf32>
    %c2_134 = arith.constant 2 : index
    %c16_135 = arith.constant 16 : index
    %603 = vector.load %arg19[%c2_134, %c16_135] : memref<16x32xf32, #tpu.memory_space<vmem>>, vector<1x16xf32>
    tpu.vector_store %arg19[%c2_134, %c16_135], %602 {strides = array<i32>} : memref<16x32xf32, #tpu.memory_space<vmem>>, vector<1x16xf32>,
    %604 = vector.extract_strided_slice %601 {offsets = [1, 0], sizes = [1, 16], strides = [1, 1]} : vector<2x16xf32> to vector<1x16xf32>
    %c10_136 = arith.constant 10 : index
    %c16_137 = arith.constant 16 : index
    %605 = vector.load %arg19[%c10_136, %c16_137] : memref<16x32xf32, #tpu.memory_space<vmem>>, vector<1x16xf32>
    tpu.vector_store %arg19[%c10_136, %c16_137], %604 {strides = array<i32>} : memref<16x32xf32, #tpu.memory_space<vmem>>, vector<1x16xf32>,
    %606 = vector.extract_strided_slice %11 {offsets = [1, 0], sizes = [1, 48], strides = [1, 1]} : vector<16x48xf32> to vector<1x48xf32>
    %607 = vector.extract_strided_slice %11 {offsets = [9, 0], sizes = [1, 48], strides = [1, 1]} : vector<16x48xf32> to vector<1x48xf32>
    %608 = tpu.concatenate %606, %607 in 0 : vector<1x48xf32>, vector<1x48xf32> -> vector<2x48xf32>
    %c1_i32_138 = arith.constant 1 : i32
    %609 = vector.broadcast %c1_i32_138 : i32 to vector<2x1xi32>
    %610 = arith.cmpi sgt, %0, %609 : vector<2x1xi32>
    %cst_139 = arith.constant dense<0.000000e+00> : vector<2x48xf32>
    %611 = tpu.matmul %601, %14, %cst_139 {dimension_numbers = #tpu.dot_dimension_numbers<[1], [0], [0], [1], [0, 0, 1, 1], [], []>} : vector<2x16xf32>, vector<16x48xf32>, vector<2x48xf32> -> vector<2x48xf32>
    %612 = vector.broadcast %15 : vector<1x48xf32> to vector<2x48xf32>
    %613 = arith.addf %611, %612 : vector<2x48xf32>
    %614 = vector.extract_strided_slice %608 {offsets = [0, 0], sizes = [2, 16], strides = [1, 1]} : vector<2x48xf32> to vector<2x16xf32>
    %615 = vector.extract_strided_slice %613 {offsets = [0, 0], sizes = [2, 16], strides = [1, 1]} : vector<2x48xf32> to vector<2x16xf32>
    %616 = arith.addf %614, %615 : vector<2x16xf32>
    %617 = arith.negf %616 : vector<2x16xf32>
    %618 = math.exp %617 : vector<2x16xf32>
    %cst_140 = arith.constant 1.000000e+00 : f32
    %619 = vector.broadcast %cst_140 : f32 to vector<2x16xf32>
    %620 = arith.addf %619, %618 : vector<2x16xf32>
    %621 = arith.divf %619, %620 : vector<2x16xf32>
    %622 = vector.extract_strided_slice %608 {offsets = [0, 16], sizes = [2, 16], strides = [1, 1]} : vector<2x48xf32> to vector<2x16xf32>
    %623 = vector.extract_strided_slice %613 {offsets = [0, 16], sizes = [2, 16], strides = [1, 1]} : vector<2x48xf32> to vector<2x16xf32>
    %624 = arith.addf %622, %623 : vector<2x16xf32>
    %625 = arith.negf %624 : vector<2x16xf32>
    %626 = math.exp %625 : vector<2x16xf32>
    %cst_141 = arith.constant 1.000000e+00 : f32
    %627 = vector.broadcast %cst_141 : f32 to vector<2x16xf32>
    %628 = arith.addf %627, %626 : vector<2x16xf32>
    %629 = arith.divf %627, %628 : vector<2x16xf32>
    %630 = vector.extract_strided_slice %608 {offsets = [0, 32], sizes = [2, 16], strides = [1, 1]} : vector<2x48xf32> to vector<2x16xf32>
    %631 = vector.extract_strided_slice %613 {offsets = [0, 32], sizes = [2, 16], strides = [1, 1]} : vector<2x48xf32> to vector<2x16xf32>
    %632 = arith.mulf %621, %631 : vector<2x16xf32>
    %633 = arith.addf %630, %632 : vector<2x16xf32>
    %634 = math.tanh %633 : vector<2x16xf32>
    %cst_142 = arith.constant 1.000000e+00 : f32
    %635 = vector.broadcast %cst_142 : f32 to vector<2x16xf32>
    %636 = arith.subf %635, %629 : vector<2x16xf32>
    %637 = arith.mulf %636, %634 : vector<2x16xf32>
    %638 = arith.mulf %629, %601 : vector<2x16xf32>
    %639 = arith.addf %637, %638 : vector<2x16xf32>
    %cst_143 = arith.constant 0.000000e+00 : f32
    %640 = vector.shape_cast %610 : vector<2x1xi1> to vector<2x1xi1>
    %641 = vector.broadcast %640 : vector<2x1xi1> to vector<2x16xi1>
    %642 = vector.broadcast %cst_143 : f32 to vector<2x16xf32>
    %643 = arith.select %641, %639, %642 : vector<2x16xi1>, vector<2x16xf32>
    %644 = vector.extract_strided_slice %643 {offsets = [0, 0], sizes = [1, 16], strides = [1, 1]} : vector<2x16xf32> to vector<1x16xf32>
    %c1_144 = arith.constant 1 : index
    %c16_145 = arith.constant 16 : index
    %645 = vector.load %arg19[%c1_144, %c16_145] : memref<16x32xf32, #tpu.memory_space<vmem>>, vector<1x16xf32>
    tpu.vector_store %arg19[%c1_144, %c16_145], %644 {strides = array<i32>} : memref<16x32xf32, #tpu.memory_space<vmem>>, vector<1x16xf32>,
    %646 = vector.extract_strided_slice %643 {offsets = [1, 0], sizes = [1, 16], strides = [1, 1]} : vector<2x16xf32> to vector<1x16xf32>
    %c9_146 = arith.constant 9 : index
    %c16_147 = arith.constant 16 : index
    %647 = vector.load %arg19[%c9_146, %c16_147] : memref<16x32xf32, #tpu.memory_space<vmem>>, vector<1x16xf32>
    tpu.vector_store %arg19[%c9_146, %c16_147], %646 {strides = array<i32>} : memref<16x32xf32, #tpu.memory_space<vmem>>, vector<1x16xf32>,
    %648 = vector.extract_strided_slice %11 {offsets = [0, 0], sizes = [1, 48], strides = [1, 1]} : vector<16x48xf32> to vector<1x48xf32>
    %649 = vector.extract_strided_slice %11 {offsets = [8, 0], sizes = [1, 48], strides = [1, 1]} : vector<16x48xf32> to vector<1x48xf32>
    %650 = tpu.concatenate %648, %649 in 0 : vector<1x48xf32>, vector<1x48xf32> -> vector<2x48xf32>
    %c0_i32_148 = arith.constant 0 : i32
    %651 = vector.broadcast %c0_i32_148 : i32 to vector<2x1xi32>
    %652 = arith.cmpi sgt, %0, %651 : vector<2x1xi32>
    %cst_149 = arith.constant dense<0.000000e+00> : vector<2x48xf32>
    %653 = tpu.matmul %643, %14, %cst_149 {dimension_numbers = #tpu.dot_dimension_numbers<[1], [0], [0], [1], [0, 0, 1, 1], [], []>} : vector<2x16xf32>, vector<16x48xf32>, vector<2x48xf32> -> vector<2x48xf32>
    %654 = vector.broadcast %15 : vector<1x48xf32> to vector<2x48xf32>
    %655 = arith.addf %653, %654 : vector<2x48xf32>
    %656 = vector.extract_strided_slice %650 {offsets = [0, 0], sizes = [2, 16], strides = [1, 1]} : vector<2x48xf32> to vector<2x16xf32>
    %657 = vector.extract_strided_slice %655 {offsets = [0, 0], sizes = [2, 16], strides = [1, 1]} : vector<2x48xf32> to vector<2x16xf32>
    %658 = arith.addf %656, %657 : vector<2x16xf32>
    %659 = arith.negf %658 : vector<2x16xf32>
    %660 = math.exp %659 : vector<2x16xf32>
    %cst_150 = arith.constant 1.000000e+00 : f32
    %661 = vector.broadcast %cst_150 : f32 to vector<2x16xf32>
    %662 = arith.addf %661, %660 : vector<2x16xf32>
    %663 = arith.divf %661, %662 : vector<2x16xf32>
    %664 = vector.extract_strided_slice %650 {offsets = [0, 16], sizes = [2, 16], strides = [1, 1]} : vector<2x48xf32> to vector<2x16xf32>
    %665 = vector.extract_strided_slice %655 {offsets = [0, 16], sizes = [2, 16], strides = [1, 1]} : vector<2x48xf32> to vector<2x16xf32>
    %666 = arith.addf %664, %665 : vector<2x16xf32>
    %667 = arith.negf %666 : vector<2x16xf32>
    %668 = math.exp %667 : vector<2x16xf32>
    %cst_151 = arith.constant 1.000000e+00 : f32
    %669 = vector.broadcast %cst_151 : f32 to vector<2x16xf32>
    %670 = arith.addf %669, %668 : vector<2x16xf32>
    %671 = arith.divf %669, %670 : vector<2x16xf32>
    %672 = vector.extract_strided_slice %650 {offsets = [0, 32], sizes = [2, 16], strides = [1, 1]} : vector<2x48xf32> to vector<2x16xf32>
    %673 = vector.extract_strided_slice %655 {offsets = [0, 32], sizes = [2, 16], strides = [1, 1]} : vector<2x48xf32> to vector<2x16xf32>
    %674 = arith.mulf %663, %673 : vector<2x16xf32>
    %675 = arith.addf %672, %674 : vector<2x16xf32>
    %676 = math.tanh %675 : vector<2x16xf32>
    %cst_152 = arith.constant 1.000000e+00 : f32
    %677 = vector.broadcast %cst_152 : f32 to vector<2x16xf32>
    %678 = arith.subf %677, %671 : vector<2x16xf32>
    %679 = arith.mulf %678, %676 : vector<2x16xf32>
    %680 = arith.mulf %671, %643 : vector<2x16xf32>
    %681 = arith.addf %679, %680 : vector<2x16xf32>
    %cst_153 = arith.constant 0.000000e+00 : f32
    %682 = vector.shape_cast %652 : vector<2x1xi1> to vector<2x1xi1>
    %683 = vector.broadcast %682 : vector<2x1xi1> to vector<2x16xi1>
    %684 = vector.broadcast %cst_153 : f32 to vector<2x16xf32>
    %685 = arith.select %683, %681, %684 : vector<2x16xi1>, vector<2x16xf32>
    %686 = vector.extract_strided_slice %685 {offsets = [0, 0], sizes = [1, 16], strides = [1, 1]} : vector<2x16xf32> to vector<1x16xf32>
    %c0_154 = arith.constant 0 : index
    %c16_155 = arith.constant 16 : index
    %687 = vector.load %arg19[%c0_154, %c16_155] : memref<16x32xf32, #tpu.memory_space<vmem>>, vector<1x16xf32>
    tpu.vector_store %arg19[%c0_154, %c16_155], %686 {strides = array<i32>} : memref<16x32xf32, #tpu.memory_space<vmem>>, vector<1x16xf32>,
    %688 = vector.extract_strided_slice %685 {offsets = [1, 0], sizes = [1, 16], strides = [1, 1]} : vector<2x16xf32> to vector<1x16xf32>
    %c8_156 = arith.constant 8 : index
    %c16_157 = arith.constant 16 : index
    %689 = vector.load %arg19[%c8_156, %c16_157] : memref<16x32xf32, #tpu.memory_space<vmem>>, vector<1x16xf32>
    tpu.vector_store %arg19[%c8_156, %c16_157], %688 {strides = array<i32>} : memref<16x32xf32, #tpu.memory_space<vmem>>, vector<1x16xf32>,
    %c0_158 = arith.constant 0 : index
    %c0_159 = arith.constant 0 : index
    %690 = vector.load %arg19[%c0_158, %c0_159] : memref<16x32xf32, #tpu.memory_space<vmem>>, vector<16x32xf32>
    %c0_160 = arith.constant 0 : index
    %c0_161 = arith.constant 0 : index
    %691 = vector.load %arg10[%c0_160, %c0_161] : memref<32x96xf32, #tpu.memory_space<vmem>>, vector<32x96xf32>
    %cst_162 = arith.constant dense<0.000000e+00> : vector<16x96xf32>
    %692 = tpu.matmul %690, %691, %cst_162 {dimension_numbers = #tpu.dot_dimension_numbers<[1], [0], [0], [1], [0, 0, 1, 1], [], []>} : vector<16x32xf32>, vector<32x96xf32>, vector<16x96xf32> -> vector<16x96xf32>
    %c0_163 = arith.constant 0 : index
    %c0_164 = arith.constant 0 : index
    %693 = vector.load %arg11[%c0_163, %c0_164] : memref<1x96xf32, #tpu.memory_space<vmem>>, vector<1x96xf32>
    %694 = vector.broadcast %693 : vector<1x96xf32> to vector<16x96xf32>
    %695 = arith.addf %692, %694 : vector<16x96xf32>
    %696 = vector.extract_strided_slice %695 {offsets = [0, 0], sizes = [16, 32], strides = [1, 1]} : vector<16x96xf32> to vector<16x32xf32>
    %cst_165 = arith.constant 0.353553385 : f32
    %697 = vector.broadcast %cst_165 : f32 to vector<16x32xf32>
    %698 = arith.mulf %696, %697 : vector<16x32xf32>
    %699 = vector.extract_strided_slice %695 {offsets = [0, 32], sizes = [16, 32], strides = [1, 1]} : vector<16x96xf32> to vector<16x32xf32>
    %700 = vector.extract_strided_slice %695 {offsets = [0, 64], sizes = [16, 32], strides = [1, 1]} : vector<16x96xf32> to vector<16x32xf32>
    %701 = vector.extract_strided_slice %698 {offsets = [0, 0], sizes = [8, 8], strides = [1, 1]} : vector<16x32xf32> to vector<8x8xf32>
    %702 = vector.shape_cast %701 : vector<8x8xf32> to vector<1x8x8xf32>
    %703 = vector.extract_strided_slice %698 {offsets = [8, 0], sizes = [8, 8], strides = [1, 1]} : vector<16x32xf32> to vector<8x8xf32>
    %704 = vector.shape_cast %703 : vector<8x8xf32> to vector<1x8x8xf32>
    %705 = vector.extract_strided_slice %698 {offsets = [0, 8], sizes = [8, 8], strides = [1, 1]} : vector<16x32xf32> to vector<8x8xf32>
    %706 = vector.shape_cast %705 : vector<8x8xf32> to vector<1x8x8xf32>
    %707 = vector.extract_strided_slice %698 {offsets = [8, 8], sizes = [8, 8], strides = [1, 1]} : vector<16x32xf32> to vector<8x8xf32>
    %708 = vector.shape_cast %707 : vector<8x8xf32> to vector<1x8x8xf32>
    %709 = vector.extract_strided_slice %698 {offsets = [0, 16], sizes = [8, 8], strides = [1, 1]} : vector<16x32xf32> to vector<8x8xf32>
    %710 = vector.shape_cast %709 : vector<8x8xf32> to vector<1x8x8xf32>
    %711 = vector.extract_strided_slice %698 {offsets = [8, 16], sizes = [8, 8], strides = [1, 1]} : vector<16x32xf32> to vector<8x8xf32>
    %712 = vector.shape_cast %711 : vector<8x8xf32> to vector<1x8x8xf32>
    %713 = vector.extract_strided_slice %698 {offsets = [0, 24], sizes = [8, 8], strides = [1, 1]} : vector<16x32xf32> to vector<8x8xf32>
    %714 = vector.shape_cast %713 : vector<8x8xf32> to vector<1x8x8xf32>
    %715 = vector.extract_strided_slice %698 {offsets = [8, 24], sizes = [8, 8], strides = [1, 1]} : vector<16x32xf32> to vector<8x8xf32>
    %716 = vector.shape_cast %715 : vector<8x8xf32> to vector<1x8x8xf32>
    %717 = tpu.concatenate %702, %704, %706, %708, %710, %712, %714, %716 in 0 : vector<1x8x8xf32>, vector<1x8x8xf32>, vector<1x8x8xf32>, vector<1x8x8xf32>, vector<1x8x8xf32>, vector<1x8x8xf32>, vector<1x8x8xf32>, vector<1x8x8xf32> -> vector<8x8x8xf32>
    %718 = vector.extract_strided_slice %699 {offsets = [0, 0], sizes = [8, 8], strides = [1, 1]} : vector<16x32xf32> to vector<8x8xf32>
    %719 = vector.shape_cast %718 : vector<8x8xf32> to vector<1x8x8xf32>
    %720 = vector.extract_strided_slice %699 {offsets = [8, 0], sizes = [8, 8], strides = [1, 1]} : vector<16x32xf32> to vector<8x8xf32>
    %721 = vector.shape_cast %720 : vector<8x8xf32> to vector<1x8x8xf32>
    %722 = vector.extract_strided_slice %699 {offsets = [0, 8], sizes = [8, 8], strides = [1, 1]} : vector<16x32xf32> to vector<8x8xf32>
    %723 = vector.shape_cast %722 : vector<8x8xf32> to vector<1x8x8xf32>
    %724 = vector.extract_strided_slice %699 {offsets = [8, 8], sizes = [8, 8], strides = [1, 1]} : vector<16x32xf32> to vector<8x8xf32>
    %725 = vector.shape_cast %724 : vector<8x8xf32> to vector<1x8x8xf32>
    %726 = vector.extract_strided_slice %699 {offsets = [0, 16], sizes = [8, 8], strides = [1, 1]} : vector<16x32xf32> to vector<8x8xf32>
    %727 = vector.shape_cast %726 : vector<8x8xf32> to vector<1x8x8xf32>
    %728 = vector.extract_strided_slice %699 {offsets = [8, 16], sizes = [8, 8], strides = [1, 1]} : vector<16x32xf32> to vector<8x8xf32>
    %729 = vector.shape_cast %728 : vector<8x8xf32> to vector<1x8x8xf32>
    %730 = vector.extract_strided_slice %699 {offsets = [0, 24], sizes = [8, 8], strides = [1, 1]} : vector<16x32xf32> to vector<8x8xf32>
    %731 = vector.shape_cast %730 : vector<8x8xf32> to vector<1x8x8xf32>
    %732 = vector.extract_strided_slice %699 {offsets = [8, 24], sizes = [8, 8], strides = [1, 1]} : vector<16x32xf32> to vector<8x8xf32>
    %733 = vector.shape_cast %732 : vector<8x8xf32> to vector<1x8x8xf32>
    %734 = tpu.concatenate %719, %721, %723, %725, %727, %729, %731, %733 in 0 : vector<1x8x8xf32>, vector<1x8x8xf32>, vector<1x8x8xf32>, vector<1x8x8xf32>, vector<1x8x8xf32>, vector<1x8x8xf32>, vector<1x8x8xf32>, vector<1x8x8xf32> -> vector<8x8x8xf32>
    %735 = vector.extract_strided_slice %700 {offsets = [0, 0], sizes = [8, 8], strides = [1, 1]} : vector<16x32xf32> to vector<8x8xf32>
    %736 = vector.shape_cast %735 : vector<8x8xf32> to vector<1x8x8xf32>
    %737 = vector.extract_strided_slice %700 {offsets = [8, 0], sizes = [8, 8], strides = [1, 1]} : vector<16x32xf32> to vector<8x8xf32>
    %738 = vector.shape_cast %737 : vector<8x8xf32> to vector<1x8x8xf32>
    %739 = vector.extract_strided_slice %700 {offsets = [0, 8], sizes = [8, 8], strides = [1, 1]} : vector<16x32xf32> to vector<8x8xf32>
    %740 = vector.shape_cast %739 : vector<8x8xf32> to vector<1x8x8xf32>
    %741 = vector.extract_strided_slice %700 {offsets = [8, 8], sizes = [8, 8], strides = [1, 1]} : vector<16x32xf32> to vector<8x8xf32>
    %742 = vector.shape_cast %741 : vector<8x8xf32> to vector<1x8x8xf32>
    %743 = vector.extract_strided_slice %700 {offsets = [0, 16], sizes = [8, 8], strides = [1, 1]} : vector<16x32xf32> to vector<8x8xf32>
    %744 = vector.shape_cast %743 : vector<8x8xf32> to vector<1x8x8xf32>
    %745 = vector.extract_strided_slice %700 {offsets = [8, 16], sizes = [8, 8], strides = [1, 1]} : vector<16x32xf32> to vector<8x8xf32>
    %746 = vector.shape_cast %745 : vector<8x8xf32> to vector<1x8x8xf32>
    %747 = vector.extract_strided_slice %700 {offsets = [0, 24], sizes = [8, 8], strides = [1, 1]} : vector<16x32xf32> to vector<8x8xf32>
    %748 = vector.shape_cast %747 : vector<8x8xf32> to vector<1x8x8xf32>
    %749 = vector.extract_strided_slice %700 {offsets = [8, 24], sizes = [8, 8], strides = [1, 1]} : vector<16x32xf32> to vector<8x8xf32>
    %750 = vector.shape_cast %749 : vector<8x8xf32> to vector<1x8x8xf32>
    %751 = tpu.concatenate %736, %738, %740, %742, %744, %746, %748, %750 in 0 : vector<1x8x8xf32>, vector<1x8x8xf32>, vector<1x8x8xf32>, vector<1x8x8xf32>, vector<1x8x8xf32>, vector<1x8x8xf32>, vector<1x8x8xf32>, vector<1x8x8xf32> -> vector<8x8x8xf32>
    "tpu.trace_start"() <{level = 10 : i32, message = "bqd,bkd->bqk"}> : () -> ()
    %cst_166 = arith.constant dense<0.000000e+00> : vector<8x8x8xf32>
    %752 = tpu.matmul %717, %734, %cst_166 {dimension_numbers = #tpu.dot_dimension_numbers<[2], [2], [1], [1], [0, 0, 0, 1, 1, 1], [0], [0]>} : vector<8x8x8xf32>, vector<8x8x8xf32>, vector<8x8x8xf32> -> vector<8x8x8xf32>
    "tpu.trace_stop"() : () -> ()
    %cst_167 = arith.constant dense<0xFF800000> : vector<8x8xf32>
    %753 = vector.multi_reduction <maximumf>, %752, %cst_167 [2] : vector<8x8x8xf32> to vector<8x8xf32>
    %754 = vector.shape_cast %753 : vector<8x8xf32> to vector<8x8x1xf32>
    %755 = vector.broadcast %754 : vector<8x8x1xf32> to vector<8x8x8xf32>
    %756 = arith.subf %752, %755 : vector<8x8x8xf32>
    %757 = math.exp %756 : vector<8x8x8xf32>
    %cst_168 = arith.constant dense<0.000000e+00> : vector<8x8xf32>
    %758 = vector.multi_reduction <add>, %757, %cst_168 [2] : vector<8x8x8xf32> to vector<8x8xf32>
    %759 = vector.shape_cast %758 : vector<8x8xf32> to vector<8x8x1xf32>
    %760 = tpu.reciprocal %759 {approx = true} : vector<8x8x1xf32> -> vector<8x8x1xf32>
    %761 = vector.broadcast %760 : vector<8x8x1xf32> to vector<8x8x8xf32>
    %762 = arith.mulf %757, %761 : vector<8x8x8xf32>
    "tpu.trace_start"() <{level = 10 : i32, message = "bqk,bkd->bqd"}> : () -> ()
    %cst_169 = arith.constant dense<0.000000e+00> : vector<8x8x8xf32>
    %763 = tpu.matmul %762, %751, %cst_169 {dimension_numbers = #tpu.dot_dimension_numbers<[2], [1], [1], [2], [0, 0, 0, 1, 1, 2], [0], [0]>} : vector<8x8x8xf32>, vector<8x8x8xf32>, vector<8x8x8xf32> -> vector<8x8x8xf32>
    "tpu.trace_stop"() : () -> ()
    %764 = vector.extract_strided_slice %763 {offsets = [0, 0, 0], sizes = [1, 8, 8], strides = [1, 1, 1]} : vector<8x8x8xf32> to vector<1x8x8xf32>
    %765 = vector.shape_cast %764 : vector<1x8x8xf32> to vector<8x8xf32>
    %766 = vector.extract_strided_slice %763 {offsets = [2, 0, 0], sizes = [1, 8, 8], strides = [1, 1, 1]} : vector<8x8x8xf32> to vector<1x8x8xf32>
    %767 = vector.shape_cast %766 : vector<1x8x8xf32> to vector<8x8xf32>
    %768 = vector.extract_strided_slice %763 {offsets = [4, 0, 0], sizes = [1, 8, 8], strides = [1, 1, 1]} : vector<8x8x8xf32> to vector<1x8x8xf32>
    %769 = vector.shape_cast %768 : vector<1x8x8xf32> to vector<8x8xf32>
    %770 = vector.extract_strided_slice %763 {offsets = [6, 0, 0], sizes = [1, 8, 8], strides = [1, 1, 1]} : vector<8x8x8xf32> to vector<1x8x8xf32>
    %771 = vector.shape_cast %770 : vector<1x8x8xf32> to vector<8x8xf32>
    %772 = tpu.concatenate %765, %767, %769, %771 in 1 : vector<8x8xf32>, vector<8x8xf32>, vector<8x8xf32>, vector<8x8xf32> -> vector<8x32xf32>
    %773 = vector.extract_strided_slice %763 {offsets = [1, 0, 0], sizes = [1, 8, 8], strides = [1, 1, 1]} : vector<8x8x8xf32> to vector<1x8x8xf32>
    %774 = vector.shape_cast %773 : vector<1x8x8xf32> to vector<8x8xf32>
    %775 = vector.extract_strided_slice %763 {offsets = [3, 0, 0], sizes = [1, 8, 8], strides = [1, 1, 1]} : vector<8x8x8xf32> to vector<1x8x8xf32>
    %776 = vector.shape_cast %775 : vector<1x8x8xf32> to vector<8x8xf32>
    %777 = vector.extract_strided_slice %763 {offsets = [5, 0, 0], sizes = [1, 8, 8], strides = [1, 1, 1]} : vector<8x8x8xf32> to vector<1x8x8xf32>
    %778 = vector.shape_cast %777 : vector<1x8x8xf32> to vector<8x8xf32>
    %779 = vector.extract_strided_slice %763 {offsets = [7, 0, 0], sizes = [1, 8, 8], strides = [1, 1, 1]} : vector<8x8x8xf32> to vector<1x8x8xf32>
    %780 = vector.shape_cast %779 : vector<1x8x8xf32> to vector<8x8xf32>
    %781 = tpu.concatenate %774, %776, %778, %780 in 1 : vector<8x8xf32>, vector<8x8xf32>, vector<8x8xf32>, vector<8x8xf32> -> vector<8x32xf32>
    %782 = tpu.concatenate %772, %781 in 0 : vector<8x32xf32>, vector<8x32xf32> -> vector<16x32xf32>
    %c0_170 = arith.constant 0 : index
    %c0_171 = arith.constant 0 : index
    %783 = vector.load %arg12[%c0_170, %c0_171] : memref<32x32xf32, #tpu.memory_space<vmem>>, vector<32x32xf32>
    %cst_172 = arith.constant dense<0.000000e+00> : vector<16x32xf32>
    %784 = tpu.matmul %782, %783, %cst_172 {dimension_numbers = #tpu.dot_dimension_numbers<[1], [0], [0], [1], [0, 0, 1, 1], [], []>} : vector<16x32xf32>, vector<32x32xf32>, vector<16x32xf32> -> vector<16x32xf32>
    %c0_173 = arith.constant 0 : index
    %c0_174 = arith.constant 0 : index
    %785 = vector.load %arg13[%c0_173, %c0_174] : memref<1x32xf32, #tpu.memory_space<vmem>>, vector<1x32xf32>
    %786 = vector.broadcast %785 : vector<1x32xf32> to vector<16x32xf32>
    %787 = arith.addf %784, %786 : vector<16x32xf32>
    %788 = vector.extract_strided_slice %787 {offsets = [0, 0], sizes = [8, 32], strides = [1, 1]} : vector<16x32xf32> to vector<8x32xf32>
    %cst_175 = arith.constant dense<0.000000e+00> : vector<32xf32>
    %789 = vector.multi_reduction <add>, %788, %cst_175 [0] : vector<8x32xf32> to vector<32xf32>
    %790 = vector.shape_cast %789 : vector<32xf32> to vector<1x32xf32>
    %cst_176 = arith.constant 8.000000e+00 : f32
    %791 = vector.broadcast %cst_176 : f32 to vector<1x32xf32>
    %792 = arith.divf %790, %791 : vector<1x32xf32>
    %cst_177 = arith.constant dense<0xFF800000> : vector<32xf32>
    %793 = vector.multi_reduction <maximumf>, %788, %cst_177 [0] : vector<8x32xf32> to vector<32xf32>
    %794 = vector.shape_cast %793 : vector<32xf32> to vector<1x32xf32>
    %795 = tpu.concatenate %792, %794 in 1 : vector<1x32xf32>, vector<1x32xf32> -> vector<1x64xf32>
    %796 = vector.extract_strided_slice %787 {offsets = [8, 0], sizes = [8, 32], strides = [1, 1]} : vector<16x32xf32> to vector<8x32xf32>
    %cst_178 = arith.constant dense<0.000000e+00> : vector<32xf32>
    %797 = vector.multi_reduction <add>, %796, %cst_178 [0] : vector<8x32xf32> to vector<32xf32>
    %798 = vector.shape_cast %797 : vector<32xf32> to vector<1x32xf32>
    %cst_179 = arith.constant 8.000000e+00 : f32
    %799 = vector.broadcast %cst_179 : f32 to vector<1x32xf32>
    %800 = arith.divf %798, %799 : vector<1x32xf32>
    %cst_180 = arith.constant dense<0xFF800000> : vector<32xf32>
    %801 = vector.multi_reduction <maximumf>, %796, %cst_180 [0] : vector<8x32xf32> to vector<32xf32>
    %802 = vector.shape_cast %801 : vector<32xf32> to vector<1x32xf32>
    %803 = tpu.concatenate %800, %802 in 1 : vector<1x32xf32>, vector<1x32xf32> -> vector<1x64xf32>
    %804 = tpu.concatenate %795, %803 in 0 : vector<1x64xf32>, vector<1x64xf32> -> vector<2x64xf32>
    %c0_181 = arith.constant 0 : index
    %c0_182 = arith.constant 0 : index
    %805 = vector.load %arg14[%c0_181, %c0_182] : memref<64x16xf32, #tpu.memory_space<vmem>>, vector<64x16xf32>
    %cst_183 = arith.constant dense<0.000000e+00> : vector<2x16xf32>
    %806 = tpu.matmul %804, %805, %cst_183 {dimension_numbers = #tpu.dot_dimension_numbers<[1], [0], [0], [1], [0, 0, 1, 1], [], []>} : vector<2x64xf32>, vector<64x16xf32>, vector<2x16xf32> -> vector<2x16xf32>
    %c0_184 = arith.constant 0 : index
    %c0_185 = arith.constant 0 : index
    %807 = vector.load %arg15[%c0_184, %c0_185] : memref<1x16xf32, #tpu.memory_space<vmem>>, vector<1x16xf32>
    %808 = vector.broadcast %807 : vector<1x16xf32> to vector<2x16xf32>
    %809 = arith.addf %806, %808 : vector<2x16xf32>
    %cst_186 = arith.constant 0.000000e+00 : f32
    %810 = vector.broadcast %cst_186 : f32 to vector<2x16xf32>
    %811 = arith.maximumf %809, %810 : vector<2x16xf32>
    %c0_187 = arith.constant 0 : index
    %c0_188 = arith.constant 0 : index
    %812 = vector.load %arg16[%c0_187, %c0_188] : memref<1x16xf32, #tpu.memory_space<vmem>>, vector<1x16xf32>
    %813 = vector.broadcast %812 : vector<1x16xf32> to vector<2x16xf32>
    %814 = arith.mulf %811, %813 : vector<2x16xf32>
    %cst_189 = arith.constant dense<0.000000e+00> : vector<2xf32>
    %815 = vector.multi_reduction <add>, %814, %cst_189 [1] : vector<2x16xf32> to vector<2xf32>
    %816 = vector.shape_cast %815 : vector<2xf32> to vector<2x1xf32>
    %c0_190 = arith.constant 0 : index
    %c0_191 = arith.constant 0 : index
    %817 = vector.load %arg17[%c0_190, %c0_191] : memref<1x1xf32, #tpu.memory_space<vmem>>, vector<1x1xf32>
    %818 = vector.broadcast %817 : vector<1x1xf32> to vector<2x1xf32>
    %819 = arith.addf %816, %818 : vector<2x1xf32>
    %c0_192 = arith.constant 0 : index
    %c0_193 = arith.constant 0 : index
    %820 = vector.load %arg18[%c0_192, %c0_193] : memref<2x1xf32, #tpu.memory_space<vmem>>, vector<2x1xf32>
    tpu.vector_store %arg18[%c0_192, %c0_193], %819 {strides = array<i32>} : memref<2x1xf32, #tpu.memory_space<vmem>>, vector<2x1xf32>,
    return
  }
}

</mosaic_0001>

<llo_original>
// kernel: deep_hydra_forward.1
$region0: #{deep_hydra_forward.1}
  #allocation0 [shape = 'u32[]', space=smem, size = 0x4, offset = 0x4, fixed_abs, tag = 'smem constant byte address 0x4 - core index']
  #allocation1 [shape = 'u32[72,128]{1,0:T(1,128)}', space=vmem, size = 0x9000, scoped, tag = 'internal scratch']
  #allocation2 [shape = 'f32[16,32]{1,0:T(8,128)}', space=vmem, size = 0x2000, scoped, tag = 'scratch operand']
  #allocation3 [shape = 'f32[1,1]{1,0:T(1,128)S(1)}', space=vmem, size = 0x200, scoped, tag = 'scoped memory for deep_hydra_forward.1']
  %s0 = inlined_call_operand.vmem [shape: f32[16,32], index: 0, kind: input, shape index: {}]
  %s1 = inlined_call_operand.vmem [shape: s32[2,1], index: 1, kind: input, shape index: {}]
  %s2 = inlined_call_operand.vmem [shape: f32[32,48], index: 2, kind: input, shape index: {}]
  %s3 = inlined_call_operand.hbm [shape: f32[16,48], index: 3, kind: input, shape index: {}]
  %s4 = inlined_call_operand.vmem [shape: f32[1,48], index: 4, kind: input, shape index: {}]
  %s5 = inlined_call_operand.vmem [shape: f32[1,48], index: 5, kind: input, shape index: {}]
  %s6 = inlined_call_operand.vmem [shape: f32[32,48], index: 6, kind: input, shape index: {}]
  %s7 = inlined_call_operand.hbm [shape: f32[16,48], index: 7, kind: input, shape index: {}]
  %s8 = inlined_call_operand.vmem [shape: f32[1,48], index: 8, kind: input, shape index: {}]
  %s9 = inlined_call_operand.hbm [shape: f32[1,48], index: 9, kind: input, shape index: {}]
  %s10 = inlined_call_operand.hbm [shape: f32[32,96], index: 10, kind: input, shape index: {}]
  %s11 = inlined_call_operand.hbm [shape: f32[1,96], index: 11, kind: input, shape index: {}]
  %s12 = inlined_call_operand.hbm [shape: f32[32,32], index: 12, kind: input, shape index: {}]
  %s13 = inlined_call_operand.hbm [shape: f32[1,32], index: 13, kind: input, shape index: {}]
  %s14 = inlined_call_operand.vmem [shape: f32[64,16], index: 14, kind: input, shape index: {}]
  %s15 = inlined_call_operand.hbm [shape: f32[1,16], index: 15, kind: input, shape index: {}]
  %s16 = inlined_call_operand.vmem [shape: f32[1,16], index: 16, kind: input, shape index: {}]
  %s17 = inlined_call_operand.<no memory space> [shape: f32[1,1], index: 17, kind: input, shape index: {}]
  %s18 = inlined_call_operand.vmem [shape: f32[2,1], index: 18, kind: output, shape index: {}]
  %s19 = sld [smem:[#allocation0]]
  $region114: #{deep_hydra_forward.1} parent=0
    _
  %s21 = ssub.s32 1, %s19
  %s22 = scalar_select 0, %s21, %s19
  %v23 = vstv %s17
  %24 = vst [vmem:[#allocation3] sm:$0x1] %v23
  $region1: #{deep_hydra_forward.1} parent=0
    #allocation4 [shape = 'u8[8192]{0}', space=vmem, size = 0x2000, scoped, tag = 'input window, operand 3, single buffered']
    #allocation5 [shape = 's32[1]{0}', space=sflag, size = 0x4, scoped, tag = 'scoped memory for deep_hydra_forward.1']
    #allocation6 [shape = 'u8[8192]{0}', space=vmem, size = 0x2000, scoped, tag = 'input window, operand 7, single buffered']
    #allocation7 [shape = 's32[1]{0}', space=sflag, size = 0x4, scoped, tag = 'scoped memory for deep_hydra_forward.1']
    #allocation8 [shape = 'u8[512]{0}', space=vmem, size = 0x400, scoped, tag = 'input window, operand 9, single buffered']
    #allocation9 [shape = 'u8[16384]{0}', space=vmem, size = 0x4000, scoped, tag = 'input window, operand 10, single buffered']
    #allocation10 [shape = 's32[1]{0}', space=sflag, size = 0x4, scoped, tag = 'scoped memory for deep_hydra_forward.1']
    #allocation11 [shape = 'u8[512]{0}', space=vmem, size = 0x400, scoped, tag = 'input window, operand 11, single buffered']
    #allocation12 [shape = 'u8[16384]{0}', space=vmem, size = 0x4000, scoped, tag = 'input window, operand 12, single buffered']
    #allocation13 [shape = 's32[1]{0}', space=sflag, size = 0x4, scoped, tag = 'scoped memory for deep_hydra_forward.1']
    #allocation14 [shape = 'u8[512]{0}', space=vmem, size = 0x400, scoped, tag = 'input window, operand 13, single buffered']
    #allocation15 [shape = 'u8[512]{0}', space=vmem, size = 0x400, scoped, tag = 'input window, operand 15, single buffered']
    #allocation16 [shape = 's32[1]{0}', space=sflag, size = 0x4, scoped, tag = 'scoped memory for deep_hydra_forward.1']
    %25 = vsyncpa [#allocation5], 0
    %26 = vsyncpa [#allocation7], 0
    %27 = vsyncpa [#allocation10], 0
    %28 = vsyncpa [#allocation13], 0
    %29 = vsyncpa [#allocation16], 0
    // Predicated region
    $region2: #{deep_hydra_forward.1} parent=1 // pred_check
      _
    $region3: #{deep_hydra_forward.1} parent=1 // pred_check_branch
      %31 = sbr.rel (0) target = $region5
    $region4: #{deep_hydra_forward.1} parent=1 // pred_region
      _
    $region5: #{deep_hydra_forward.1} parent=1 // pred_fallthru
      _
    // Predicated region
    $region6: #{deep_hydra_forward.1} parent=1 // pred_check
      _
    $region7: #{deep_hydra_forward.1} parent=1 // pred_check_branch
      %33 = sbr.rel (0) target = $region9
    $region8: #{deep_hydra_forward.1} parent=1 // pred_region
      _
    $region9: #{deep_hydra_forward.1} parent=1 // pred_fallthru
      _
    // Predicated region
    $region10: #{deep_hydra_forward.1} parent=1 // pred_check
      _
    $region11: #{deep_hydra_forward.1} parent=1 // pred_check_branch
      %35 = sbr.rel (0) target = $region13
    $region12: #{deep_hydra_forward.1} parent=1 // pred_region
      _
    $region13: #{deep_hydra_forward.1} parent=1 // pred_fallthru
      _
    // Predicated region
    $region14: #{deep_hydra_forward.1} parent=1 // pred_check
      _
    $region15: #{deep_hydra_forward.1} parent=1 // pred_check_branch
      %37 = sbr.rel (0) target = $region17
    $region16: #{deep_hydra_forward.1} parent=1 // pred_region
      %39 = vsyncadd [#allocation5], 0
      %s40 = sshll.u32 %s3, 4
      %s41 = int_to_ptr.hbm [resolvable:$true] %s40
      %s42 = sshll.u32 [#allocation4], 4
      %s43 = int_to_ptr.vmem [resolvable:$true] %s42
      %48 = dma.hbm_to_vmem [thread:$0]  %s41, 256, %s43, [#allocation5], 128, 128, 8
    $region17: #{deep_hydra_forward.1} parent=1 // pred_fallthru
      _
    // Predicated region
    $region18: #{deep_hydra_forward.1} parent=1 // pred_check
      _
    $region19: #{deep_hydra_forward.1} parent=1 // pred_check_branch
      %50 = sbr.rel (0) target = $region21
    $region20: #{deep_hydra_forward.1} parent=1 // pred_region
      _
    $region21: #{deep_hydra_forward.1} parent=1 // pred_fallthru
      _
    // Predicated region
    $region22: #{deep_hydra_forward.1} parent=1 // pred_check
      _
    $region23: #{deep_hydra_forward.1} parent=1 // pred_check_branch
      %52 = sbr.rel (0) target = $region25
    $region24: #{deep_hydra_forward.1} parent=1 // pred_region
      _
    $region25: #{deep_hydra_forward.1} parent=1 // pred_fallthru
      _
    // Predicated region
    $region26: #{deep_hydra_forward.1} parent=1 // pred_check
      _
    $region27: #{deep_hydra_forward.1} parent=1 // pred_check_branch
      %54 = sbr.rel (0) target = $region29
    $region28: #{deep_hydra_forward.1} parent=1 // pred_region
      _
    $region29: #{deep_hydra_forward.1} parent=1 // pred_fallthru
      _
    // Predicated region
    $region30: #{deep_hydra_forward.1} parent=1 // pred_check
      _
    $region31: #{deep_hydra_forward.1} parent=1 // pred_check_branch
      %56 = sbr.rel (0) target = $region33
    $region32: #{deep_hydra_forward.1} parent=1 // pred_region
      %58 = vsyncadd [#allocation7], 0
      %s59 = sshll.u32 %s7, 4
      %s60 = int_to_ptr.hbm [resolvable:$true] %s59
      %s61 = sshll.u32 [#allocation6], 4
      %s62 = int_to_ptr.vmem [resolvable:$true] %s61
      %67 = dma.hbm_to_vmem [thread:$0]  %s60, 256, %s62, [#allocation7], 128, 128, 8
    $region33: #{deep_hydra_forward.1} parent=1 // pred_fallthru
      _
    // Predicated region
    $region34: #{deep_hydra_forward.1} parent=1 // pred_check
      _
    $region35: #{deep_hydra_forward.1} parent=1 // pred_check_branch
      %69 = sbr.rel (0) target = $region37
    $region36: #{deep_hydra_forward.1} parent=1 // pred_region
      _
    $region37: #{deep_hydra_forward.1} parent=1 // pred_fallthru
      _
    // Predicated region
    $region38: #{deep_hydra_forward.1} parent=1 // pred_check
      _
    $region39: #{deep_hydra_forward.1} parent=1 // pred_check_branch
      %71 = sbr.rel (0) target = $region41
    $region40: #{deep_hydra_forward.1} parent=1 // pred_region
      %73 = vsyncadd [#allocation7], 0
      %s75 = sshll.u32 %s9, 4
      %s76 = int_to_ptr.hbm [resolvable:$true] %s75
      %s77 = sshll.u32 [#allocation8], 4
      %s78 = int_to_ptr.vmem [resolvable:$true] %s77
      %80 = dma.hbm_to_vmem [thread:$0]  %s76, 16, %s78, [#allocation7]
    $region41: #{deep_hydra_forward.1} parent=1 // pred_fallthru
      _
    // Predicated region
    $region42: #{deep_hydra_forward.1} parent=1 // pred_check
      _
    $region43: #{deep_hydra_forward.1} parent=1 // pred_check_branch
      %82 = sbr.rel (0) target = $region45
    $region44: #{deep_hydra_forward.1} parent=1 // pred_region
      %84 = vsyncadd [#allocation10], 0
      %s85 = sshll.u32 %s10, 4
      %s86 = int_to_ptr.hbm [resolvable:$true] %s85
      %s87 = sshll.u32 [#allocation9], 4
      %s88 = int_to_ptr.vmem [resolvable:$true] %s87
      %93 = dma.hbm_to_vmem [thread:$0]  %s86, 512, %s88, [#allocation10], 128, 128, 8
    $region45: #{deep_hydra_forward.1} parent=1 // pred_fallthru
      _
    // Predicated region
    $region46: #{deep_hydra_forward.1} parent=1 // pred_check
      _
    $region47: #{deep_hydra_forward.1} parent=1 // pred_check_branch
      %95 = sbr.rel (0) target = $region49
    $region48: #{deep_hydra_forward.1} parent=1 // pred_region
      %97 = vsyncadd [#allocation10], 0
      %s99 = sshll.u32 %s11, 4
      %s100 = int_to_ptr.hbm [resolvable:$true] %s99
      %s101 = sshll.u32 [#allocation11], 4
      %s102 = int_to_ptr.vmem [resolvable:$true] %s101
      %104 = dma.hbm_to_vmem [thread:$0]  %s100, 16, %s102, [#allocation10]
    $region49: #{deep_hydra_forward.1} parent=1 // pred_fallthru
      _
    // Predicated region
    $region50: #{deep_hydra_forward.1} parent=1 // pred_check
      _
    $region51: #{deep_hydra_forward.1} parent=1 // pred_check_branch
      %106 = sbr.rel (0) target = $region53
    $region52: #{deep_hydra_forward.1} parent=1 // pred_region
      %108 = vsyncadd [#allocation13], 0
      %s109 = sshll.u32 %s12, 4
      %s110 = int_to_ptr.hbm [resolvable:$true] %s109
      %s111 = sshll.u32 [#allocation12], 4
      %s112 = int_to_ptr.vmem [resolvable:$true] %s111
      %117 = dma.hbm_to_vmem [thread:$0]  %s110, 512, %s112, [#allocation13], 128, 128, 8
    $region53: #{deep_hydra_forward.1} parent=1 // pred_fallthru
      _
    // Predicated region
    $region54: #{deep_hydra_forward.1} parent=1 // pred_check
      _
    $region55: #{deep_hydra_forward.1} parent=1 // pred_check_branch
      %119 = sbr.rel (0) target = $region57
    $region56: #{deep_hydra_forward.1} parent=1 // pred_region
      %121 = vsyncadd [#allocation13], 0
      %s123 = sshll.u32 %s13, 4
      %s124 = int_to_ptr.hbm [resolvable:$true] %s123
      %s125 = sshll.u32 [#allocation14], 4
      %s126 = int_to_ptr.vmem [resolvable:$true] %s125
      %128 = dma.hbm_to_vmem [thread:$0]  %s124, 16, %s126, [#allocation13]
    $region57: #{deep_hydra_forward.1} parent=1 // pred_fallthru
      _
    // Predicated region
    $region58: #{deep_hydra_forward.1} parent=1 // pred_check
      _
    $region59: #{deep_hydra_forward.1} parent=1 // pred_check_branch
      %130 = sbr.rel (0) target = $region61
    $region60: #{deep_hydra_forward.1} parent=1 // pred_region
      _
    $region61: #{deep_hydra_forward.1} parent=1 // pred_fallthru
      _
    // Predicated region
    $region62: #{deep_hydra_forward.1} parent=1 // pred_check
      _
    $region63: #{deep_hydra_forward.1} parent=1 // pred_check_branch
      %132 = sbr.rel (0) target = $region65
    $region64: #{deep_hydra_forward.1} parent=1 // pred_region
      %134 = vsyncadd [#allocation16], 0
      %s136 = sshll.u32 %s15, 4
      %s137 = int_to_ptr.hbm [resolvable:$true] %s136
      %s138 = sshll.u32 [#allocation15], 4
      %s139 = int_to_ptr.vmem [resolvable:$true] %s138
      %141 = dma.hbm_to_vmem [thread:$0]  %s137, 16, %s139, [#allocation16]
    $region65: #{deep_hydra_forward.1} parent=1 // pred_fallthru
      _
    // Predicated region
    $region66: #{deep_hydra_forward.1} parent=1 // pred_check
      _
    $region67: #{deep_hydra_forward.1} parent=1 // pred_check_branch
      %143 = sbr.rel (0) target = $region69
    $region68: #{deep_hydra_forward.1} parent=1 // pred_region
      _
    $region69: #{deep_hydra_forward.1} parent=1 // pred_fallthru
      _
    // Predicated region
    $region70: #{deep_hydra_forward.1} parent=1 // pred_check
      _
    $region71: #{deep_hydra_forward.1} parent=1 // pred_check_branch
      %145 = sbr.rel (0) target = $region73
    $region72: #{deep_hydra_forward.1} parent=1 // pred_region
      _
    $region73: #{deep_hydra_forward.1} parent=1 // pred_fallthru
      _
    // Predicated region
    $region74: #{deep_hydra_forward.1} parent=1 // pred_check
      _
    $region75: #{deep_hydra_forward.1} parent=1 // pred_check_branch
      %147 = sbr.rel (0) target = $region77
    $region76: #{deep_hydra_forward.1} parent=1 // pred_region
      %149 = dma.done [#allocation5], 256
    $region77: #{deep_hydra_forward.1} parent=1 // pred_fallthru
      _
    // Predicated region
    $region78: #{deep_hydra_forward.1} parent=1 // pred_check
      _
    $region79: #{deep_hydra_forward.1} parent=1 // pred_check_branch
      %151 = sbr.rel (0) target = $region81
    $region80: #{deep_hydra_forward.1} parent=1 // pred_region
      %153 = dma.done [#allocation7], 256
    $region81: #{deep_hydra_forward.1} parent=1 // pred_fallthru
      _
    // Predicated region
    $region82: #{deep_hydra_forward.1} parent=1 // pred_check
      _
    $region83: #{deep_hydra_forward.1} parent=1 // pred_check_branch
      %155 = sbr.rel (0) target = $region85
    $region84: #{deep_hydra_forward.1} parent=1 // pred_region
      %157 = dma.done [#allocation7], 16
    $region85: #{deep_hydra_forward.1} parent=1 // pred_fallthru
      _
    // Predicated region
    $region86: #{deep_hydra_forward.1} parent=1 // pred_check
      _
    $region87: #{deep_hydra_forward.1} parent=1 // pred_check_branch
      %159 = sbr.rel (0) target = $region89
    $region88: #{deep_hydra_forward.1} parent=1 // pred_region
      %161 = dma.done [#allocation10], 512
    $region89: #{deep_hydra_forward.1} parent=1 // pred_fallthru
      _
    // Predicated region
    $region90: #{deep_hydra_forward.1} parent=1 // pred_check
      _
    $region91: #{deep_hydra_forward.1} parent=1 // pred_check_branch
      %163 = sbr.rel (0) target = $region93
    $region92: #{deep_hydra_forward.1} parent=1 // pred_region
      %165 = dma.done [#allocation10], 16
    $region93: #{deep_hydra_forward.1} parent=1 // pred_fallthru
      _
    // Predicated region
    $region94: #{deep_hydra_forward.1} parent=1 // pred_check
      _
    $region95: #{deep_hydra_forward.1} parent=1 // pred_check_branch
      %167 = sbr.rel (0) target = $region97
    $region96: #{deep_hydra_forward.1} parent=1 // pred_region
      %169 = dma.done [#allocation13], 512
    $region97: #{deep_hydra_forward.1} parent=1 // pred_fallthru
      _
    // Predicated region
    $region98: #{deep_hydra_forward.1} parent=1 // pred_check
      _
    $region99: #{deep_hydra_forward.1} parent=1 // pred_check_branch
      %171 = sbr.rel (0) target = $region101
    $region100: #{deep_hydra_forward.1} parent=1 // pred_region
      %173 = dma.done [#allocation13], 16
    $region101: #{deep_hydra_forward.1} parent=1 // pred_fallthru
      _
    // Predicated region
    $region102: #{deep_hydra_forward.1} parent=1 // pred_check
      _
    $region103: #{deep_hydra_forward.1} parent=1 // pred_check_branch
      %175 = sbr.rel (0) target = $region105
    $region104: #{deep_hydra_forward.1} parent=1 // pred_region
      %177 = dma.done [#allocation16], 16
    $region105: #{deep_hydra_forward.1} parent=1 // pred_fallthru
      _
    %v178 = vld [vmem:[%s1] sm:$0x3]
    %v179 = vld [vmem:[%s0] sm:$0xff]
    %v180 = vld [vmem:[%s0 + $0x8] sm:$0xff]
    %v181 = vld [vmem:[%s2] sm:$0xff]
    %v182 = vld [vmem:[%s2 + $0x8] sm:$0xff]
    %v183 = vld [vmem:[%s2 + $0x10] sm:$0xff]
    %v184 = vld [vmem:[%s2 + $0x18] sm:$0xff]
    %v185 = vld [vmem:[%s4] sm:$0x1]
    %v187 = vperm.slane %v185, 0
    %vm189 = vcmask 261120
    %v191 = vsel %vm189, %v179, 0
    %v194 = vsel %vm189, %v180, 0
    %196 = vmatpush.msra.mxu0 0.0
    %197 = vmatpush.msra.mxu0 0.0
    %198 = vmatpush.msra.mxu0 0.0
    %199 = vmatpush.msra.mxu0 0.0
    %200 = vmatpush.msra.mxu0 0.0
    %201 = vmatpush.msra.mxu0 0.0
    %202 = vmatpush.msra.mxu0 0.0
    %203 = vmatpush.msra.mxu0 0.0
    %204 = vmatpush.msra.mxu0 0.0
    %205 = vmatpush.msra.mxu0 0.0
    %206 = vmatpush.msra.mxu0 0.0
    %207 = vmatpush.msra.mxu0 0.0
    %208 = vmatpush.msra.mxu0 %v184
    %209 = vmatpush.msra.mxu0 %v183
    %210 = vmatpush.msra.mxu0 %v182
    %211 = vmatpush.msra.mxu0 %v181
    %212 = vmatmul.f32.gmra.mxu0 %v191
    %v213 = vpop.f32.mrf.mxu0
    %v214 = vadd.f32 %v187, %v213
    %215 = vmatmul.f32.gmra.mxu0 %v194
    %v216 = vpop.f32.mrf.mxu0
    %v217 = vadd.f32 %v187, %v216
    %218 = vdwg.mxu0
    %v219 = vld [vmem:[%s6] sm:$0xff]
    %v220 = vld [vmem:[%s6 + $0x8] sm:$0xff]
    %v221 = vld [vmem:[%s6 + $0x10] sm:$0xff]
    %v222 = vld [vmem:[%s6 + $0x18] sm:$0xff]
    %v223 = vld [vmem:[%s8] sm:$0x1]
    %v225 = vperm.slane %v223, 0
    %227 = vmatpush.msra.mxu0 0.0
    %228 = vmatpush.msra.mxu0 0.0
    %229 = vmatpush.msra.mxu0 0.0
    %230 = vmatpush.msra.mxu0 0.0
    %231 = vmatpush.msra.mxu0 0.0
    %232 = vmatpush.msra.mxu0 0.0
    %233 = vmatpush.msra.mxu0 0.0
    %234 = vmatpush.msra.mxu0 0.0
    %235 = vmatpush.msra.mxu0 0.0
    %236 = vmatpush.msra.mxu0 0.0
    %237 = vmatpush.msra.mxu0 0.0
    %238 = vmatpush.msra.mxu0 0.0
    %239 = vmatpush.msra.mxu0 %v222
    %240 = vmatpush.msra.mxu0 %v221
    %241 = vmatpush.msra.mxu0 %v220
    %242 = vmatpush.msra.mxu0 %v219
    %243 = vmatmul.f32.gmra.mxu0 %v191
    %v244 = vpop.f32.mrf.mxu0
    %v245 = vadd.f32 %v225, %v244
    %246 = vmatmul.f32.gmra.mxu0 %v194
    %v247 = vpop.f32.mrf.mxu0
    %v248 = vadd.f32 %v225, %v247
    %249 = vdwg.mxu0
    %v250 = vld [vmem:[#allocation4] sm:$0xff]
    %v251 = vld [vmem:[#allocation4 + $0x8] sm:$0xff]
    %v252 = vld [vmem:[%s5] sm:$0x1]
    %v253 = vld [vmem:[#allocation6] sm:$0xff]
    %v254 = vld [vmem:[#allocation6 + $0x8] sm:$0xff]
    %v255 = vld [vmem:[#allocation8] sm:$0x1]
    %v257 = vrot.slane %v217, 7
    %vm259 = vcmask 1040384
    %v260 = vsel %vm259, %v214, %v257
    %vm261 = vcmp.gt.s32.totalorder %v178, 0
    %v263 = vperm.slane %v252, 0
    %vm265 = vcmask 130048
    %v267 = vsel %vm265, 0.0, 0
    %269 = vmatpush.msra.mxu0 0.0
    %270 = vmatpush.msra.mxu0 0.0
    %271 = vmatpush.msra.mxu0 0.0
    %272 = vmatpush.msra.mxu0 0.0
    %273 = vmatpush.msra.mxu0 0.0
    %274 = vmatpush.msra.mxu0 0.0
    %275 = vmatpush.msra.mxu0 0.0
    %276 = vmatpush.msra.mxu0 0.0
    %277 = vmatpush.msra.mxu0 0.0
    %278 = vmatpush.msra.mxu0 0.0
    %279 = vmatpush.msra.mxu0 0.0
    %280 = vmatpush.msra.mxu0 0.0
    %281 = vmatpush.msra.mxu0 0.0
    %282 = vmatpush.msra.mxu0 0.0
    %283 = vmatpush.msra.mxu0 %v251
    %284 = vmatpush.msra.mxu0 %v250
    %285 = vmatmul.f32.gmra.mxu0 %v267
    %v286 = vpop.f32.mrf.mxu0
    %v287 = vadd.f32 %v263, %v286
    %288 = vdwg.mxu0
    %v289 = vadd.f32 %v260, %v287
    %v290 = vxor.u32 %v289, 2147483648
    %v291 = vmul.f32 %v290, 1.442695
    %v292 = vpow.pop %v291
    %v293 = vadd.f32 %v292, 1.0
    %v294 = vrcp.pop %v293
    %v295 = vmul.f32 %v293, %v294
    %v296 = vsub.f32 1.0, %v295
    %v297 = vmul.f32 %v294, %v296
    %v298 = vadd.f32 %v294, %v297
    %vm299 = vweird.f32 %v293
    %vm300 = vweird.f32 %v294
    %vm301 = vmor %vm299, %vm300
    %v302 = vsel %vm301, %v294, %v298
    %v303 = vand.u32 2147483647, %v293
    %vm304 = vcmp.eq.f32.partialorder %v303, 8.507059e+37
    %v305 = vand.u32 %v293, 2147483648
    %v306 = vor.u32 1.1754944e-38, %v305
    %v307 = vsel %vm304, %v306, %v302
    %v308 = vmul.f32 1.0, %v307
    %310 = vrot.lane.b32.xlu0 %v287, 96
    %v311 = vpop.permute.xlu0 %310
    %v313 = vmul.f32 %v308, %v311
    %315 = vrot.lane.b32.xlu0 %v313, 32
    %v316 = vpop.permute.xlu0 %315
    %v318 = vadd.f32 %v260, %v316
    %v319 = vtanh.pop %v318
    %v320 = vsub.f32 1.0, %v308
    %322 = vrot.lane.b32.xlu0 %v319, 112
    %v323 = vpop.permute.xlu0 %322
    %v325 = vmul.f32 %v320, %v323
    %v326 = vmul.f32 %v308, 0.0
    %v327 = vadd.f32 %v325, %v326
    %v328 = vsel %vm261, 1, 0
    %329 = vset.pattern.permute.xlu0 0
    %330 = vperm.xlu0 %329, %v328
    %v331 = vpop.permute.xlu0 %330
    %vm332 = vcmp.eq.s32.totalorder %v331, 1
    %v333 = vsel %vm332, %v327, 0.0
    %335 = vrot.lane.b32.xlu0 %v333, 112
    %v336 = vpop.permute.xlu0 %335
    %vm338 = vcmask 122880
    %339 = vst.msk [vmem:[#allocation2] sm:$0x1] %vm338, %v336
    %vm340 = vcmask 123905
    %341 = vst.msk [vmem:[#allocation2 + $0x7] sm:$0x2] %vm340, %v336
    %v343 = vrot.slane %v214, 1
    %v345 = vsel %vm259, %v343, %v217
    %vm346 = vcmp.gt.s32.totalorder %v178, 1
    %v347 = vsel %vm265, %v336, 0
    %349 = vmatpush.msra.mxu0 0.0
    %350 = vmatpush.msra.mxu0 0.0
    %351 = vmatpush.msra.mxu0 0.0
    %352 = vmatpush.msra.mxu0 0.0
    %353 = vmatpush.msra.mxu0 0.0
    %354 = vmatpush.msra.mxu0 0.0
    %355 = vmatpush.msra.mxu0 0.0
    %356 = vmatpush.msra.mxu0 0.0
    %357 = vmatpush.msra.mxu0 0.0
    %358 = vmatpush.msra.mxu0 0.0
    %359 = vmatpush.msra.mxu0 0.0
    %360 = vmatpush.msra.mxu0 0.0
    %361 = vmatpush.msra.mxu0 0.0
    %362 = vmatpush.msra.mxu0 0.0
    %363 = vmatpush.msra.mxu0 %v251
    %364 = vmatpush.msra.mxu0 %v250
    %365 = vmatmul.f32.gmra.mxu0 %v347
    %v366 = vpop.f32.mrf.mxu0
    %v367 = vadd.f32 %v263, %v366
    %368 = vdwg.mxu0
    %v369 = vadd.f32 %v345, %v367
    %v370 = vxor.u32 %v369, 2147483648
    %v371 = vmul.f32 %v370, 1.442695
    %v372 = vpow.pop %v371
    %v373 = vadd.f32 %v372, 1.0
    %v374 = vrcp.pop %v373
    %v375 = vmul.f32 %v373, %v374
    %v376 = vsub.f32 1.0, %v375
    %v377 = vmul.f32 %v374, %v376
    %v378 = vadd.f32 %v374, %v377
    %vm379 = vweird.f32 %v373
    %vm380 = vweird.f32 %v374
    %vm381 = vmor %vm379, %vm380
    %v382 = vsel %vm381, %v374, %v378
    %v383 = vand.u32 2147483647, %v373
    %vm384 = vcmp.eq.f32.partialorder %v383, 8.507059e+37
    %v385 = vand.u32 %v373, 2147483648
    %v386 = vor.u32 1.1754944e-38, %v385
    %v387 = vsel %vm384, %v386, %v382
    %v388 = vmul.f32 1.0, %v387
    %390 = vrot.lane.b32.xlu0 %v367, 96
    %v391 = vpop.permute.xlu0 %390
    %v393 = vmul.f32 %v388, %v391
    %395 = vrot.lane.b32.xlu0 %v393, 32
    %v396 = vpop.permute.xlu0 %395
    %v398 = vadd.f32 %v345, %v396
    %v399 = vtanh.pop %v398
    %v400 = vsub.f32 1.0, %v388
    %402 = vrot.lane.b32.xlu0 %v399, 112
    %v403 = vpop.permute.xlu0 %402
    %v405 = vmul.f32 %v400, %v403
    %v406 = vmul.f32 %v388, %v333
    %v407 = vadd.f32 %v405, %v406
    %v408 = vsel %vm346, 1, 0
    %409 = vset.pattern.permute.xlu0 0
    %410 = vperm.xlu0 %409, %v408
    %v411 = vpop.permute.xlu0 %410
    %vm412 = vcmp.eq.s32.totalorder %v411, 1
    %v413 = vsel %vm412, %v407, 0.0
    %415 = vrot.lane.b32.xlu0 %v413, 112
    %v416 = vpop.permute.xlu0 %415
    %418 = vst.msk [vmem:[#allocation2 + $0x1] sm:$0x1] %vm338, %v416
    %419 = vst.msk [vmem:[#allocation2 + $0x8] sm:$0x2] %vm340, %v416
    %v420 = vrot.slane %v214, 2
    %v422 = vrot.slane %v217, 1
    %v424 = vsel %vm259, %v420, %v422
    %vm425 = vcmp.gt.s32.totalorder %v178, 2
    %v426 = vsel %vm265, %v416, 0
    %428 = vmatpush.msra.mxu0 0.0
    %429 = vmatpush.msra.mxu0 0.0
    %430 = vmatpush.msra.mxu0 0.0
    %431 = vmatpush.msra.mxu0 0.0
    %432 = vmatpush.msra.mxu0 0.0
    %433 = vmatpush.msra.mxu0 0.0
    %434 = vmatpush.msra.mxu0 0.0
    %435 = vmatpush.msra.mxu0 0.0
    %436 = vmatpush.msra.mxu0 0.0
    %437 = vmatpush.msra.mxu0 0.0
    %438 = vmatpush.msra.mxu0 0.0
    %439 = vmatpush.msra.mxu0 0.0
    %440 = vmatpush.msra.mxu0 0.0
    %441 = vmatpush.msra.mxu0 0.0
    %442 = vmatpush.msra.mxu0 %v251
    %443 = vmatpush.msra.mxu0 %v250
    %444 = vmatmul.f32.gmra.mxu0 %v426
    %v445 = vpop.f32.mrf.mxu0
    %v446 = vadd.f32 %v263, %v445
    %447 = vdwg.mxu0
    %v448 = vadd.f32 %v424, %v446
    %v449 = vxor.u32 %v448, 2147483648
    %v450 = vmul.f32 %v449, 1.442695
    %v451 = vpow.pop %v450
    %v452 = vadd.f32 %v451, 1.0
    %v453 = vrcp.pop %v452
    %v454 = vmul.f32 %v452, %v453
    %v455 = vsub.f32 1.0, %v454
    %v456 = vmul.f32 %v453, %v455
    %v457 = vadd.f32 %v453, %v456
    %vm458 = vweird.f32 %v452
    %vm459 = vweird.f32 %v453
    %vm460 = vmor %vm458, %vm459
    %v461 = vsel %vm460, %v453, %v457
    %v462 = vand.u32 2147483647, %v452
    %vm463 = vcmp.eq.f32.partialorder %v462, 8.507059e+37
    %v464 = vand.u32 %v452, 2147483648
    %v465 = vor.u32 1.1754944e-38, %v464
    %v466 = vsel %vm463, %v465, %v461
    %v467 = vmul.f32 1.0, %v466
    %469 = vrot.lane.b32.xlu0 %v446, 96
    %v470 = vpop.permute.xlu0 %469
    %v472 = vmul.f32 %v467, %v470
    %474 = vrot.lane.b32.xlu0 %v472, 32
    %v475 = vpop.permute.xlu0 %474
    %v477 = vadd.f32 %v424, %v475
    %v478 = vtanh.pop %v477
    %v479 = vsub.f32 1.0, %v467
    %481 = vrot.lane.b32.xlu0 %v478, 112
    %v482 = vpop.permute.xlu0 %481
    %v484 = vmul.f32 %v479, %v482
    %v485 = vmul.f32 %v467, %v413
    %v486 = vadd.f32 %v484, %v485
    %v487 = vsel %vm425, 1, 0
    %488 = vset.pattern.permute.xlu0 0
    %489 = vperm.xlu0 %488, %v487
    %v490 = vpop.permute.xlu0 %489
    %vm491 = vcmp.eq.s32.totalorder %v490, 1
    %v492 = vsel %vm491, %v486, 0.0
    %494 = vrot.lane.b32.xlu0 %v492, 112
    %v495 = vpop.permute.xlu0 %494
    %497 = vst.msk [vmem:[#allocation2 + $0x2] sm:$0x1] %vm338, %v495
    %498 = vst.msk [vmem:[#allocation2 + $0x9] sm:$0x2] %vm340, %v495
    %v499 = vrot.slane %v214, 3
    %v501 = vrot.slane %v217, 2
    %v503 = vsel %vm259, %v499, %v501
    %vm504 = vcmp.gt.s32.totalorder %v178, 3
    %v505 = vsel %vm265, %v495, 0
    %507 = vmatpush.msra.mxu0 0.0
    %508 = vmatpush.msra.mxu0 0.0
    %509 = vmatpush.msra.mxu0 0.0
    %510 = vmatpush.msra.mxu0 0.0
    %511 = vmatpush.msra.mxu0 0.0
    %512 = vmatpush.msra.mxu0 0.0
    %513 = vmatpush.msra.mxu0 0.0
    %514 = vmatpush.msra.mxu0 0.0
    %515 = vmatpush.msra.mxu0 0.0
    %516 = vmatpush.msra.mxu0 0.0
    %517 = vmatpush.msra.mxu0 0.0
    %518 = vmatpush.msra.mxu0 0.0
    %519 = vmatpush.msra.mxu0 0.0
    %520 = vmatpush.msra.mxu0 0.0
    %521 = vmatpush.msra.mxu0 %v251
    %522 = vmatpush.msra.mxu0 %v250
    %523 = vmatmul.f32.gmra.mxu0 %v505
    %v524 = vpop.f32.mrf.mxu0
    %v525 = vadd.f32 %v263, %v524
    %526 = vdwg.mxu0
    %v527 = vadd.f32 %v503, %v525
    %v528 = vxor.u32 %v527, 2147483648
    %v529 = vmul.f32 %v528, 1.442695
    %v530 = vpow.pop %v529
    %v531 = vadd.f32 %v530, 1.0
    %v532 = vrcp.pop %v531
    %v533 = vmul.f32 %v531, %v532
    %v534 = vsub.f32 1.0, %v533
    %v535 = vmul.f32 %v532, %v534
    %v536 = vadd.f32 %v532, %v535
    %vm537 = vweird.f32 %v531
    %vm538 = vweird.f32 %v532
    %vm539 = vmor %vm537, %vm538
    %v540 = vsel %vm539, %v532, %v536
    %v541 = vand.u32 2147483647, %v531
    %vm542 = vcmp.eq.f32.partialorder %v541, 8.507059e+37
    %v543 = vand.u32 %v531, 2147483648
    %v544 = vor.u32 1.1754944e-38, %v543
    %v545 = vsel %vm542, %v544, %v540
    %v546 = vmul.f32 1.0, %v545
    %548 = vrot.lane.b32.xlu0 %v525, 96
    %v549 = vpop.permute.xlu0 %548
    %v551 = vmul.f32 %v546, %v549
    %553 = vrot.lane.b32.xlu0 %v551, 32
    %v554 = vpop.permute.xlu0 %553
    %v556 = vadd.f32 %v503, %v554
    %v557 = vtanh.pop %v556
    %v558 = vsub.f32 1.0, %v546
    %560 = vrot.lane.b32.xlu0 %v557, 112
    %v561 = vpop.permute.xlu0 %560
    %v563 = vmul.f32 %v558, %v561
    %v564 = vmul.f32 %v546, %v492
    %v565 = vadd.f32 %v563, %v564
    %v566 = vsel %vm504, 1, 0
    %567 = vset.pattern.permute.xlu0 0
    %568 = vperm.xlu0 %567, %v566
    %v569 = vpop.permute.xlu0 %568
    %vm570 = vcmp.eq.s32.totalorder %v569, 1
    %v571 = vsel %vm570, %v565, 0.0
    %573 = vrot.lane.b32.xlu0 %v571, 112
    %v574 = vpop.permute.xlu0 %573
    %576 = vst.msk [vmem:[#allocation2 + $0x3] sm:$0x1] %vm338, %v574
    %577 = vst.msk [vmem:[#allocation2 + $0xa] sm:$0x2] %vm340, %v574
    %v578 = vrot.slane %v214, 4
    %v580 = vrot.slane %v217, 3
    %v582 = vsel %vm259, %v578, %v580
    %vm583 = vcmp.gt.s32.totalorder %v178, 4
    %v584 = vsel %vm265, %v574, 0
    %586 = vmatpush.msra.mxu0 0.0
    %587 = vmatpush.msra.mxu0 0.0
    %588 = vmatpush.msra.mxu0 0.0
    %589 = vmatpush.msra.mxu0 0.0
    %590 = vmatpush.msra.mxu0 0.0
    %591 = vmatpush.msra.mxu0 0.0
    %592 = vmatpush.msra.mxu0 0.0
    %593 = vmatpush.msra.mxu0 0.0
    %594 = vmatpush.msra.mxu0 0.0
    %595 = vmatpush.msra.mxu0 0.0
    %596 = vmatpush.msra.mxu0 0.0
    %597 = vmatpush.msra.mxu0 0.0
    %598 = vmatpush.msra.mxu0 0.0
    %599 = vmatpush.msra.mxu0 0.0
    %600 = vmatpush.msra.mxu0 %v251
    %601 = vmatpush.msra.mxu0 %v250
    %602 = vmatmul.f32.gmra.mxu0 %v584
    %v603 = vpop.f32.mrf.mxu0
    %v604 = vadd.f32 %v263, %v603
    %605 = vdwg.mxu0
    %v606 = vadd.f32 %v582, %v604
    %v607 = vxor.u32 %v606, 2147483648
    %v608 = vmul.f32 %v607, 1.442695
    %v609 = vpow.pop %v608
    %v610 = vadd.f32 %v609, 1.0
    %v611 = vrcp.pop %v610
    %v612 = vmul.f32 %v610, %v611
    %v613 = vsub.f32 1.0, %v612
    %v614 = vmul.f32 %v611, %v613
    %v615 = vadd.f32 %v611, %v614
    %vm616 = vweird.f32 %v610
    %vm617 = vweird.f32 %v611
    %vm618 = vmor %vm616, %vm617
    %v619 = vsel %vm618, %v611, %v615
    %v620 = vand.u32 2147483647, %v610
    %vm621 = vcmp.eq.f32.partialorder %v620, 8.507059e+37
    %v622 = vand.u32 %v610, 2147483648
    %v623 = vor.u32 1.1754944e-38, %v622
    %v624 = vsel %vm621, %v623, %v619
    %v625 = vmul.f32 1.0, %v624
    %627 = vrot.lane.b32.xlu0 %v604, 96
    %v628 = vpop.permute.xlu0 %627
    %v630 = vmul.f32 %v625, %v628
    %632 = vrot.lane.b32.xlu0 %v630, 32
    %v633 = vpop.permute.xlu0 %632
    %v635 = vadd.f32 %v582, %v633
    %v636 = vtanh.pop %v635
    %v637 = vsub.f32 1.0, %v625
    %639 = vrot.lane.b32.xlu0 %v636, 112
    %v640 = vpop.permute.xlu0 %639
    %v642 = vmul.f32 %v637, %v640
    %v643 = vmul.f32 %v625, %v571
    %v644 = vadd.f32 %v642, %v643
    %v645 = vsel %vm583, 1, 0
    %646 = vset.pattern.permute.xlu0 0
    %647 = vperm.xlu0 %646, %v645
    %v648 = vpop.permute.xlu0 %647
    %vm649 = vcmp.eq.s32.totalorder %v648, 1
    %v650 = vsel %vm649, %v644, 0.0
    %652 = vrot.lane.b32.xlu0 %v650, 112
    %v653 = vpop.permute.xlu0 %652
    %655 = vst.msk [vmem:[#allocation2 + $0x4] sm:$0x1] %vm338, %v653
    %656 = vst.msk [vmem:[#allocation2 + $0xb] sm:$0x2] %vm340, %v653
    %v657 = vrot.slane %v214, 5
    %v659 = vrot.slane %v217, 4
    %v661 = vsel %vm259, %v657, %v659
    %vm662 = vcmp.gt.s32.totalorder %v178, 5
    %v663 = vsel %vm265, %v653, 0
    %665 = vmatpush.msra.mxu0 0.0
    %666 = vmatpush.msra.mxu0 0.0
    %667 = vmatpush.msra.mxu0 0.0
    %668 = vmatpush.msra.mxu0 0.0
    %669 = vmatpush.msra.mxu0 0.0
    %670 = vmatpush.msra.mxu0 0.0
    %671 = vmatpush.msra.mxu0 0.0
    %672 = vmatpush.msra.mxu0 0.0
    %673 = vmatpush.msra.mxu0 0.0
    %674 = vmatpush.msra.mxu0 0.0
    %675 = vmatpush.msra.mxu0 0.0
    %676 = vmatpush.msra.mxu0 0.0
    %677 = vmatpush.msra.mxu0 0.0
    %678 = vmatpush.msra.mxu0 0.0
    %679 = vmatpush.msra.mxu0 %v251
    %680 = vmatpush.msra.mxu0 %v250
    %681 = vmatmul.f32.gmra.mxu0 %v663
    %v682 = vpop.f32.mrf.mxu0
    %v683 = vadd.f32 %v263, %v682
    %684 = vdwg.mxu0
    %v685 = vadd.f32 %v661, %v683
    %v686 = vxor.u32 %v685, 2147483648
    %v687 = vmul.f32 %v686, 1.442695
    %v688 = vpow.pop %v687
    %v689 = vadd.f32 %v688, 1.0
    %v690 = vrcp.pop %v689
    %v691 = vmul.f32 %v689, %v690
    %v692 = vsub.f32 1.0, %v691
    %v693 = vmul.f32 %v690, %v692
    %v694 = vadd.f32 %v690, %v693
    %vm695 = vweird.f32 %v689
    %vm696 = vweird.f32 %v690
    %vm697 = vmor %vm695, %vm696
    %v698 = vsel %vm697, %v690, %v694
    %v699 = vand.u32 2147483647, %v689
    %vm700 = vcmp.eq.f32.partialorder %v699, 8.507059e+37
    %v701 = vand.u32 %v689, 2147483648
    %v702 = vor.u32 1.1754944e-38, %v701
    %v703 = vsel %vm700, %v702, %v698
    %v704 = vmul.f32 1.0, %v703
    %706 = vrot.lane.b32.xlu0 %v683, 96
    %v707 = vpop.permute.xlu0 %706
    %v709 = vmul.f32 %v704, %v707
    %711 = vrot.lane.b32.xlu0 %v709, 32
    %v712 = vpop.permute.xlu0 %711
    %v714 = vadd.f32 %v661, %v712
    %v715 = vtanh.pop %v714
    %v716 = vsub.f32 1.0, %v704
    %718 = vrot.lane.b32.xlu0 %v715, 112
    %v719 = vpop.permute.xlu0 %718
    %v721 = vmul.f32 %v716, %v719
    %v722 = vmul.f32 %v704, %v650
    %v723 = vadd.f32 %v721, %v722
    %v724 = vsel %vm662, 1, 0
    %725 = vset.pattern.permute.xlu0 0
    %726 = vperm.xlu0 %725, %v724
    %v727 = vpop.permute.xlu0 %726
    %vm728 = vcmp.eq.s32.totalorder %v727, 1
    %v729 = vsel %vm728, %v723, 0.0
    %731 = vrot.lane.b32.xlu0 %v729, 112
    %v732 = vpop.permute.xlu0 %731
    %734 = vst.msk [vmem:[#allocation2 + $0x5] sm:$0x1] %vm338, %v732
    %735 = vst.msk [vmem:[#allocation2 + $0xc] sm:$0x2] %vm340, %v732
    %v736 = vrot.slane %v214, 6
    %v738 = vrot.slane %v217, 5
    %v740 = vsel %vm259, %v736, %v738
    %vm741 = vcmp.gt.s32.totalorder %v178, 6
    %v742 = vsel %vm265, %v732, 0
    %744 = vmatpush.msra.mxu0 0.0
    %745 = vmatpush.msra.mxu0 0.0
    %746 = vmatpush.msra.mxu0 0.0
    %747 = vmatpush.msra.mxu0 0.0
    %748 = vmatpush.msra.mxu0 0.0
    %749 = vmatpush.msra.mxu0 0.0
    %750 = vmatpush.msra.mxu0 0.0
    %751 = vmatpush.msra.mxu0 0.0
    %752 = vmatpush.msra.mxu0 0.0
    %753 = vmatpush.msra.mxu0 0.0
    %754 = vmatpush.msra.mxu0 0.0
    %755 = vmatpush.msra.mxu0 0.0
    %756 = vmatpush.msra.mxu0 0.0
    %757 = vmatpush.msra.mxu0 0.0
    %758 = vmatpush.msra.mxu0 %v251
    %759 = vmatpush.msra.mxu0 %v250
    %760 = vmatmul.f32.gmra.mxu0 %v742
    %v761 = vpop.f32.mrf.mxu0
    %v762 = vadd.f32 %v263, %v761
    %763 = vdwg.mxu0
    %v764 = vadd.f32 %v740, %v762
    %v765 = vxor.u32 %v764, 2147483648
    %v766 = vmul.f32 %v765, 1.442695
    %v767 = vpow.pop %v766
    %v768 = vadd.f32 %v767, 1.0
    %v769 = vrcp.pop %v768
    %v770 = vmul.f32 %v768, %v769
    %v771 = vsub.f32 1.0, %v770
    %v772 = vmul.f32 %v769, %v771
    %v773 = vadd.f32 %v769, %v772
    %vm774 = vweird.f32 %v768
    %vm775 = vweird.f32 %v769
    %vm776 = vmor %vm774, %vm775
    %v777 = vsel %vm776, %v769, %v773
    %v778 = vand.u32 2147483647, %v768
    %vm779 = vcmp.eq.f32.partialorder %v778, 8.507059e+37
    %v780 = vand.u32 %v768, 2147483648
    %v781 = vor.u32 1.1754944e-38, %v780
    %v782 = vsel %vm779, %v781, %v777
    %v783 = vmul.f32 1.0, %v782
    %785 = vrot.lane.b32.xlu0 %v762, 96
    %v786 = vpop.permute.xlu0 %785
    %v788 = vmul.f32 %v783, %v786
    %790 = vrot.lane.b32.xlu0 %v788, 32
    %v791 = vpop.permute.xlu0 %790
    %v793 = vadd.f32 %v740, %v791
    %v794 = vtanh.pop %v793
    %v795 = vsub.f32 1.0, %v783
    %797 = vrot.lane.b32.xlu0 %v794, 112
    %v798 = vpop.permute.xlu0 %797
    %v800 = vmul.f32 %v795, %v798
    %v801 = vmul.f32 %v783, %v729
    %v802 = vadd.f32 %v800, %v801
    %v803 = vsel %vm741, 1, 0
    %804 = vset.pattern.permute.xlu0 0
    %805 = vperm.xlu0 %804, %v803
    %v806 = vpop.permute.xlu0 %805
    %vm807 = vcmp.eq.s32.totalorder %v806, 1
    %v808 = vsel %vm807, %v802, 0.0
    %810 = vrot.lane.b32.xlu0 %v808, 112
    %v811 = vpop.permute.xlu0 %810
    %813 = vst.msk [vmem:[#allocation2 + $0x6] sm:$0x1] %vm338, %v811
    %814 = vst.msk [vmem:[#allocation2 + $0xd] sm:$0x2] %vm340, %v811
    %v815 = vrot.slane %v214, 7
    %v817 = vrot.slane %v217, 6
    %v819 = vsel %vm259, %v815, %v817
    %vm820 = vcmp.gt.s32.totalorder %v178, 7
    %v821 = vsel %vm265, %v811, 0
    %823 = vmatpush.msra.mxu0 0.0
    %824 = vmatpush.msra.mxu0 0.0
    %825 = vmatpush.msra.mxu0 0.0
    %826 = vmatpush.msra.mxu0 0.0
    %827 = vmatpush.msra.mxu0 0.0
    %828 = vmatpush.msra.mxu0 0.0
    %829 = vmatpush.msra.mxu0 0.0
    %830 = vmatpush.msra.mxu0 0.0
    %831 = vmatpush.msra.mxu0 0.0
    %832 = vmatpush.msra.mxu0 0.0
    %833 = vmatpush.msra.mxu0 0.0
    %834 = vmatpush.msra.mxu0 0.0
    %835 = vmatpush.msra.mxu0 0.0
    %836 = vmatpush.msra.mxu0 0.0
    %837 = vmatpush.msra.mxu0 %v251
    %838 = vmatpush.msra.mxu0 %v250
    %839 = vmatmul.f32.gmra.mxu0 %v821
    %v840 = vpop.f32.mrf.mxu0
    %v841 = vadd.f32 %v263, %v840
    %842 = vdwg.mxu0
    %v843 = vadd.f32 %v819, %v841
    %v844 = vxor.u32 %v843, 2147483648
    %v845 = vmul.f32 %v844, 1.442695
    %v846 = vpow.pop %v845
    %v847 = vadd.f32 %v846, 1.0
    %v848 = vrcp.pop %v847
    %v849 = vmul.f32 %v847, %v848
    %v850 = vsub.f32 1.0, %v849
    %v851 = vmul.f32 %v848, %v850
    %v852 = vadd.f32 %v848, %v851
    %vm853 = vweird.f32 %v847
    %vm854 = vweird.f32 %v848
    %vm855 = vmor %vm853, %vm854
    %v856 = vsel %vm855, %v848, %v852
    %v857 = vand.u32 2147483647, %v847
    %vm858 = vcmp.eq.f32.partialorder %v857, 8.507059e+37
    %v859 = vand.u32 %v847, 2147483648
    %v860 = vor.u32 1.1754944e-38, %v859
    %v861 = vsel %vm858, %v860, %v856
    %v862 = vmul.f32 1.0, %v861
    %864 = vrot.lane.b32.xlu0 %v841, 96
    %v865 = vpop.permute.xlu0 %864
    %v867 = vmul.f32 %v862, %v865
    %869 = vrot.lane.b32.xlu0 %v867, 32
    %v870 = vpop.permute.xlu0 %869
    %v872 = vadd.f32 %v819, %v870
    %v873 = vtanh.pop %v872
    %v874 = vsub.f32 1.0, %v862
    %876 = vrot.lane.b32.xlu0 %v873, 112
    %v877 = vpop.permute.xlu0 %876
    %v879 = vmul.f32 %v874, %v877
    %v880 = vmul.f32 %v862, %v808
    %v881 = vadd.f32 %v879, %v880
    %v882 = vsel %vm820, 1, 0
    %883 = vset.pattern.permute.xlu0 0
    %884 = vperm.xlu0 %883, %v882
    %v885 = vpop.permute.xlu0 %884
    %vm886 = vcmp.eq.s32.totalorder %v885, 1
    %v887 = vsel %vm886, %v881, 0.0
    %889 = vrot.lane.b32.xlu0 %v887, 112
    %v890 = vpop.permute.xlu0 %889
    %892 = vst.msk [vmem:[#allocation2 + $0x7] sm:$0x1] %vm338, %v890
    %893 = vst.msk [vmem:[#allocation2 + $0xe] sm:$0x2] %vm340, %v890
    %v895 = vrot.slane %v245, 7
    %v898 = vrot.slane %v248, 6
    %v900 = vsel %vm259, %v895, %v898
    %v902 = vperm.slane %v255, 0
    %904 = vmatpush.msra.mxu0 0.0
    %905 = vmatpush.msra.mxu0 0.0
    %906 = vmatpush.msra.mxu0 0.0
    %907 = vmatpush.msra.mxu0 0.0
    %908 = vmatpush.msra.mxu0 0.0
    %909 = vmatpush.msra.mxu0 0.0
    %910 = vmatpush.msra.mxu0 0.0
    %911 = vmatpush.msra.mxu0 0.0
    %912 = vmatpush.msra.mxu0 0.0
    %913 = vmatpush.msra.mxu0 0.0
    %914 = vmatpush.msra.mxu0 0.0
    %915 = vmatpush.msra.mxu0 0.0
    %916 = vmatpush.msra.mxu0 0.0
    %917 = vmatpush.msra.mxu0 0.0
    %918 = vmatpush.msra.mxu0 %v254
    %919 = vmatpush.msra.mxu0 %v253
    %920 = vmatmul.f32.gmra.mxu0 %v267
    %v921 = vpop.f32.mrf.mxu0
    %v922 = vadd.f32 %v902, %v921
    %923 = vdwg.mxu0
    %v924 = vadd.f32 %v900, %v922
    %v925 = vxor.u32 %v924, 2147483648
    %v926 = vmul.f32 %v925, 1.442695
    %v927 = vpow.pop %v926
    %v928 = vadd.f32 %v927, 1.0
    %v929 = vrcp.pop %v928
    %v930 = vmul.f32 %v928, %v929
    %v931 = vsub.f32 1.0, %v930
    %v932 = vmul.f32 %v929, %v931
    %v933 = vadd.f32 %v929, %v932
    %vm934 = vweird.f32 %v928
    %vm935 = vweird.f32 %v929
    %vm936 = vmor %vm934, %vm935
    %v937 = vsel %vm936, %v929, %v933
    %v938 = vand.u32 2147483647, %v928
    %vm939 = vcmp.eq.f32.partialorder %v938, 8.507059e+37
    %v940 = vand.u32 %v928, 2147483648
    %v941 = vor.u32 1.1754944e-38, %v940
    %v942 = vsel %vm939, %v941, %v937
    %v943 = vmul.f32 1.0, %v942
    %945 = vrot.lane.b32.xlu0 %v922, 96
    %v946 = vpop.permute.xlu0 %945
    %v948 = vmul.f32 %v943, %v946
    %950 = vrot.lane.b32.xlu0 %v948, 32
    %v951 = vpop.permute.xlu0 %950
    %v953 = vadd.f32 %v900, %v951
    %v954 = vtanh.pop %v953
    %v955 = vsub.f32 1.0, %v943
    %957 = vrot.lane.b32.xlu0 %v954, 112
    %v958 = vpop.permute.xlu0 %957
    %v960 = vmul.f32 %v955, %v958
    %v961 = vmul.f32 %v943, 0.0
    %v962 = vadd.f32 %v960, %v961
    %v963 = vsel %vm886, %v962, 0.0
    %vm964 = vcmask 254080
    %965 = vst.msk [vmem:[#allocation2 + $0x7] sm:$0x1] %vm964, %v963
    %vm966 = vcmask 255105
    %967 = vst.msk [vmem:[#allocation2 + $0xe] sm:$0x2] %vm966, %v963
    %v968 = vrot.slane %v245, 6
    %v970 = vrot.slane %v248, 5
    %v972 = vsel %vm259, %v968, %v970
    %974 = vrot.lane.b32.xlu0 %v963, 112
    %v975 = vpop.permute.xlu0 %974
    %v976 = vsel %vm265, %v975, 0
    %978 = vmatpush.msra.mxu0 0.0
    %979 = vmatpush.msra.mxu0 0.0
    %980 = vmatpush.msra.mxu0 0.0
    %981 = vmatpush.msra.mxu0 0.0
    %982 = vmatpush.msra.mxu0 0.0
    %983 = vmatpush.msra.mxu0 0.0
    %984 = vmatpush.msra.mxu0 0.0
    %985 = vmatpush.msra.mxu0 0.0
    %986 = vmatpush.msra.mxu0 0.0
    %987 = vmatpush.msra.mxu0 0.0
    %988 = vmatpush.msra.mxu0 0.0
    %989 = vmatpush.msra.mxu0 0.0
    %990 = vmatpush.msra.mxu0 0.0
    %991 = vmatpush.msra.mxu0 0.0
    %992 = vmatpush.msra.mxu0 %v254
    %993 = vmatpush.msra.mxu0 %v253
    %994 = vmatmul.f32.gmra.mxu0 %v976
    %v995 = vpop.f32.mrf.mxu0
    %v996 = vadd.f32 %v902, %v995
    %997 = vdwg.mxu0
    %v998 = vadd.f32 %v972, %v996
    %v999 = vxor.u32 %v998, 2147483648
    %v1000 = vmul.f32 %v999, 1.442695
    %v1001 = vpow.pop %v1000
    %v1002 = vadd.f32 %v1001, 1.0
    %v1003 = vrcp.pop %v1002
    %v1004 = vmul.f32 %v1002, %v1003
    %v1005 = vsub.f32 1.0, %v1004
    %v1006 = vmul.f32 %v1003, %v1005
    %v1007 = vadd.f32 %v1003, %v1006
    %vm1008 = vweird.f32 %v1002
    %vm1009 = vweird.f32 %v1003
    %vm1010 = vmor %vm1008, %vm1009
    %v1011 = vsel %vm1010, %v1003, %v1007
    %v1012 = vand.u32 2147483647, %v1002
    %vm1013 = vcmp.eq.f32.partialorder %v1012, 8.507059e+37
    %v1014 = vand.u32 %v1002, 2147483648
    %v1015 = vor.u32 1.1754944e-38, %v1014
    %v1016 = vsel %vm1013, %v1015, %v1011
    %v1017 = vmul.f32 1.0, %v1016
    %1019 = vrot.lane.b32.xlu0 %v996, 96
    %v1020 = vpop.permute.xlu0 %1019
    %v1022 = vmul.f32 %v1017, %v1020
    %1024 = vrot.lane.b32.xlu0 %v1022, 32
    %v1025 = vpop.permute.xlu0 %1024
    %v1027 = vadd.f32 %v972, %v1025
    %v1028 = vtanh.pop %v1027
    %v1029 = vsub.f32 1.0, %v1017
    %1031 = vrot.lane.b32.xlu0 %v1028, 112
    %v1032 = vpop.permute.xlu0 %1031
    %v1034 = vmul.f32 %v1029, %v1032
    %v1035 = vmul.f32 %v1017, %v963
    %v1036 = vadd.f32 %v1034, %v1035
    %v1037 = vsel %vm807, %v1036, 0.0
    %1038 = vst.msk [vmem:[#allocation2 + $0x6] sm:$0x1] %vm964, %v1037
    %1039 = vst.msk [vmem:[#allocation2 + $0xd] sm:$0x2] %vm966, %v1037
    %v1040 = vrot.slane %v245, 5
    %v1042 = vrot.slane %v248, 4
    %v1044 = vsel %vm259, %v1040, %v1042
    %1046 = vrot.lane.b32.xlu0 %v1037, 112
    %v1047 = vpop.permute.xlu0 %1046
    %v1048 = vsel %vm265, %v1047, 0
    %1050 = vmatpush.msra.mxu0 0.0
    %1051 = vmatpush.msra.mxu0 0.0
    %1052 = vmatpush.msra.mxu0 0.0
    %1053 = vmatpush.msra.mxu0 0.0
    %1054 = vmatpush.msra.mxu0 0.0
    %1055 = vmatpush.msra.mxu0 0.0
    %1056 = vmatpush.msra.mxu0 0.0
    %1057 = vmatpush.msra.mxu0 0.0
    %1058 = vmatpush.msra.mxu0 0.0
    %1059 = vmatpush.msra.mxu0 0.0
    %1060 = vmatpush.msra.mxu0 0.0
    %1061 = vmatpush.msra.mxu0 0.0
    %1062 = vmatpush.msra.mxu0 0.0
    %1063 = vmatpush.msra.mxu0 0.0
    %1064 = vmatpush.msra.mxu0 %v254
    %1065 = vmatpush.msra.mxu0 %v253
    %1066 = vmatmul.f32.gmra.mxu0 %v1048
    %v1067 = vpop.f32.mrf.mxu0
    %v1068 = vadd.f32 %v902, %v1067
    %1069 = vdwg.mxu0
    %v1070 = vadd.f32 %v1044, %v1068
    %v1071 = vxor.u32 %v1070, 2147483648
    %v1072 = vmul.f32 %v1071, 1.442695
    %v1073 = vpow.pop %v1072
    %v1074 = vadd.f32 %v1073, 1.0
    %v1075 = vrcp.pop %v1074
    %v1076 = vmul.f32 %v1074, %v1075
    %v1077 = vsub.f32 1.0, %v1076
    %v1078 = vmul.f32 %v1075, %v1077
    %v1079 = vadd.f32 %v1075, %v1078
    %vm1080 = vweird.f32 %v1074
    %vm1081 = vweird.f32 %v1075
    %vm1082 = vmor %vm1080, %vm1081
    %v1083 = vsel %vm1082, %v1075, %v1079
    %v1084 = vand.u32 2147483647, %v1074
    %vm1085 = vcmp.eq.f32.partialorder %v1084, 8.507059e+37
    %v1086 = vand.u32 %v1074, 2147483648
    %v1087 = vor.u32 1.1754944e-38, %v1086
    %v1088 = vsel %vm1085, %v1087, %v1083
    %v1089 = vmul.f32 1.0, %v1088
    %1091 = vrot.lane.b32.xlu0 %v1068, 96
    %v1092 = vpop.permute.xlu0 %1091
    %v1094 = vmul.f32 %v1089, %v1092
    %1096 = vrot.lane.b32.xlu0 %v1094, 32
    %v1097 = vpop.permute.xlu0 %1096
    %v1099 = vadd.f32 %v1044, %v1097
    %v1100 = vtanh.pop %v1099
    %v1101 = vsub.f32 1.0, %v1089
    %1103 = vrot.lane.b32.xlu0 %v1100, 112
    %v1104 = vpop.permute.xlu0 %1103
    %v1106 = vmul.f32 %v1101, %v1104
    %v1107 = vmul.f32 %v1089, %v1037
    %v1108 = vadd.f32 %v1106, %v1107
    %v1109 = vsel %vm728, %v1108, 0.0
    %1110 = vst.msk [vmem:[#allocation2 + $0x5] sm:$0x1] %vm964, %v1109
    %1111 = vst.msk [vmem:[#allocation2 + $0xc] sm:$0x2] %vm966, %v1109
    %v1112 = vrot.slane %v245, 4
    %v1114 = vrot.slane %v248, 3
    %v1116 = vsel %vm259, %v1112, %v1114
    %1118 = vrot.lane.b32.xlu0 %v1109, 112
    %v1119 = vpop.permute.xlu0 %1118
    %v1120 = vsel %vm265, %v1119, 0
    %1122 = vmatpush.msra.mxu0 0.0
    %1123 = vmatpush.msra.mxu0 0.0
    %1124 = vmatpush.msra.mxu0 0.0
    %1125 = vmatpush.msra.mxu0 0.0
    %1126 = vmatpush.msra.mxu0 0.0
    %1127 = vmatpush.msra.mxu0 0.0
    %1128 = vmatpush.msra.mxu0 0.0
    %1129 = vmatpush.msra.mxu0 0.0
    %1130 = vmatpush.msra.mxu0 0.0
    %1131 = vmatpush.msra.mxu0 0.0
    %1132 = vmatpush.msra.mxu0 0.0
    %1133 = vmatpush.msra.mxu0 0.0
    %1134 = vmatpush.msra.mxu0 0.0
    %1135 = vmatpush.msra.mxu0 0.0
    %1136 = vmatpush.msra.mxu0 %v254
    %1137 = vmatpush.msra.mxu0 %v253
    %1138 = vmatmul.f32.gmra.mxu0 %v1120
    %v1139 = vpop.f32.mrf.mxu0
    %v1140 = vadd.f32 %v902, %v1139
    %1141 = vdwg.mxu0
    %v1142 = vadd.f32 %v1116, %v1140
    %v1143 = vxor.u32 %v1142, 2147483648
    %v1144 = vmul.f32 %v1143, 1.442695
    %v1145 = vpow.pop %v1144
    %v1146 = vadd.f32 %v1145, 1.0
    %v1147 = vrcp.pop %v1146
    %v1148 = vmul.f32 %v1146, %v1147
    %v1149 = vsub.f32 1.0, %v1148
    %v1150 = vmul.f32 %v1147, %v1149
    %v1151 = vadd.f32 %v1147, %v1150
    %vm1152 = vweird.f32 %v1146
    %vm1153 = vweird.f32 %v1147
    %vm1154 = vmor %vm1152, %vm1153
    %v1155 = vsel %vm1154, %v1147, %v1151
    %v1156 = vand.u32 2147483647, %v1146
    %vm1157 = vcmp.eq.f32.partialorder %v1156, 8.507059e+37
    %v1158 = vand.u32 %v1146, 2147483648
    %v1159 = vor.u32 1.1754944e-38, %v1158
    %v1160 = vsel %vm1157, %v1159, %v1155
    %v1161 = vmul.f32 1.0, %v1160
    %1163 = vrot.lane.b32.xlu0 %v1140, 96
    %v1164 = vpop.permute.xlu0 %1163
    %v1166 = vmul.f32 %v1161, %v1164
    %1168 = vrot.lane.b32.xlu0 %v1166, 32
    %v1169 = vpop.permute.xlu0 %1168
    %v1171 = vadd.f32 %v1116, %v1169
    %v1172 = vtanh.pop %v1171
    %v1173 = vsub.f32 1.0, %v1161
    %1175 = vrot.lane.b32.xlu0 %v1172, 112
    %v1176 = vpop.permute.xlu0 %1175
    %v1178 = vmul.f32 %v1173, %v1176
    %v1179 = vmul.f32 %v1161, %v1109
    %v1180 = vadd.f32 %v1178, %v1179
    %v1181 = vsel %vm649, %v1180, 0.0
    %1182 = vst.msk [vmem:[#allocation2 + $0x4] sm:$0x1] %vm964, %v1181
    %1183 = vst.msk [vmem:[#allocation2 + $0xb] sm:$0x2] %vm966, %v1181
    %v1184 = vrot.slane %v245, 3
    %v1186 = vrot.slane %v248, 2
    %v1188 = vsel %vm259, %v1184, %v1186
    %1190 = vrot.lane.b32.xlu0 %v1181, 112
    %v1191 = vpop.permute.xlu0 %1190
    %v1192 = vsel %vm265, %v1191, 0
    %1194 = vmatpush.msra.mxu0 0.0
    %1195 = vmatpush.msra.mxu0 0.0
    %1196 = vmatpush.msra.mxu0 0.0
    %1197 = vmatpush.msra.mxu0 0.0
    %1198 = vmatpush.msra.mxu0 0.0
    %1199 = vmatpush.msra.mxu0 0.0
    %1200 = vmatpush.msra.mxu0 0.0
    %1201 = vmatpush.msra.mxu0 0.0
    %1202 = vmatpush.msra.mxu0 0.0
    %1203 = vmatpush.msra.mxu0 0.0
    %1204 = vmatpush.msra.mxu0 0.0
    %1205 = vmatpush.msra.mxu0 0.0
    %1206 = vmatpush.msra.mxu0 0.0
    %1207 = vmatpush.msra.mxu0 0.0
    %1208 = vmatpush.msra.mxu0 %v254
    %1209 = vmatpush.msra.mxu0 %v253
    %1210 = vmatmul.f32.gmra.mxu0 %v1192
    %v1211 = vpop.f32.mrf.mxu0
    %v1212 = vadd.f32 %v902, %v1211
    %1213 = vdwg.mxu0
    %v1214 = vadd.f32 %v1188, %v1212
    %v1215 = vxor.u32 %v1214, 2147483648
    %v1216 = vmul.f32 %v1215, 1.442695
    %v1217 = vpow.pop %v1216
    %v1218 = vadd.f32 %v1217, 1.0
    %v1219 = vrcp.pop %v1218
    %v1220 = vmul.f32 %v1218, %v1219
    %v1221 = vsub.f32 1.0, %v1220
    %v1222 = vmul.f32 %v1219, %v1221
    %v1223 = vadd.f32 %v1219, %v1222
    %vm1224 = vweird.f32 %v1218
    %vm1225 = vweird.f32 %v1219
    %vm1226 = vmor %vm1224, %vm1225
    %v1227 = vsel %vm1226, %v1219, %v1223
    %v1228 = vand.u32 2147483647, %v1218
    %vm1229 = vcmp.eq.f32.partialorder %v1228, 8.507059e+37
    %v1230 = vand.u32 %v1218, 2147483648
    %v1231 = vor.u32 1.1754944e-38, %v1230
    %v1232 = vsel %vm1229, %v1231, %v1227
    %v1233 = vmul.f32 1.0, %v1232
    %1235 = vrot.lane.b32.xlu0 %v1212, 96
    %v1236 = vpop.permute.xlu0 %1235
    %v1238 = vmul.f32 %v1233, %v1236
    %1240 = vrot.lane.b32.xlu0 %v1238, 32
    %v1241 = vpop.permute.xlu0 %1240
    %v1243 = vadd.f32 %v1188, %v1241
    %v1244 = vtanh.pop %v1243
    %v1245 = vsub.f32 1.0, %v1233
    %1247 = vrot.lane.b32.xlu0 %v1244, 112
    %v1248 = vpop.permute.xlu0 %1247
    %v1250 = vmul.f32 %v1245, %v1248
    %v1251 = vmul.f32 %v1233, %v1181
    %v1252 = vadd.f32 %v1250, %v1251
    %v1253 = vsel %vm570, %v1252, 0.0
    %1254 = vst.msk [vmem:[#allocation2 + $0x3] sm:$0x1] %vm964, %v1253
    %1255 = vst.msk [vmem:[#allocation2 + $0xa] sm:$0x2] %vm966, %v1253
    %v1256 = vrot.slane %v245, 2
    %v1258 = vrot.slane %v248, 1
    %v1260 = vsel %vm259, %v1256, %v1258
    %1262 = vrot.lane.b32.xlu0 %v1253, 112
    %v1263 = vpop.permute.xlu0 %1262
    %v1264 = vsel %vm265, %v1263, 0
    %1266 = vmatpush.msra.mxu0 0.0
    %1267 = vmatpush.msra.mxu0 0.0
    %1268 = vmatpush.msra.mxu0 0.0
    %1269 = vmatpush.msra.mxu0 0.0
    %1270 = vmatpush.msra.mxu0 0.0
    %1271 = vmatpush.msra.mxu0 0.0
    %1272 = vmatpush.msra.mxu0 0.0
    %1273 = vmatpush.msra.mxu0 0.0
    %1274 = vmatpush.msra.mxu0 0.0
    %1275 = vmatpush.msra.mxu0 0.0
    %1276 = vmatpush.msra.mxu0 0.0
    %1277 = vmatpush.msra.mxu0 0.0
    %1278 = vmatpush.msra.mxu0 0.0
    %1279 = vmatpush.msra.mxu0 0.0
    %1280 = vmatpush.msra.mxu0 %v254
    %1281 = vmatpush.msra.mxu0 %v253
    %1282 = vmatmul.f32.gmra.mxu0 %v1264
    %v1283 = vpop.f32.mrf.mxu0
    %v1284 = vadd.f32 %v902, %v1283
    %1285 = vdwg.mxu0
    %v1286 = vadd.f32 %v1260, %v1284
    %v1287 = vxor.u32 %v1286, 2147483648
    %v1288 = vmul.f32 %v1287, 1.442695
    %v1289 = vpow.pop %v1288
    %v1290 = vadd.f32 %v1289, 1.0
    %v1291 = vrcp.pop %v1290
    %v1292 = vmul.f32 %v1290, %v1291
    %v1293 = vsub.f32 1.0, %v1292
    %v1294 = vmul.f32 %v1291, %v1293
    %v1295 = vadd.f32 %v1291, %v1294
    %vm1296 = vweird.f32 %v1290
    %vm1297 = vweird.f32 %v1291
    %vm1298 = vmor %vm1296, %vm1297
    %v1299 = vsel %vm1298, %v1291, %v1295
    %v1300 = vand.u32 2147483647, %v1290
    %vm1301 = vcmp.eq.f32.partialorder %v1300, 8.507059e+37
    %v1302 = vand.u32 %v1290, 2147483648
    %v1303 = vor.u32 1.1754944e-38, %v1302
    %v1304 = vsel %vm1301, %v1303, %v1299
    %v1305 = vmul.f32 1.0, %v1304
    %1307 = vrot.lane.b32.xlu0 %v1284, 96
    %v1308 = vpop.permute.xlu0 %1307
    %v1310 = vmul.f32 %v1305, %v1308
    %1312 = vrot.lane.b32.xlu0 %v1310, 32
    %v1313 = vpop.permute.xlu0 %1312
    %v1315 = vadd.f32 %v1260, %v1313
    %v1316 = vtanh.pop %v1315
    %v1317 = vsub.f32 1.0, %v1305
    %1319 = vrot.lane.b32.xlu0 %v1316, 112
    %v1320 = vpop.permute.xlu0 %1319
    %v1322 = vmul.f32 %v1317, %v1320
    %v1323 = vmul.f32 %v1305, %v1253
    %v1324 = vadd.f32 %v1322, %v1323
    %v1325 = vsel %vm491, %v1324, 0.0
    %1326 = vst.msk [vmem:[#allocation2 + $0x2] sm:$0x1] %vm964, %v1325
    %1327 = vst.msk [vmem:[#allocation2 + $0x9] sm:$0x2] %vm966, %v1325
    %v1328 = vrot.slane %v245, 1
    %v1330 = vsel %vm259, %v1328, %v248
    %1332 = vrot.lane.b32.xlu0 %v1325, 112
    %v1333 = vpop.permute.xlu0 %1332
    %v1334 = vsel %vm265, %v1333, 0
    %1336 = vmatpush.msra.mxu0 0.0
    %1337 = vmatpush.msra.mxu0 0.0
    %1338 = vmatpush.msra.mxu0 0.0
    %1339 = vmatpush.msra.mxu0 0.0
    %1340 = vmatpush.msra.mxu0 0.0
    %1341 = vmatpush.msra.mxu0 0.0
    %1342 = vmatpush.msra.mxu0 0.0
    %1343 = vmatpush.msra.mxu0 0.0
    %1344 = vmatpush.msra.mxu0 0.0
    %1345 = vmatpush.msra.mxu0 0.0
    %1346 = vmatpush.msra.mxu0 0.0
    %1347 = vmatpush.msra.mxu0 0.0
    %1348 = vmatpush.msra.mxu0 0.0
    %1349 = vmatpush.msra.mxu0 0.0
    %1350 = vmatpush.msra.mxu0 %v254
    %1351 = vmatpush.msra.mxu0 %v253
    %1352 = vmatmul.f32.gmra.mxu0 %v1334
    %v1353 = vpop.f32.mrf.mxu0
    %v1354 = vadd.f32 %v902, %v1353
    %1355 = vdwg.mxu0
    %v1356 = vadd.f32 %v1330, %v1354
    %v1357 = vxor.u32 %v1356, 2147483648
    %v1358 = vmul.f32 %v1357, 1.442695
    %v1359 = vpow.pop %v1358
    %v1360 = vadd.f32 %v1359, 1.0
    %v1361 = vrcp.pop %v1360
    %v1362 = vmul.f32 %v1360, %v1361
    %v1363 = vsub.f32 1.0, %v1362
    %v1364 = vmul.f32 %v1361, %v1363
    %v1365 = vadd.f32 %v1361, %v1364
    %vm1366 = vweird.f32 %v1360
    %vm1367 = vweird.f32 %v1361
    %vm1368 = vmor %vm1366, %vm1367
    %v1369 = vsel %vm1368, %v1361, %v1365
    %v1370 = vand.u32 2147483647, %v1360
    %vm1371 = vcmp.eq.f32.partialorder %v1370, 8.507059e+37
    %v1372 = vand.u32 %v1360, 2147483648
    %v1373 = vor.u32 1.1754944e-38, %v1372
    %v1374 = vsel %vm1371, %v1373, %v1369
    %v1375 = vmul.f32 1.0, %v1374
    %1377 = vrot.lane.b32.xlu0 %v1354, 96
    %v1378 = vpop.permute.xlu0 %1377
    %v1380 = vmul.f32 %v1375, %v1378
    %1382 = vrot.lane.b32.xlu0 %v1380, 32
    %v1383 = vpop.permute.xlu0 %1382
    %v1385 = vadd.f32 %v1330, %v1383
    %v1386 = vtanh.pop %v1385
    %v1387 = vsub.f32 1.0, %v1375
    %1389 = vrot.lane.b32.xlu0 %v1386, 112
    %v1390 = vpop.permute.xlu0 %1389
    %v1392 = vmul.f32 %v1387, %v1390
    %v1393 = vmul.f32 %v1375, %v1325
    %v1394 = vadd.f32 %v1392, %v1393
    %v1395 = vsel %vm412, %v1394, 0.0
    %1396 = vst.msk [vmem:[#allocation2 + $0x1] sm:$0x1] %vm964, %v1395
    %1397 = vst.msk [vmem:[#allocation2 + $0x8] sm:$0x2] %vm966, %v1395
    %v1398 = vrot.slane %v248, 7
    %v1400 = vsel %vm259, %v245, %v1398
    %1402 = vrot.lane.b32.xlu0 %v1395, 112
    %v1403 = vpop.permute.xlu0 %1402
    %v1404 = vsel %vm265, %v1403, 0
    %1406 = vmatpush.msra.mxu0 0.0
    %1407 = vmatpush.msra.mxu0 0.0
    %1408 = vmatpush.msra.mxu0 0.0
    %1409 = vmatpush.msra.mxu0 0.0
    %1410 = vmatpush.msra.mxu0 0.0
    %1411 = vmatpush.msra.mxu0 0.0
    %1412 = vmatpush.msra.mxu0 0.0
    %1413 = vmatpush.msra.mxu0 0.0
    %1414 = vmatpush.msra.mxu0 0.0
    %1415 = vmatpush.msra.mxu0 0.0
    %1416 = vmatpush.msra.mxu0 0.0
    %1417 = vmatpush.msra.mxu0 0.0
    %1418 = vmatpush.msra.mxu0 0.0
    %1419 = vmatpush.msra.mxu0 0.0
    %1420 = vmatpush.msra.mxu0 %v254
    %1421 = vmatpush.msra.mxu0 %v253
    %1422 = vmatmul.f32.gmra.mxu0 %v1404
    %v1423 = vpop.f32.mrf.mxu0
    %v1424 = vadd.f32 %v902, %v1423
    %1425 = vdwg.mxu0
    %v1426 = vadd.f32 %v1400, %v1424
    %v1427 = vxor.u32 %v1426, 2147483648
    %v1428 = vmul.f32 %v1427, 1.442695
    %v1429 = vpow.pop %v1428
    %v1430 = vadd.f32 %v1429, 1.0
    %v1431 = vrcp.pop %v1430
    %v1432 = vmul.f32 %v1430, %v1431
    %v1433 = vsub.f32 1.0, %v1432
    %v1434 = vmul.f32 %v1431, %v1433
    %v1435 = vadd.f32 %v1431, %v1434
    %vm1436 = vweird.f32 %v1430
    %vm1437 = vweird.f32 %v1431
    %vm1438 = vmor %vm1436, %vm1437
    %v1439 = vsel %vm1438, %v1431, %v1435
    %v1440 = vand.u32 2147483647, %v1430
    %vm1441 = vcmp.eq.f32.partialorder %v1440, 8.507059e+37
    %v1442 = vand.u32 %v1430, 2147483648
    %v1443 = vor.u32 1.1754944e-38, %v1442
    %v1444 = vsel %vm1441, %v1443, %v1439
    %v1445 = vmul.f32 1.0, %v1444
    %1447 = vrot.lane.b32.xlu0 %v1424, 96
    %v1448 = vpop.permute.xlu0 %1447
    %v1450 = vmul.f32 %v1445, %v1448
    %1452 = vrot.lane.b32.xlu0 %v1450, 32
    %v1453 = vpop.permute.xlu0 %1452
    %v1455 = vadd.f32 %v1400, %v1453
    %v1456 = vtanh.pop %v1455
    %v1457 = vsub.f32 1.0, %v1445
    %1459 = vrot.lane.b32.xlu0 %v1456, 112
    %v1460 = vpop.permute.xlu0 %1459
    %v1462 = vmul.f32 %v1457, %v1460
    %v1463 = vmul.f32 %v1445, %v1395
    %v1464 = vadd.f32 %v1462, %v1463
    %v1465 = vsel %vm332, %v1464, 0.0
    %1466 = vst.msk [vmem:[#allocation2] sm:$0x1] %vm964, %v1465
    %1467 = vst.msk [vmem:[#allocation2 + $0x7] sm:$0x2] %vm966, %v1465
    %v1468 = vld [vmem:[#allocation2] sm:$0xff]
    %v1469 = vld [vmem:[#allocation2 + $0x8] sm:$0xff]
    %v1470 = vld [vmem:[#allocation9] sm:$0xff]
    %v1471 = vld [vmem:[#allocation9 + $0x8] sm:$0xff]
    %v1472 = vld [vmem:[#allocation9 + $0x10] sm:$0xff]
    %v1473 = vld [vmem:[#allocation9 + $0x18] sm:$0xff]
    %v1474 = vld [vmem:[#allocation11] sm:$0x1]
    %v1476 = vperm.slane %v1474, 0
    %v1479 = vsel %vm189, %v1468, 0
    %v1482 = vsel %vm189, %v1469, 0
    %1484 = vmatpush.msra.mxu0 0.0
    %1485 = vmatpush.msra.mxu0 0.0
    %1486 = vmatpush.msra.mxu0 0.0
    %1487 = vmatpush.msra.mxu0 0.0
    %1488 = vmatpush.msra.mxu0 0.0
    %1489 = vmatpush.msra.mxu0 0.0
    %1490 = vmatpush.msra.mxu0 0.0
    %1491 = vmatpush.msra.mxu0 0.0
    %1492 = vmatpush.msra.mxu0 0.0
    %1493 = vmatpush.msra.mxu0 0.0
    %1494 = vmatpush.msra.mxu0 0.0
    %1495 = vmatpush.msra.mxu0 0.0
    %1496 = vmatpush.msra.mxu0 %v1473
    %1497 = vmatpush.msra.mxu0 %v1472
    %1498 = vmatpush.msra.mxu0 %v1471
    %1499 = vmatpush.msra.mxu0 %v1470
    %1500 = vmatmul.f32.gmra.mxu0 %v1479
    %v1501 = vpop.f32.mrf.mxu0
    %v1502 = vadd.f32 %v1476, %v1501
    %1503 = vmatmul.f32.gmra.mxu0 %v1482
    %v1504 = vpop.f32.mrf.mxu0
    %v1505 = vadd.f32 %v1476, %v1504
    %1506 = vdwg.mxu0
    %v1507 = vmul.f32 %v1502, 0.35355338
    %v1508 = vmul.f32 %v1505, 0.35355338
    %1510 = vrot.lane.b32.xlu0 %v1507, 120
    %v1511 = vpop.permute.xlu0 %1510
    %1513 = vrot.lane.b32.xlu0 %v1508, 120
    %v1514 = vpop.permute.xlu0 %1513
    %1515 = vrot.lane.b32.xlu0 %v1507, 112
    %v1516 = vpop.permute.xlu0 %1515
    %1517 = vrot.lane.b32.xlu0 %v1508, 112
    %v1518 = vpop.permute.xlu0 %1517
    %1519 = vrot.lane.b32.xlu0 %v1507, 104
    %v1520 = vpop.permute.xlu0 %1519
    %1521 = vrot.lane.b32.xlu0 %v1508, 104
    %v1522 = vpop.permute.xlu0 %1521
    %1524 = vrot.lane.b32.xlu0 %v1502, 120
    %v1525 = vpop.permute.xlu0 %1524
    %1527 = vrot.lane.b32.xlu0 %v1505, 120
    %v1528 = vpop.permute.xlu0 %1527
    %1529 = vrot.lane.b32.xlu0 %v1502, 112
    %v1530 = vpop.permute.xlu0 %1529
    %1531 = vrot.lane.b32.xlu0 %v1505, 112
    %v1532 = vpop.permute.xlu0 %1531
    %1533 = vrot.lane.b32.xlu0 %v1502, 104
    %v1534 = vpop.permute.xlu0 %1533
    %1535 = vrot.lane.b32.xlu0 %v1505, 104
    %v1536 = vpop.permute.xlu0 %1535
    %1537 = vrot.lane.b32.xlu0 %v1502, 96
    %v1538 = vpop.permute.xlu0 %1537
    %vm1539 = vcmask 64512
    %v1540 = vsel %vm1539, %v1507, 0
    %v1542 = vsel %vm1539, %v1538, 0
    %1544 = vmatpush.xpose.msra.mxu0 0.0
    %1545 = vmatpush.xpose.msra.mxu0 0.0
    %1546 = vmatpush.xpose.msra.mxu0 0.0
    %1547 = vmatpush.xpose.msra.mxu0 0.0
    %1548 = vmatpush.xpose.msra.mxu0 0.0
    %1549 = vmatpush.xpose.msra.mxu0 0.0
    %1550 = vmatpush.xpose.msra.mxu0 0.0
    %1551 = vmatpush.xpose.msra.mxu0 0.0
    %1552 = vmatpush.xpose.msra.mxu0 0.0
    %1553 = vmatpush.xpose.msra.mxu0 0.0
    %1554 = vmatpush.xpose.msra.mxu0 0.0
    %1555 = vmatpush.xpose.msra.mxu0 0.0
    %1556 = vmatpush.xpose.msra.mxu0 0.0
    %1557 = vmatpush.xpose.msra.mxu0 0.0
    %1558 = vmatpush.xpose.msra.mxu0 0.0
    %1559 = vmatpush.xpose.msra.mxu0 %v1542
    %1560 = vmatmul.f32.gmra.mxu0 %v1540
    %v1561 = vpop.f32.mrf.mxu0
    %v1562 = vadd.f32 0.0, %v1561
    %1563 = vdwg.mxu0
    %1564 = vrot.lane.b32.xlu0 %v1505, 96
    %v1565 = vpop.permute.xlu0 %1564
    %v1566 = vsel %vm1539, %v1508, 0
    %v1568 = vsel %vm1539, %v1565, 0
    %1570 = vmatpush.xpose.msra.mxu0 0.0
    %1571 = vmatpush.xpose.msra.mxu0 0.0
    %1572 = vmatpush.xpose.msra.mxu0 0.0
    %1573 = vmatpush.xpose.msra.mxu0 0.0
    %1574 = vmatpush.xpose.msra.mxu0 0.0
    %1575 = vmatpush.xpose.msra.mxu0 0.0
    %1576 = vmatpush.xpose.msra.mxu0 0.0
    %1577 = vmatpush.xpose.msra.mxu0 0.0
    %1578 = vmatpush.xpose.msra.mxu0 0.0
    %1579 = vmatpush.xpose.msra.mxu0 0.0
    %1580 = vmatpush.xpose.msra.mxu0 0.0
    %1581 = vmatpush.xpose.msra.mxu0 0.0
    %1582 = vmatpush.xpose.msra.mxu0 0.0
    %1583 = vmatpush.xpose.msra.mxu0 0.0
    %1584 = vmatpush.xpose.msra.mxu0 0.0
    %1585 = vmatpush.xpose.msra.mxu0 %v1568
    %1586 = vmatmul.f32.gmra.mxu0 %v1566
    %v1587 = vpop.f32.mrf.mxu0
    %v1588 = vadd.f32 0.0, %v1587
    %1589 = vdwg.mxu0
    %1590 = vrot.lane.b32.xlu0 %v1525, 96
    %v1591 = vpop.permute.xlu0 %1590
    %v1592 = vsel %vm1539, %v1511, 0
    %v1594 = vsel %vm1539, %v1591, 0
    %1596 = vmatpush.xpose.msra.mxu0 0.0
    %1597 = vmatpush.xpose.msra.mxu0 0.0
    %1598 = vmatpush.xpose.msra.mxu0 0.0
    %1599 = vmatpush.xpose.msra.mxu0 0.0
    %1600 = vmatpush.xpose.msra.mxu0 0.0
    %1601 = vmatpush.xpose.msra.mxu0 0.0
    %1602 = vmatpush.xpose.msra.mxu0 0.0
    %1603 = vmatpush.xpose.msra.mxu0 0.0
    %1604 = vmatpush.xpose.msra.mxu0 0.0
    %1605 = vmatpush.xpose.msra.mxu0 0.0
    %1606 = vmatpush.xpose.msra.mxu0 0.0
    %1607 = vmatpush.xpose.msra.mxu0 0.0
    %1608 = vmatpush.xpose.msra.mxu0 0.0
    %1609 = vmatpush.xpose.msra.mxu0 0.0
    %1610 = vmatpush.xpose.msra.mxu0 0.0
    %1611 = vmatpush.xpose.msra.mxu0 %v1594
    %1612 = vmatmul.f32.gmra.mxu0 %v1592
    %v1613 = vpop.f32.mrf.mxu0
    %v1614 = vadd.f32 0.0, %v1613
    %1615 = vdwg.mxu0
    %1616 = vrot.lane.b32.xlu0 %v1528, 96
    %v1617 = vpop.permute.xlu0 %1616
    %v1618 = vsel %vm1539, %v1514, 0
    %v1620 = vsel %vm1539, %v1617, 0
    %1622 = vmatpush.xpose.msra.mxu0 0.0
    %1623 = vmatpush.xpose.msra.mxu0 0.0
    %1624 = vmatpush.xpose.msra.mxu0 0.0
    %1625 = vmatpush.xpose.msra.mxu0 0.0
    %1626 = vmatpush.xpose.msra.mxu0 0.0
    %1627 = vmatpush.xpose.msra.mxu0 0.0
    %1628 = vmatpush.xpose.msra.mxu0 0.0
    %1629 = vmatpush.xpose.msra.mxu0 0.0
    %1630 = vmatpush.xpose.msra.mxu0 0.0
    %1631 = vmatpush.xpose.msra.mxu0 0.0
    %1632 = vmatpush.xpose.msra.mxu0 0.0
    %1633 = vmatpush.xpose.msra.mxu0 0.0
    %1634 = vmatpush.xpose.msra.mxu0 0.0
    %1635 = vmatpush.xpose.msra.mxu0 0.0
    %1636 = vmatpush.xpose.msra.mxu0 0.0
    %1637 = vmatpush.xpose.msra.mxu0 %v1620
    %1638 = vmatmul.f32.gmra.mxu0 %v1618
    %v1639 = vpop.f32.mrf.mxu0
    %v1640 = vadd.f32 0.0, %v1639
    %1641 = vdwg.mxu0
    %1642 = vrot.lane.b32.xlu0 %v1530, 96
    %v1643 = vpop.permute.xlu0 %1642
    %v1644 = vsel %vm1539, %v1516, 0
    %v1646 = vsel %vm1539, %v1643, 0
    %1648 = vmatpush.xpose.msra.mxu0 0.0
    %1649 = vmatpush.xpose.msra.mxu0 0.0
    %1650 = vmatpush.xpose.msra.mxu0 0.0
    %1651 = vmatpush.xpose.msra.mxu0 0.0
    %1652 = vmatpush.xpose.msra.mxu0 0.0
    %1653 = vmatpush.xpose.msra.mxu0 0.0
    %1654 = vmatpush.xpose.msra.mxu0 0.0
    %1655 = vmatpush.xpose.msra.mxu0 0.0
    %1656 = vmatpush.xpose.msra.mxu0 0.0
    %1657 = vmatpush.xpose.msra.mxu0 0.0
    %1658 = vmatpush.xpose.msra.mxu0 0.0
    %1659 = vmatpush.xpose.msra.mxu0 0.0
    %1660 = vmatpush.xpose.msra.mxu0 0.0
    %1661 = vmatpush.xpose.msra.mxu0 0.0
    %1662 = vmatpush.xpose.msra.mxu0 0.0
    %1663 = vmatpush.xpose.msra.mxu0 %v1646
    %1664 = vmatmul.f32.gmra.mxu0 %v1644
    %v1665 = vpop.f32.mrf.mxu0
    %v1666 = vadd.f32 0.0, %v1665
    %1667 = vdwg.mxu0
    %1668 = vrot.lane.b32.xlu0 %v1532, 96
    %v1669 = vpop.permute.xlu0 %1668
    %v1670 = vsel %vm1539, %v1518, 0
    %v1672 = vsel %vm1539, %v1669, 0
    %1674 = vmatpush.xpose.msra.mxu0 0.0
    %1675 = vmatpush.xpose.msra.mxu0 0.0
    %1676 = vmatpush.xpose.msra.mxu0 0.0
    %1677 = vmatpush.xpose.msra.mxu0 0.0
    %1678 = vmatpush.xpose.msra.mxu0 0.0
    %1679 = vmatpush.xpose.msra.mxu0 0.0
    %1680 = vmatpush.xpose.msra.mxu0 0.0
    %1681 = vmatpush.xpose.msra.mxu0 0.0
    %1682 = vmatpush.xpose.msra.mxu0 0.0
    %1683 = vmatpush.xpose.msra.mxu0 0.0
    %1684 = vmatpush.xpose.msra.mxu0 0.0
    %1685 = vmatpush.xpose.msra.mxu0 0.0
    %1686 = vmatpush.xpose.msra.mxu0 0.0
    %1687 = vmatpush.xpose.msra.mxu0 0.0
    %1688 = vmatpush.xpose.msra.mxu0 0.0
    %1689 = vmatpush.xpose.msra.mxu0 %v1672
    %1690 = vmatmul.f32.gmra.mxu0 %v1670
    %v1691 = vpop.f32.mrf.mxu0
    %v1692 = vadd.f32 0.0, %v1691
    %1693 = vdwg.mxu0
    %1694 = vrot.lane.b32.xlu0 %v1534, 96
    %v1695 = vpop.permute.xlu0 %1694
    %v1696 = vsel %vm1539, %v1520, 0
    %v1698 = vsel %vm1539, %v1695, 0
    %1700 = vmatpush.xpose.msra.mxu0 0.0
    %1701 = vmatpush.xpose.msra.mxu0 0.0
    %1702 = vmatpush.xpose.msra.mxu0 0.0
    %1703 = vmatpush.xpose.msra.mxu0 0.0
    %1704 = vmatpush.xpose.msra.mxu0 0.0
    %1705 = vmatpush.xpose.msra.mxu0 0.0
    %1706 = vmatpush.xpose.msra.mxu0 0.0
    %1707 = vmatpush.xpose.msra.mxu0 0.0
    %1708 = vmatpush.xpose.msra.mxu0 0.0
    %1709 = vmatpush.xpose.msra.mxu0 0.0
    %1710 = vmatpush.xpose.msra.mxu0 0.0
    %1711 = vmatpush.xpose.msra.mxu0 0.0
    %1712 = vmatpush.xpose.msra.mxu0 0.0
    %1713 = vmatpush.xpose.msra.mxu0 0.0
    %1714 = vmatpush.xpose.msra.mxu0 0.0
    %1715 = vmatpush.xpose.msra.mxu0 %v1698
    %1716 = vmatmul.f32.gmra.mxu0 %v1696
    %v1717 = vpop.f32.mrf.mxu0
    %v1718 = vadd.f32 0.0, %v1717
    %1719 = vdwg.mxu0
    %1720 = vrot.lane.b32.xlu0 %v1536, 96
    %v1721 = vpop.permute.xlu0 %1720
    %v1722 = vsel %vm1539, %v1522, 0
    %v1724 = vsel %vm1539, %v1721, 0
    %1726 = vmatpush.xpose.msra.mxu0 0.0
    %1727 = vmatpush.xpose.msra.mxu0 0.0
    %1728 = vmatpush.xpose.msra.mxu0 0.0
    %1729 = vmatpush.xpose.msra.mxu0 0.0
    %1730 = vmatpush.xpose.msra.mxu0 0.0
    %1731 = vmatpush.xpose.msra.mxu0 0.0
    %1732 = vmatpush.xpose.msra.mxu0 0.0
    %1733 = vmatpush.xpose.msra.mxu0 0.0
    %1734 = vmatpush.xpose.msra.mxu0 0.0
    %1735 = vmatpush.xpose.msra.mxu0 0.0
    %1736 = vmatpush.xpose.msra.mxu0 0.0
    %1737 = vmatpush.xpose.msra.mxu0 0.0
    %1738 = vmatpush.xpose.msra.mxu0 0.0
    %1739 = vmatpush.xpose.msra.mxu0 0.0
    %1740 = vmatpush.xpose.msra.mxu0 0.0
    %1741 = vmatpush.xpose.msra.mxu0 %v1724
    %1742 = vmatmul.f32.gmra.mxu0 %v1722
    %v1743 = vpop.f32.mrf.mxu0
    %v1744 = vadd.f32 0.0, %v1743
    %1745 = vdwg.mxu0
    %v1746 = vsel %vm1539, %v1562, -inf
    %1747 = vmax.xlane.f32.xlu0 %v1746
    %v1748 = vpop.xlane.xlu0 %1747
    %v1749 = vsel %vm1539, %v1588, -inf
    %1750 = vmax.xlane.f32.xlu0 %v1749
    %v1751 = vpop.xlane.xlu0 %1750
    %v1752 = vsel %vm1539, %v1614, -inf
    %1753 = vmax.xlane.f32.xlu0 %v1752
    %v1754 = vpop.xlane.xlu0 %1753
    %v1755 = vsel %vm1539, %v1640, -inf
    %1756 = vmax.xlane.f32.xlu0 %v1755
    %v1757 = vpop.xlane.xlu0 %1756
    %v1758 = vsel %vm1539, %v1666, -inf
    %1759 = vmax.xlane.f32.xlu0 %v1758
    %v1760 = vpop.xlane.xlu0 %1759
    %v1761 = vsel %vm1539, %v1692, -inf
    %1762 = vmax.xlane.f32.xlu0 %v1761
    %v1763 = vpop.xlane.xlu0 %1762
    %v1764 = vsel %vm1539, %v1718, -inf
    %1765 = vmax.xlane.f32.xlu0 %v1764
    %v1766 = vpop.xlane.xlu0 %1765
    %v1767 = vsel %vm1539, %v1744, -inf
    %1768 = vmax.xlane.f32.xlu0 %v1767
    %v1769 = vpop.xlane.xlu0 %1768
    %v1770 = vsub.f32 %v1562, %v1748
    %v1771 = vsub.f32 %v1588, %v1751
    %v1772 = vsub.f32 %v1614, %v1754
    %v1773 = vsub.f32 %v1640, %v1757
    %v1774 = vsub.f32 %v1666, %v1760
    %v1775 = vsub.f32 %v1692, %v1763
    %v1776 = vsub.f32 %v1718, %v1766
    %v1777 = vsub.f32 %v1744, %v1769
    %v1778 = vmul.f32 %v1770, 1.442695
    %v1779 = vpow.pop %v1778
    %v1780 = vmul.f32 %v1771, 1.442695
    %v1781 = vpow.pop %v1780
    %v1782 = vmul.f32 %v1772, 1.442695
    %v1783 = vpow.pop %v1782
    %v1784 = vmul.f32 %v1773, 1.442695
    %v1785 = vpow.pop %v1784
    %v1786 = vmul.f32 %v1774, 1.442695
    %v1787 = vpow.pop %v1786
    %v1788 = vmul.f32 %v1775, 1.442695
    %v1789 = vpow.pop %v1788
    %v1790 = vmul.f32 %v1776, 1.442695
    %v1791 = vpow.pop %v1790
    %v1792 = vmul.f32 %v1777, 1.442695
    %v1793 = vpow.pop %v1792
    %v1794 = vsel %vm1539, %v1779, 0.0
    %1795 = vadd.xlane.f32.xlu0 %v1794
    %v1796 = vpop.xlane.xlu0 %1795
    %v1797 = vsel %vm1539, %v1781, 0.0
    %1798 = vadd.xlane.f32.xlu0 %v1797
    %v1799 = vpop.xlane.xlu0 %1798
    %v1800 = vsel %vm1539, %v1783, 0.0
    %1801 = vadd.xlane.f32.xlu0 %v1800
    %v1802 = vpop.xlane.xlu0 %1801
    %v1803 = vsel %vm1539, %v1785, 0.0
    %1804 = vadd.xlane.f32.xlu0 %v1803
    %v1805 = vpop.xlane.xlu0 %1804
    %v1806 = vsel %vm1539, %v1787, 0.0
    %1807 = vadd.xlane.f32.xlu0 %v1806
    %v1808 = vpop.xlane.xlu0 %1807
    %v1809 = vsel %vm1539, %v1789, 0.0
    %1810 = vadd.xlane.f32.xlu0 %v1809
    %v1811 = vpop.xlane.xlu0 %1810
    %v1812 = vsel %vm1539, %v1791, 0.0
    %1813 = vadd.xlane.f32.xlu0 %v1812
    %v1814 = vpop.xlane.xlu0 %1813
    %v1815 = vsel %vm1539, %v1793, 0.0
    %1816 = vadd.xlane.f32.xlu0 %v1815
    %v1817 = vpop.xlane.xlu0 %1816
    %v1818 = vrcp.pop %v1796
    %v1819 = vrcp.pop %v1799
    %v1820 = vrcp.pop %v1802
    %v1821 = vrcp.pop %v1805
    %v1822 = vrcp.pop %v1808
    %v1823 = vrcp.pop %v1811
    %v1824 = vrcp.pop %v1814
    %v1825 = vrcp.pop %v1817
    %v1826 = vmul.f32 %v1779, %v1818
    %v1827 = vmul.f32 %v1781, %v1819
    %v1828 = vmul.f32 %v1783, %v1820
    %v1829 = vmul.f32 %v1785, %v1821
    %v1830 = vmul.f32 %v1787, %v1822
    %v1831 = vmul.f32 %v1789, %v1823
    %v1832 = vmul.f32 %v1791, %v1824
    %v1833 = vmul.f32 %v1793, %v1825
    %1834 = vrot.lane.b32.xlu0 %v1502, 64
    %v1835 = vpop.permute.xlu0 %1834
    %v1838 = vsel %vm1539, %v1826, 0
    %1840 = vmatpush.msra.mxu0 0.0
    %1841 = vmatpush.msra.mxu0 0.0
    %1842 = vmatpush.msra.mxu0 0.0
    %1843 = vmatpush.msra.mxu0 0.0
    %1844 = vmatpush.msra.mxu0 0.0
    %1845 = vmatpush.msra.mxu0 0.0
    %1846 = vmatpush.msra.mxu0 0.0
    %1847 = vmatpush.msra.mxu0 0.0
    %1848 = vmatpush.msra.mxu0 0.0
    %1849 = vmatpush.msra.mxu0 0.0
    %1850 = vmatpush.msra.mxu0 0.0
    %1851 = vmatpush.msra.mxu0 0.0
    %1852 = vmatpush.msra.mxu0 0.0
    %1853 = vmatpush.msra.mxu0 0.0
    %1854 = vmatpush.msra.mxu0 0.0
    %1855 = vmatpush.msra.mxu0 %v1835
    %1856 = vmatmul.f32.gmra.mxu0 %v1838
    %v1857 = vpop.f32.mrf.mxu0
    %v1858 = vadd.f32 0.0, %v1857
    %1859 = vdwg.mxu0
    %1860 = vrot.lane.b32.xlu0 %v1505, 64
    %v1861 = vpop.permute.xlu0 %1860
    %v1864 = vsel %vm1539, %v1827, 0
    %1866 = vmatpush.msra.mxu0 0.0
    %1867 = vmatpush.msra.mxu0 0.0
    %1868 = vmatpush.msra.mxu0 0.0
    %1869 = vmatpush.msra.mxu0 0.0
    %1870 = vmatpush.msra.mxu0 0.0
    %1871 = vmatpush.msra.mxu0 0.0
    %1872 = vmatpush.msra.mxu0 0.0
    %1873 = vmatpush.msra.mxu0 0.0
    %1874 = vmatpush.msra.mxu0 0.0
    %1875 = vmatpush.msra.mxu0 0.0
    %1876 = vmatpush.msra.mxu0 0.0
    %1877 = vmatpush.msra.mxu0 0.0
    %1878 = vmatpush.msra.mxu0 0.0
    %1879 = vmatpush.msra.mxu0 0.0
    %1880 = vmatpush.msra.mxu0 0.0
    %1881 = vmatpush.msra.mxu0 %v1861
    %1882 = vmatmul.f32.gmra.mxu0 %v1864
    %v1883 = vpop.f32.mrf.mxu0
    %v1884 = vadd.f32 0.0, %v1883
    %1885 = vdwg.mxu0
    %1886 = vrot.lane.b32.xlu0 %v1525, 64
    %v1887 = vpop.permute.xlu0 %1886
    %v1890 = vsel %vm1539, %v1828, 0
    %1892 = vmatpush.msra.mxu0 0.0
    %1893 = vmatpush.msra.mxu0 0.0
    %1894 = vmatpush.msra.mxu0 0.0
    %1895 = vmatpush.msra.mxu0 0.0
    %1896 = vmatpush.msra.mxu0 0.0
    %1897 = vmatpush.msra.mxu0 0.0
    %1898 = vmatpush.msra.mxu0 0.0
    %1899 = vmatpush.msra.mxu0 0.0
    %1900 = vmatpush.msra.mxu0 0.0
    %1901 = vmatpush.msra.mxu0 0.0
    %1902 = vmatpush.msra.mxu0 0.0
    %1903 = vmatpush.msra.mxu0 0.0
    %1904 = vmatpush.msra.mxu0 0.0
    %1905 = vmatpush.msra.mxu0 0.0
    %1906 = vmatpush.msra.mxu0 0.0
    %1907 = vmatpush.msra.mxu0 %v1887
    %1908 = vmatmul.f32.gmra.mxu0 %v1890
    %v1909 = vpop.f32.mrf.mxu0
    %v1910 = vadd.f32 0.0, %v1909
    %1911 = vdwg.mxu0
    %1912 = vrot.lane.b32.xlu0 %v1528, 64
    %v1913 = vpop.permute.xlu0 %1912
    %v1916 = vsel %vm1539, %v1829, 0
    %1918 = vmatpush.msra.mxu0 0.0
    %1919 = vmatpush.msra.mxu0 0.0
    %1920 = vmatpush.msra.mxu0 0.0
    %1921 = vmatpush.msra.mxu0 0.0
    %1922 = vmatpush.msra.mxu0 0.0
    %1923 = vmatpush.msra.mxu0 0.0
    %1924 = vmatpush.msra.mxu0 0.0
    %1925 = vmatpush.msra.mxu0 0.0
    %1926 = vmatpush.msra.mxu0 0.0
    %1927 = vmatpush.msra.mxu0 0.0
    %1928 = vmatpush.msra.mxu0 0.0
    %1929 = vmatpush.msra.mxu0 0.0
    %1930 = vmatpush.msra.mxu0 0.0
    %1931 = vmatpush.msra.mxu0 0.0
    %1932 = vmatpush.msra.mxu0 0.0
    %1933 = vmatpush.msra.mxu0 %v1913
    %1934 = vmatmul.f32.gmra.mxu0 %v1916
    %v1935 = vpop.f32.mrf.mxu0
    %v1936 = vadd.f32 0.0, %v1935
    %1937 = vdwg.mxu0
    %1938 = vrot.lane.b32.xlu0 %v1530, 64
    %v1939 = vpop.permute.xlu0 %1938
    %v1942 = vsel %vm1539, %v1830, 0
    %1944 = vmatpush.msra.mxu0 0.0
    %1945 = vmatpush.msra.mxu0 0.0
    %1946 = vmatpush.msra.mxu0 0.0
    %1947 = vmatpush.msra.mxu0 0.0
    %1948 = vmatpush.msra.mxu0 0.0
    %1949 = vmatpush.msra.mxu0 0.0
    %1950 = vmatpush.msra.mxu0 0.0
    %1951 = vmatpush.msra.mxu0 0.0
    %1952 = vmatpush.msra.mxu0 0.0
    %1953 = vmatpush.msra.mxu0 0.0
    %1954 = vmatpush.msra.mxu0 0.0
    %1955 = vmatpush.msra.mxu0 0.0
    %1956 = vmatpush.msra.mxu0 0.0
    %1957 = vmatpush.msra.mxu0 0.0
    %1958 = vmatpush.msra.mxu0 0.0
    %1959 = vmatpush.msra.mxu0 %v1939
    %1960 = vmatmul.f32.gmra.mxu0 %v1942
    %v1961 = vpop.f32.mrf.mxu0
    %v1962 = vadd.f32 0.0, %v1961
    %1963 = vdwg.mxu0
    %1964 = vrot.lane.b32.xlu0 %v1532, 64
    %v1965 = vpop.permute.xlu0 %1964
    %v1968 = vsel %vm1539, %v1831, 0
    %1970 = vmatpush.msra.mxu0 0.0
    %1971 = vmatpush.msra.mxu0 0.0
    %1972 = vmatpush.msra.mxu0 0.0
    %1973 = vmatpush.msra.mxu0 0.0
    %1974 = vmatpush.msra.mxu0 0.0
    %1975 = vmatpush.msra.mxu0 0.0
    %1976 = vmatpush.msra.mxu0 0.0
    %1977 = vmatpush.msra.mxu0 0.0
    %1978 = vmatpush.msra.mxu0 0.0
    %1979 = vmatpush.msra.mxu0 0.0
    %1980 = vmatpush.msra.mxu0 0.0
    %1981 = vmatpush.msra.mxu0 0.0
    %1982 = vmatpush.msra.mxu0 0.0
    %1983 = vmatpush.msra.mxu0 0.0
    %1984 = vmatpush.msra.mxu0 0.0
    %1985 = vmatpush.msra.mxu0 %v1965
    %1986 = vmatmul.f32.gmra.mxu0 %v1968
    %v1987 = vpop.f32.mrf.mxu0
    %v1988 = vadd.f32 0.0, %v1987
    %1989 = vdwg.mxu0
    %1990 = vrot.lane.b32.xlu0 %v1534, 64
    %v1991 = vpop.permute.xlu0 %1990
    %v1994 = vsel %vm1539, %v1832, 0
    %1996 = vmatpush.msra.mxu0 0.0
    %1997 = vmatpush.msra.mxu0 0.0
    %1998 = vmatpush.msra.mxu0 0.0
    %1999 = vmatpush.msra.mxu0 0.0
    %2000 = vmatpush.msra.mxu0 0.0
    %2001 = vmatpush.msra.mxu0 0.0
    %2002 = vmatpush.msra.mxu0 0.0
    %2003 = vmatpush.msra.mxu0 0.0
    %2004 = vmatpush.msra.mxu0 0.0
    %2005 = vmatpush.msra.mxu0 0.0
    %2006 = vmatpush.msra.mxu0 0.0
    %2007 = vmatpush.msra.mxu0 0.0
    %2008 = vmatpush.msra.mxu0 0.0
    %2009 = vmatpush.msra.mxu0 0.0
    %2010 = vmatpush.msra.mxu0 0.0
    %2011 = vmatpush.msra.mxu0 %v1991
    %2012 = vmatmul.f32.gmra.mxu0 %v1994
    %v2013 = vpop.f32.mrf.mxu0
    %v2014 = vadd.f32 0.0, %v2013
    %2015 = vdwg.mxu0
    %2016 = vrot.lane.b32.xlu0 %v1536, 64
    %v2017 = vpop.permute.xlu0 %2016
    %v2020 = vsel %vm1539, %v1833, 0
    %2022 = vmatpush.msra.mxu0 0.0
    %2023 = vmatpush.msra.mxu0 0.0
    %2024 = vmatpush.msra.mxu0 0.0
    %2025 = vmatpush.msra.mxu0 0.0
    %2026 = vmatpush.msra.mxu0 0.0
    %2027 = vmatpush.msra.mxu0 0.0
    %2028 = vmatpush.msra.mxu0 0.0
    %2029 = vmatpush.msra.mxu0 0.0
    %2030 = vmatpush.msra.mxu0 0.0
    %2031 = vmatpush.msra.mxu0 0.0
    %2032 = vmatpush.msra.mxu0 0.0
    %2033 = vmatpush.msra.mxu0 0.0
    %2034 = vmatpush.msra.mxu0 0.0
    %2035 = vmatpush.msra.mxu0 0.0
    %2036 = vmatpush.msra.mxu0 0.0
    %2037 = vmatpush.msra.mxu0 %v2017
    %2038 = vmatmul.f32.gmra.mxu0 %v2020
    %v2039 = vpop.f32.mrf.mxu0
    %v2040 = vadd.f32 0.0, %v2039
    %2041 = vdwg.mxu0
    %2043 = vrot.lane.b32.xlu0 %v1910, 8
    %v2044 = vpop.permute.xlu0 %2043
    %2047 = vrot.lane.b32.xlu0 %v1962, 16
    %v2048 = vpop.permute.xlu0 %2047
    %2051 = vrot.lane.b32.xlu0 %v2014, 24
    %v2052 = vpop.permute.xlu0 %2051
    %v2054 = vsel %vm1539, %v1858, %v2044
    %v2055 = vsel %vm265, %v2054, %v2048
    %vm2056 = vcmask 195584
    %v2057 = vsel %vm2056, %v2055, %v2052
    %2059 = vrot.lane.b32.xlu0 %v1936, 8
    %v2060 = vpop.permute.xlu0 %2059
    %2063 = vrot.lane.b32.xlu0 %v1988, 16
    %v2064 = vpop.permute.xlu0 %2063
    %2067 = vrot.lane.b32.xlu0 %v2040, 24
    %v2068 = vpop.permute.xlu0 %2067
    %v2070 = vsel %vm1539, %v1884, %v2060
    %v2071 = vsel %vm265, %v2070, %v2064
    %v2072 = vsel %vm2056, %v2071, %v2068
    %v2073 = vld [vmem:[#allocation12] sm:$0xff]
    %v2074 = vld [vmem:[#allocation12 + $0x8] sm:$0xff]
    %v2075 = vld [vmem:[#allocation12 + $0x10] sm:$0xff]
    %v2076 = vld [vmem:[#allocation12 + $0x18] sm:$0xff]
    %v2077 = vld [vmem:[#allocation14] sm:$0x1]
    %v2079 = vperm.slane %v2077, 0
    %v2082 = vsel %vm189, %v2057, 0
    %v2085 = vsel %vm189, %v2072, 0
    %2087 = vmatpush.msra.mxu0 0.0
    %2088 = vmatpush.msra.mxu0 0.0
    %2089 = vmatpush.msra.mxu0 0.0
    %2090 = vmatpush.msra.mxu0 0.0
    %2091 = vmatpush.msra.mxu0 0.0
    %2092 = vmatpush.msra.mxu0 0.0
    %2093 = vmatpush.msra.mxu0 0.0
    %2094 = vmatpush.msra.mxu0 0.0
    %2095 = vmatpush.msra.mxu0 0.0
    %2096 = vmatpush.msra.mxu0 0.0
    %2097 = vmatpush.msra.mxu0 0.0
    %2098 = vmatpush.msra.mxu0 0.0
    %2099 = vmatpush.msra.mxu0 %v2076
    %2100 = vmatpush.msra.mxu0 %v2075
    %2101 = vmatpush.msra.mxu0 %v2074
    %2102 = vmatpush.msra.mxu0 %v2073
    %2103 = vmatmul.f32.gmra.mxu0 %v2082
    %v2104 = vpop.f32.mrf.mxu0
    %v2105 = vadd.f32 %v2079, %v2104
    %2106 = vmatmul.f32.gmra.mxu0 %v2085
    %v2107 = vpop.f32.mrf.mxu0
    %v2108 = vadd.f32 %v2079, %v2107
    %2109 = vdwg.mxu0
    %v2110 = vsel %vm189, %v2105, 0.0
    %v2111 = vrot.slane %v2110, 4
    %v2112 = vadd.f32 %v2110, %v2111
    %v2113 = vrot.slane %v2112, 2
    %v2114 = vadd.f32 %v2112, %v2113
    %v2115 = vrot.slane %v2114, 1
    %v2116 = vadd.f32 %v2114, %v2115
    %v2117 = vrcp.pop 8.0
    %v2118 = vmul.f32 8.0, %v2117
    %v2119 = vsub.f32 1.0, %v2118
    %v2120 = vmul.f32 %v2117, %v2119
    %v2121 = vadd.f32 %v2117, %v2120
    %vm2122 = vweird.f32 %v2117
    %v2123 = vsel %vm2122, %v2117, %v2121
    %v2124 = vmul.f32 %v2116, %v2123
    %v2125 = vsel %vm189, %v2105, -inf
    %v2126 = vrot.slane %v2125, 4
    %v2127 = vmax.f32 %v2125, %v2126
    %v2128 = vrot.slane %v2127, 2
    %v2129 = vmax.f32 %v2127, %v2128
    %v2130 = vrot.slane %v2129, 1
    %v2131 = vmax.f32 %v2129, %v2130
    %2133 = vrot.lane.b32.xlu0 %v2131, 32
    %v2134 = vpop.permute.xlu0 %2133
    %v2136 = vsel %vm189, %v2124, %v2134
    %v2137 = vsel %vm189, %v2108, 0.0
    %v2138 = vrot.slane %v2137, 4
    %v2139 = vadd.f32 %v2137, %v2138
    %v2140 = vrot.slane %v2139, 2
    %v2141 = vadd.f32 %v2139, %v2140
    %v2142 = vrot.slane %v2141, 1
    %v2143 = vadd.f32 %v2141, %v2142
    %v2144 = vmul.f32 %v2143, %v2123
    %v2145 = vsel %vm189, %v2108, -inf
    %v2146 = vrot.slane %v2145, 4
    %v2147 = vmax.f32 %v2145, %v2146
    %v2148 = vrot.slane %v2147, 2
    %v2149 = vmax.f32 %v2147, %v2148
    %v2150 = vrot.slane %v2149, 1
    %v2151 = vmax.f32 %v2149, %v2150
    %2153 = vrot.lane.b32.xlu0 %v2151, 32
    %v2154 = vpop.permute.xlu0 %2153
    %v2156 = vsel %vm189, %v2144, %v2154
    %v2158 = vrot.slane %v2156, 7
    %v2160 = vsel %vm259, %v2136, %v2158
    %v2161 = vld [vmem:[%s14] sm:$0xff]
    %v2162 = vld [vmem:[%s14 + $0x8] sm:$0xff]
    %v2163 = vld [vmem:[%s14 + $0x10] sm:$0xff]
    %v2164 = vld [vmem:[%s14 + $0x18] sm:$0xff]
    %v2165 = vld [vmem:[%s14 + $0x20] sm:$0xff]
    %v2166 = vld [vmem:[%s14 + $0x28] sm:$0xff]
    %v2167 = vld [vmem:[%s14 + $0x30] sm:$0xff]
    %v2168 = vld [vmem:[%s14 + $0x38] sm:$0xff]
    %v2169 = vld [vmem:[#allocation15] sm:$0x1]
    %v2171 = vperm.slane %v2169, 0
    %vm2173 = vcmask 523264
    %v2175 = vsel %vm2173, %v2160, 0
    %2177 = vmatpush.msra.mxu0 0.0
    %2178 = vmatpush.msra.mxu0 0.0
    %2179 = vmatpush.msra.mxu0 0.0
    %2180 = vmatpush.msra.mxu0 0.0
    %2181 = vmatpush.msra.mxu0 0.0
    %2182 = vmatpush.msra.mxu0 0.0
    %2183 = vmatpush.msra.mxu0 0.0
    %2184 = vmatpush.msra.mxu0 0.0
    %2185 = vmatpush.msra.mxu0 %v2168
    %2186 = vmatpush.msra.mxu0 %v2167
    %2187 = vmatpush.msra.mxu0 %v2166
    %2188 = vmatpush.msra.mxu0 %v2165
    %2189 = vmatpush.msra.mxu0 %v2164
    %2190 = vmatpush.msra.mxu0 %v2163
    %2191 = vmatpush.msra.mxu0 %v2162
    %2192 = vmatpush.msra.mxu0 %v2161
    %2193 = vmatmul.f32.gmra.mxu0 %v2175
    %v2194 = vpop.f32.mrf.mxu0
    %v2195 = vadd.f32 %v2171, %v2194
    %2196 = vdwg.mxu0
    %v2197 = vmax.f32 %v2195, 0.0
    %v2198 = vld [vmem:[%s16] sm:$0x1]
    %v2200 = vperm.slane %v2198, 0
    %v2202 = vmul.f32 %v2197, %v2200
    %vm2203 = vcmask 123904
    %v2204 = vsel %vm2203, %v2202, 0.0
    %2205 = vadd.xlane.f32.xlu0 %v2204
    %v2206 = vpop.xlane.xlu0 %2205
    %v2207 = vld [vmem:[#allocation3] sm:$0x1]
    %v2209 = vperm.slane %v2207, 0
    %v2211 = vadd.f32 %v2206, %v2209
    %vm2212 = vcmask 1024
    %2213 = vst.msk [vmem:[%s18] sm:$0x3] %vm2212, %v2211
    // Predicated region
    $region106: #{deep_hydra_forward.1} parent=1 // pred_check
      _
    $region107: #{deep_hydra_forward.1} parent=1 // pred_check_branch
      %2215 = sbr.rel (0) target = $region109
    $region108: #{deep_hydra_forward.1} parent=1 // pred_region
      _
    $region109: #{deep_hydra_forward.1} parent=1 // pred_fallthru
      _
    // Predicated region
    $region110: #{deep_hydra_forward.1} parent=1 // pred_check
      _
    $region111: #{deep_hydra_forward.1} parent=1 // pred_check_branch
      %2217 = sbr.rel (0) target = $region113
    $region112: #{deep_hydra_forward.1} parent=1 // pred_region
      _
    $region113: #{deep_hydra_forward.1} parent=1 // pred_fallthru
      _
    %2218 = vsyncpa [#allocation5], 1
    %2219 = vsyncpa [#allocation7], 1
    %2220 = vsyncpa [#allocation10], 1
    %2221 = vsyncpa [#allocation13], 1
    %2222 = vsyncpa [#allocation16], 1

</llo_original>
